<compile_context>
chip_gen: v7x
topology: tpu7x:2x2x1
jax: 0.10.0
libtpu: 0.0.40
codegen_flags: <defaults>
</compile_context>

<pallas_src>
from functools import partial

import jax
import jax.numpy as jnp
from jax.experimental import pallas as pl
from jax.experimental.pallas import tpu as pltpu


# ------------------------------ Pallas kernel -------------------------------


def _conv_bn_act_kernel(xt_ref, w_ref, s_ref, b_ref, o_ref, acc_ref,
                        *, ksize, th, wo, act):
    """Fused ksize x ksize conv (stride 1) + folded BN + activation.

    xt_ref:  (th + 2*pad, wo + 2*pad, Cp)   bf16, halo'd input tile (NHWC)
    w_ref:   (ksize*ksize, Cp, Cop)          bf16, tap-major HWIO weights
    s_ref:   (1, Cop)                        f32, folded BN scale
    b_ref:   (1, Cop)                        f32, folded BN bias
    o_ref:   (th*wo, Cop)                    output tile (lane-dense)
    acc_ref: (th*wo, Cop)                    f32 VMEM accumulator scratch
    """
    for kh in range(ksize):
        for kw in range(ksize):
            t = kh * ksize + kw
            patch = xt_ref[kh:kh + th, kw:kw + wo, :]        # (th, wo, Cp)
            patch2d = patch.reshape(th * wo, patch.shape[-1])
            contrib = jnp.dot(patch2d, w_ref[t],
                              preferred_element_type=jnp.float32)
            if t == 0:
                acc_ref[...] = contrib
            else:
                acc_ref[...] += contrib

    # Folded BatchNorm + activation epilogue, all in f32.
    y = acc_ref[...] * s_ref[...] + b_ref[...]
    if act == "silu":
        y = y * jax.nn.sigmoid(y)
    elif act == "relu":
        y = jnp.maximum(y, 0.0)
    elif act == "lrelu":
        y = jnp.where(y > 0, y, 0.1 * y)
    else:
        raise AttributeError("Unsupported act type: {}".format(act))
    o_ref[...] = y.astype(o_ref.dtype)


# --------------------------------- wrapper ----------------------------------


def _round_up(x, m):
    return (x + m - 1) // m * m


def _choose_tile_h(H, W, cp, cop, pad, max_rows=2048, budget_bytes=6 << 20):
    """Largest H-tile whose double-buffered VMEM footprint fits the budget."""
    best = 1
    for th in range(1, H + 1):
        if H % th:
            continue
        rows = th * W
        if rows > max_rows:
            continue
        in_b = (th + 2 * pad) * (W + 2 * pad) * cp * 2      # bf16 input tile
        out_b = rows * cop * 4                               # f32 output tile
        acc_b = rows * cop * 4                               # f32 accumulator
        if 2 * (in_b + out_b) + acc_b <= budget_bytes:
            best = th
    return best


def base_conv_forward(x_nchw, w_oihw, bn_scale, bn_bias, *,
                      stride=1, groups=1, act="silu",
                      out_dtype=jnp.float32):
    """BaseConv forward. x_nchw: (N, Cin, H, W). Returns NCHW `out_dtype`.

    NCHW<->NHWC transposes are kept only to match the PyTorch interface; a
    production network should stay NHWC end-to-end so they disappear.
    """
    if stride != 1 or groups != 1:
        # TODO(synk): stride > 1 and grouped convolutions are not implemented.
        raise NotImplementedError("only stride=1, groups=1 is implemented")

    N, Cin, H, W = x_nchw.shape
    Cout, Cin_w, k, k2 = w_oihw.shape
    assert k == k2 and Cin_w == Cin
    pad = (k - 1) // 2

    cp = _round_up(Cin, 128)    # lane-dense input channels
    cop = _round_up(Cout, 128)  # lane-dense output channels

    # NCHW -> NHWC, bf16 for the MXU, zero-pad channels + spatial halo.
    x = jnp.transpose(x_nchw, (0, 2, 3, 1)).astype(jnp.bfloat16)
    xp = jnp.pad(x, ((0, 0), (pad, pad), (pad, pad), (0, cp - Cin)))
    Wp = W + 2 * pad

    # Pick an H-tile, then build halo'd tiles (each tile carries its own
    # pad rows so the BlockSpec windows never overlap).
    th = _choose_tile_h(H, W, cp, cop, pad)
    n_h = H // th
    thp = th + 2 * pad
    if n_h == 1:
        xt = xp[:, None]                                     # (N, 1, thp, Wp, cp)
    else:
        xt = jnp.stack(
            [xp[:, i * th:i * th + thp] for i in range(n_h)], axis=1)

    # Weights: OIHW -> HWIO, pad channels, flatten taps, bf16.
    w = jnp.transpose(w_oihw, (2, 3, 1, 0))                  # (k, k, Cin, Cout)
    w = jnp.pad(w, ((0, 0), (0, 0), (0, cp - Cin), (0, cop - Cout)))
    w = w.reshape(k * k, cp, cop).astype(jnp.bfloat16)

    s = jnp.pad(bn_scale.astype(jnp.float32), (0, cop - Cout)).reshape(1, cop)
    b = jnp.pad(bn_bias.astype(jnp.float32), (0, cop - Cout)).reshape(1, cop)

    rows = th * W
    kern = partial(_conv_bn_act_kernel, ksize=k, th=th, wo=W, act=act)

    out = pl.pallas_call(
        kern,
        out_shape=jax.ShapeDtypeStruct((N, n_h, rows, cop), out_dtype),
        grid_spec=pltpu.PrefetchScalarGridSpec(
            num_scalar_prefetch=0,
            grid=(N, n_h),
            in_specs=[
                pl.BlockSpec((None, None, thp, Wp, cp),
                             lambda n, i: (n, i, 0, 0, 0)),
                pl.BlockSpec((k * k, cp, cop), lambda n, i: (0, 0, 0)),
                pl.BlockSpec((1, cop), lambda n, i: (0, 0)),
                pl.BlockSpec((1, cop), lambda n, i: (0, 0)),
            ],
            out_specs=pl.BlockSpec((None, None, rows, cop),
                                   lambda n, i: (n, i, 0, 0)),
            scratch_shapes=[pltpu.VMEM((rows, cop), jnp.float32)],
        ),
        compiler_params=pltpu.CompilerParams(
            dimension_semantics=("parallel", "parallel"),
            vmem_limit_bytes=48 * 1024 * 1024,   # fits v7x's 64 MiB physical
        ),
    )(xt, w, s, b)

    # (N, n_h, th*W, cop) -> (N, H, W, Cout) -> NCHW.
    y = out.reshape(N, n_h, th, W, cop).reshape(N, H, W, cop)[..., :Cout]
    return jnp.transpose(y, (0, 3, 1, 2))


# ----------------------------- pure-JAX reference ---------------------------


def base_conv_reference(x_nchw, w_oihw, bn_scale, bn_bias, *, act="silu"):
    x = jnp.transpose(x_nchw, (0, 2, 3, 1)).astype(jnp.bfloat16)
    w = jnp.transpose(w_oihw, (2, 3, 1, 0)).astype(jnp.bfloat16)
    y = jax.lax.conv_general_dilated(
        x, w, (1, 1), "SAME",
        dimension_numbers=("NHWC", "HWIO", "NHWC"),
        preferred_element_type=jnp.float32)
    y = y * bn_scale + bn_bias
    if act == "silu":
        y = y * jax.nn.sigmoid(y)
    elif act == "relu":
        y = jnp.maximum(y, 0.0)
    elif act == "lrelu":
        y = jnp.where(y > 0, y, 0.1 * y)
    return jnp.transpose(y, (0, 3, 1, 2))


# -------------------------------- param init --------------------------------


def fold_batchnorm(gamma, beta, mean, var, eps=1e-5):
    scale = gamma * jax.lax.rsqrt(var + eps)
    bias = beta - mean * scale
    return scale, bias


def make_params(key, cin, cout, ksize):
    ks = jax.random.split(key, 5)
    fan_in = cin * ksize * ksize
    w = jax.random.normal(ks[0], (cout, cin, ksize, ksize),
                          jnp.float32) / jnp.sqrt(fan_in)
    gamma = jax.random.uniform(ks[1], (cout,), jnp.float32, 0.5, 1.5)
    beta = jax.random.normal(ks[2], (cout,), jnp.float32) * 0.1
    mean = jax.random.normal(ks[3], (cout,), jnp.float32) * 0.1
    var = jax.random.uniform(ks[4], (cout,), jnp.float32, 0.5, 1.5)
    return w, gamma, beta, mean, var


# ----------------------------------- main ------------------------------------


if __name__ == "__main__":
    N, Cin, H, W = 2, 4, 16, 16
    Cout, ksize = 8, 3

    key = jax.random.PRNGKey(0)
    kx, kp = jax.random.split(key)
    x = jax.random.normal(kx, (N, Cin, H, W), jnp.float32)
    w, gamma, beta, mean, var = make_params(kp, Cin, Cout, ksize)
    scale, bias = fold_batchnorm(gamma, beta, mean, var)

    y = base_conv_forward(x, w, scale, bias, act="silu")
    y = jax.block_until_ready(y)

    y_ref = base_conv_reference(x, w, scale, bias, act="silu")
    assert y.shape == (N, Cout, H, W)
    err = float(jnp.max(jnp.abs(y - y_ref)))
    assert jnp.allclose(y, y_ref, atol=2e-3, rtol=2e-3), err

    print("KERNEL_OK")
</pallas_src>

<mosaic_0001>
module attributes {stable_mosaic.version = 11 : i64} {
  func.func @_conv_bn_act_kernel(%arg0: i32, %arg1: i32, %arg2: memref<1x1x18x18x128xbf16, #tpu.memory_space<vmem>>, %arg3: memref<9x128x128xbf16, #tpu.memory_space<vmem>>, %arg4: memref<1x128xf32, #tpu.memory_space<vmem>>, %arg5: memref<1x128xf32, #tpu.memory_space<vmem>>, %arg6: memref<1x1x256x128xf32, #tpu.memory_space<vmem>>, %arg7: memref<256x128xf32, #tpu.memory_space<vmem>>) attributes {dimension_semantics = [#tpu.dimension_semantics<parallel>, #tpu.dimension_semantics<parallel>], iteration_bounds = array<i64: 2, 1>, scalar_prefetch = 0 : i64, scratch_operands = 1 : i64, tpu.core_type = #tpu.core_type<tc>, window_params = [{transform_indices = @transform_0, window_bounds = array<i64: 1, 1, 18, 18, 128>}, {pipeline_mode = #tpu.pipeline_mode<synchronous>, transform_indices = @transform_1, window_bounds = array<i64: 9, 128, 128>}, {pipeline_mode = #tpu.pipeline_mode<synchronous>, transform_indices = @transform_2, window_bounds = array<i64: 1, 128>}, {pipeline_mode = #tpu.pipeline_mode<synchronous>, transform_indices = @transform_3, window_bounds = array<i64: 1, 128>}, {transform_indices = @transform_4, window_bounds = array<i64: 1, 1, 256, 128>}]} {
    %c0 = arith.constant 0 : index
    %c0_0 = arith.constant 0 : index
    %c0_1 = arith.constant 0 : index
    %c0_2 = arith.constant 0 : index
    %c0_3 = arith.constant 0 : index
    %0 = vector.load %arg2[%c0, %c0_0, %c0_1, %c0_2, %c0_3] : memref<1x1x18x18x128xbf16, #tpu.memory_space<vmem>>, vector<1x1x16x16x128xbf16>
    %1 = vector.shape_cast %0 : vector<1x1x16x16x128xbf16> to vector<16x16x128xbf16>
    %2 = vector.shape_cast %1 : vector<16x16x128xbf16> to vector<256x128xbf16>
    %c0_4 = arith.constant 0 : index
    %c0_5 = arith.constant 0 : index
    %c0_6 = arith.constant 0 : index
    %3 = vector.load %arg3[%c0_4, %c0_5, %c0_6] : memref<9x128x128xbf16, #tpu.memory_space<vmem>>, vector<1x128x128xbf16>
    %4 = vector.shape_cast %3 : vector<1x128x128xbf16> to vector<128x128xbf16>
    %cst = arith.constant dense<0.000000e+00> : vector<256x128xf32>
    %5 = tpu.matmul %2, %4, %cst {dimension_numbers = #tpu.dot_dimension_numbers<[1], [0], [0], [1], [0, 0, 1, 1], [], []>} : vector<256x128xbf16>, vector<128x128xbf16>, vector<256x128xf32> -> vector<256x128xf32>
    %c0_7 = arith.constant 0 : index
    %c0_8 = arith.constant 0 : index
    %6 = vector.load %arg7[%c0_7, %c0_8] : memref<256x128xf32, #tpu.memory_space<vmem>>, vector<256x128xf32>
    tpu.vector_store %arg7[%c0_7, %c0_8], %5 {strides = array<i32>} : memref<256x128xf32, #tpu.memory_space<vmem>>, vector<256x128xf32>,
    %c0_9 = arith.constant 0 : index
    %c0_10 = arith.constant 0 : index
    %c0_11 = arith.constant 0 : index
    %c1 = arith.constant 1 : index
    %c0_12 = arith.constant 0 : index
    %7 = vector.load %arg2[%c0_9, %c0_10, %c0_11, %c1, %c0_12] : memref<1x1x18x18x128xbf16, #tpu.memory_space<vmem>>, vector<1x1x16x16x128xbf16>
    %8 = vector.shape_cast %7 : vector<1x1x16x16x128xbf16> to vector<16x16x128xbf16>
    %9 = vector.shape_cast %8 : vector<16x16x128xbf16> to vector<256x128xbf16>
    %c1_13 = arith.constant 1 : index
    %c0_14 = arith.constant 0 : index
    %c0_15 = arith.constant 0 : index
    %10 = vector.load %arg3[%c1_13, %c0_14, %c0_15] : memref<9x128x128xbf16, #tpu.memory_space<vmem>>, vector<1x128x128xbf16>
    %11 = vector.shape_cast %10 : vector<1x128x128xbf16> to vector<128x128xbf16>
    %cst_16 = arith.constant dense<0.000000e+00> : vector<256x128xf32>
    %12 = tpu.matmul %9, %11, %cst_16 {dimension_numbers = #tpu.dot_dimension_numbers<[1], [0], [0], [1], [0, 0, 1, 1], [], []>} : vector<256x128xbf16>, vector<128x128xbf16>, vector<256x128xf32> -> vector<256x128xf32>
    %c0_17 = arith.constant 0 : index
    %c0_18 = arith.constant 0 : index
    %13 = vector.load %arg7[%c0_17, %c0_18] : memref<256x128xf32, #tpu.memory_space<vmem>>, vector<256x128xf32>
    %14 = arith.addf %13, %12 : vector<256x128xf32>
    %c0_19 = arith.constant 0 : index
    %c0_20 = arith.constant 0 : index
    %15 = vector.load %arg7[%c0_19, %c0_20] : memref<256x128xf32, #tpu.memory_space<vmem>>, vector<256x128xf32>
    tpu.vector_store %arg7[%c0_19, %c0_20], %14 {strides = array<i32>} : memref<256x128xf32, #tpu.memory_space<vmem>>, vector<256x128xf32>,
    %c0_21 = arith.constant 0 : index
    %c0_22 = arith.constant 0 : index
    %c0_23 = arith.constant 0 : index
    %c2 = arith.constant 2 : index
    %c0_24 = arith.constant 0 : index
    %16 = vector.load %arg2[%c0_21, %c0_22, %c0_23, %c2, %c0_24] : memref<1x1x18x18x128xbf16, #tpu.memory_space<vmem>>, vector<1x1x16x16x128xbf16>
    %17 = vector.shape_cast %16 : vector<1x1x16x16x128xbf16> to vector<16x16x128xbf16>
    %18 = vector.shape_cast %17 : vector<16x16x128xbf16> to vector<256x128xbf16>
    %c2_25 = arith.constant 2 : index
    %c0_26 = arith.constant 0 : index
    %c0_27 = arith.constant 0 : index
    %19 = vector.load %arg3[%c2_25, %c0_26, %c0_27] : memref<9x128x128xbf16, #tpu.memory_space<vmem>>, vector<1x128x128xbf16>
    %20 = vector.shape_cast %19 : vector<1x128x128xbf16> to vector<128x128xbf16>
    %cst_28 = arith.constant dense<0.000000e+00> : vector<256x128xf32>
    %21 = tpu.matmul %18, %20, %cst_28 {dimension_numbers = #tpu.dot_dimension_numbers<[1], [0], [0], [1], [0, 0, 1, 1], [], []>} : vector<256x128xbf16>, vector<128x128xbf16>, vector<256x128xf32> -> vector<256x128xf32>
    %c0_29 = arith.constant 0 : index
    %c0_30 = arith.constant 0 : index
    %22 = vector.load %arg7[%c0_29, %c0_30] : memref<256x128xf32, #tpu.memory_space<vmem>>, vector<256x128xf32>
    %23 = arith.addf %22, %21 : vector<256x128xf32>
    %c0_31 = arith.constant 0 : index
    %c0_32 = arith.constant 0 : index
    %24 = vector.load %arg7[%c0_31, %c0_32] : memref<256x128xf32, #tpu.memory_space<vmem>>, vector<256x128xf32>
    tpu.vector_store %arg7[%c0_31, %c0_32], %23 {strides = array<i32>} : memref<256x128xf32, #tpu.memory_space<vmem>>, vector<256x128xf32>,
    %c0_33 = arith.constant 0 : index
    %c0_34 = arith.constant 0 : index
    %c1_35 = arith.constant 1 : index
    %c0_36 = arith.constant 0 : index
    %c0_37 = arith.constant 0 : index
    %25 = vector.load %arg2[%c0_33, %c0_34, %c1_35, %c0_36, %c0_37] : memref<1x1x18x18x128xbf16, #tpu.memory_space<vmem>>, vector<1x1x16x16x128xbf16>
    %26 = vector.shape_cast %25 : vector<1x1x16x16x128xbf16> to vector<16x16x128xbf16>
    %27 = vector.shape_cast %26 : vector<16x16x128xbf16> to vector<256x128xbf16>
    %c3 = arith.constant 3 : index
    %c0_38 = arith.constant 0 : index
    %c0_39 = arith.constant 0 : index
    %28 = vector.load %arg3[%c3, %c0_38, %c0_39] : memref<9x128x128xbf16, #tpu.memory_space<vmem>>, vector<1x128x128xbf16>
    %29 = vector.shape_cast %28 : vector<1x128x128xbf16> to vector<128x128xbf16>
    %cst_40 = arith.constant dense<0.000000e+00> : vector<256x128xf32>
    %30 = tpu.matmul %27, %29, %cst_40 {dimension_numbers = #tpu.dot_dimension_numbers<[1], [0], [0], [1], [0, 0, 1, 1], [], []>} : vector<256x128xbf16>, vector<128x128xbf16>, vector<256x128xf32> -> vector<256x128xf32>
    %c0_41 = arith.constant 0 : index
    %c0_42 = arith.constant 0 : index
    %31 = vector.load %arg7[%c0_41, %c0_42] : memref<256x128xf32, #tpu.memory_space<vmem>>, vector<256x128xf32>
    %32 = arith.addf %31, %30 : vector<256x128xf32>
    %c0_43 = arith.constant 0 : index
    %c0_44 = arith.constant 0 : index
    %33 = vector.load %arg7[%c0_43, %c0_44] : memref<256x128xf32, #tpu.memory_space<vmem>>, vector<256x128xf32>
    tpu.vector_store %arg7[%c0_43, %c0_44], %32 {strides = array<i32>} : memref<256x128xf32, #tpu.memory_space<vmem>>, vector<256x128xf32>,
    %c0_45 = arith.constant 0 : index
    %c0_46 = arith.constant 0 : index
    %c1_47 = arith.constant 1 : index
    %c1_48 = arith.constant 1 : index
    %c0_49 = arith.constant 0 : index
    %34 = vector.load %arg2[%c0_45, %c0_46, %c1_47, %c1_48, %c0_49] : memref<1x1x18x18x128xbf16, #tpu.memory_space<vmem>>, vector<1x1x16x16x128xbf16>
    %35 = vector.shape_cast %34 : vector<1x1x16x16x128xbf16> to vector<16x16x128xbf16>
    %36 = vector.shape_cast %35 : vector<16x16x128xbf16> to vector<256x128xbf16>
    %c4 = arith.constant 4 : index
    %c0_50 = arith.constant 0 : index
    %c0_51 = arith.constant 0 : index
    %37 = vector.load %arg3[%c4, %c0_50, %c0_51] : memref<9x128x128xbf16, #tpu.memory_space<vmem>>, vector<1x128x128xbf16>
    %38 = vector.shape_cast %37 : vector<1x128x128xbf16> to vector<128x128xbf16>
    %cst_52 = arith.constant dense<0.000000e+00> : vector<256x128xf32>
    %39 = tpu.matmul %36, %38, %cst_52 {dimension_numbers = #tpu.dot_dimension_numbers<[1], [0], [0], [1], [0, 0, 1, 1], [], []>} : vector<256x128xbf16>, vector<128x128xbf16>, vector<256x128xf32> -> vector<256x128xf32>
    %c0_53 = arith.constant 0 : index
    %c0_54 = arith.constant 0 : index
    %40 = vector.load %arg7[%c0_53, %c0_54] : memref<256x128xf32, #tpu.memory_space<vmem>>, vector<256x128xf32>
    %41 = arith.addf %40, %39 : vector<256x128xf32>
    %c0_55 = arith.constant 0 : index
    %c0_56 = arith.constant 0 : index
    %42 = vector.load %arg7[%c0_55, %c0_56] : memref<256x128xf32, #tpu.memory_space<vmem>>, vector<256x128xf32>
    tpu.vector_store %arg7[%c0_55, %c0_56], %41 {strides = array<i32>} : memref<256x128xf32, #tpu.memory_space<vmem>>, vector<256x128xf32>,
    %c0_57 = arith.constant 0 : index
    %c0_58 = arith.constant 0 : index
    %c1_59 = arith.constant 1 : index
    %c2_60 = arith.constant 2 : index
    %c0_61 = arith.constant 0 : index
    %43 = vector.load %arg2[%c0_57, %c0_58, %c1_59, %c2_60, %c0_61] : memref<1x1x18x18x128xbf16, #tpu.memory_space<vmem>>, vector<1x1x16x16x128xbf16>
    %44 = vector.shape_cast %43 : vector<1x1x16x16x128xbf16> to vector<16x16x128xbf16>
    %45 = vector.shape_cast %44 : vector<16x16x128xbf16> to vector<256x128xbf16>
    %c5 = arith.constant 5 : index
    %c0_62 = arith.constant 0 : index
    %c0_63 = arith.constant 0 : index
    %46 = vector.load %arg3[%c5, %c0_62, %c0_63] : memref<9x128x128xbf16, #tpu.memory_space<vmem>>, vector<1x128x128xbf16>
    %47 = vector.shape_cast %46 : vector<1x128x128xbf16> to vector<128x128xbf16>
    %cst_64 = arith.constant dense<0.000000e+00> : vector<256x128xf32>
    %48 = tpu.matmul %45, %47, %cst_64 {dimension_numbers = #tpu.dot_dimension_numbers<[1], [0], [0], [1], [0, 0, 1, 1], [], []>} : vector<256x128xbf16>, vector<128x128xbf16>, vector<256x128xf32> -> vector<256x128xf32>
    %c0_65 = arith.constant 0 : index
    %c0_66 = arith.constant 0 : index
    %49 = vector.load %arg7[%c0_65, %c0_66] : memref<256x128xf32, #tpu.memory_space<vmem>>, vector<256x128xf32>
    %50 = arith.addf %49, %48 : vector<256x128xf32>
    %c0_67 = arith.constant 0 : index
    %c0_68 = arith.constant 0 : index
    %51 = vector.load %arg7[%c0_67, %c0_68] : memref<256x128xf32, #tpu.memory_space<vmem>>, vector<256x128xf32>
    tpu.vector_store %arg7[%c0_67, %c0_68], %50 {strides = array<i32>} : memref<256x128xf32, #tpu.memory_space<vmem>>, vector<256x128xf32>,
    %c0_69 = arith.constant 0 : index
    %c0_70 = arith.constant 0 : index
    %c2_71 = arith.constant 2 : index
    %c0_72 = arith.constant 0 : index
    %c0_73 = arith.constant 0 : index
    %52 = vector.load %arg2[%c0_69, %c0_70, %c2_71, %c0_72, %c0_73] : memref<1x1x18x18x128xbf16, #tpu.memory_space<vmem>>, vector<1x1x16x16x128xbf16>
    %53 = vector.shape_cast %52 : vector<1x1x16x16x128xbf16> to vector<16x16x128xbf16>
    %54 = vector.shape_cast %53 : vector<16x16x128xbf16> to vector<256x128xbf16>
    %c6 = arith.constant 6 : index
    %c0_74 = arith.constant 0 : index
    %c0_75 = arith.constant 0 : index
    %55 = vector.load %arg3[%c6, %c0_74, %c0_75] : memref<9x128x128xbf16, #tpu.memory_space<vmem>>, vector<1x128x128xbf16>
    %56 = vector.shape_cast %55 : vector<1x128x128xbf16> to vector<128x128xbf16>
    %cst_76 = arith.constant dense<0.000000e+00> : vector<256x128xf32>
    %57 = tpu.matmul %54, %56, %cst_76 {dimension_numbers = #tpu.dot_dimension_numbers<[1], [0], [0], [1], [0, 0, 1, 1], [], []>} : vector<256x128xbf16>, vector<128x128xbf16>, vector<256x128xf32> -> vector<256x128xf32>
    %c0_77 = arith.constant 0 : index
    %c0_78 = arith.constant 0 : index
    %58 = vector.load %arg7[%c0_77, %c0_78] : memref<256x128xf32, #tpu.memory_space<vmem>>, vector<256x128xf32>
    %59 = arith.addf %58, %57 : vector<256x128xf32>
    %c0_79 = arith.constant 0 : index
    %c0_80 = arith.constant 0 : index
    %60 = vector.load %arg7[%c0_79, %c0_80] : memref<256x128xf32, #tpu.memory_space<vmem>>, vector<256x128xf32>
    tpu.vector_store %arg7[%c0_79, %c0_80], %59 {strides = array<i32>} : memref<256x128xf32, #tpu.memory_space<vmem>>, vector<256x128xf32>,
    %c0_81 = arith.constant 0 : index
    %c0_82 = arith.constant 0 : index
    %c2_83 = arith.constant 2 : index
    %c1_84 = arith.constant 1 : index
    %c0_85 = arith.constant 0 : index
    %61 = vector.load %arg2[%c0_81, %c0_82, %c2_83, %c1_84, %c0_85] : memref<1x1x18x18x128xbf16, #tpu.memory_space<vmem>>, vector<1x1x16x16x128xbf16>
    %62 = vector.shape_cast %61 : vector<1x1x16x16x128xbf16> to vector<16x16x128xbf16>
    %63 = vector.shape_cast %62 : vector<16x16x128xbf16> to vector<256x128xbf16>
    %c7 = arith.constant 7 : index
    %c0_86 = arith.constant 0 : index
    %c0_87 = arith.constant 0 : index
    %64 = vector.load %arg3[%c7, %c0_86, %c0_87] : memref<9x128x128xbf16, #tpu.memory_space<vmem>>, vector<1x128x128xbf16>
    %65 = vector.shape_cast %64 : vector<1x128x128xbf16> to vector<128x128xbf16>
    %cst_88 = arith.constant dense<0.000000e+00> : vector<256x128xf32>
    %66 = tpu.matmul %63, %65, %cst_88 {dimension_numbers = #tpu.dot_dimension_numbers<[1], [0], [0], [1], [0, 0, 1, 1], [], []>} : vector<256x128xbf16>, vector<128x128xbf16>, vector<256x128xf32> -> vector<256x128xf32>
    %c0_89 = arith.constant 0 : index
    %c0_90 = arith.constant 0 : index
    %67 = vector.load %arg7[%c0_89, %c0_90] : memref<256x128xf32, #tpu.memory_space<vmem>>, vector<256x128xf32>
    %68 = arith.addf %67, %66 : vector<256x128xf32>
    %c0_91 = arith.constant 0 : index
    %c0_92 = arith.constant 0 : index
    %69 = vector.load %arg7[%c0_91, %c0_92] : memref<256x128xf32, #tpu.memory_space<vmem>>, vector<256x128xf32>
    tpu.vector_store %arg7[%c0_91, %c0_92], %68 {strides = array<i32>} : memref<256x128xf32, #tpu.memory_space<vmem>>, vector<256x128xf32>,
    %c0_93 = arith.constant 0 : index
    %c0_94 = arith.constant 0 : index
    %c2_95 = arith.constant 2 : index
    %c2_96 = arith.constant 2 : index
    %c0_97 = arith.constant 0 : index
    %70 = vector.load %arg2[%c0_93, %c0_94, %c2_95, %c2_96, %c0_97] : memref<1x1x18x18x128xbf16, #tpu.memory_space<vmem>>, vector<1x1x16x16x128xbf16>
    %71 = vector.shape_cast %70 : vector<1x1x16x16x128xbf16> to vector<16x16x128xbf16>
    %72 = vector.shape_cast %71 : vector<16x16x128xbf16> to vector<256x128xbf16>
    %c8 = arith.constant 8 : index
    %c0_98 = arith.constant 0 : index
    %c0_99 = arith.constant 0 : index
    %73 = vector.load %arg3[%c8, %c0_98, %c0_99] : memref<9x128x128xbf16, #tpu.memory_space<vmem>>, vector<1x128x128xbf16>
    %74 = vector.shape_cast %73 : vector<1x128x128xbf16> to vector<128x128xbf16>
    %cst_100 = arith.constant dense<0.000000e+00> : vector<256x128xf32>
    %75 = tpu.matmul %72, %74, %cst_100 {dimension_numbers = #tpu.dot_dimension_numbers<[1], [0], [0], [1], [0, 0, 1, 1], [], []>} : vector<256x128xbf16>, vector<128x128xbf16>, vector<256x128xf32> -> vector<256x128xf32>
    %c0_101 = arith.constant 0 : index
    %c0_102 = arith.constant 0 : index
    %76 = vector.load %arg7[%c0_101, %c0_102] : memref<256x128xf32, #tpu.memory_space<vmem>>, vector<256x128xf32>
    %77 = arith.addf %76, %75 : vector<256x128xf32>
    %c0_103 = arith.constant 0 : index
    %c0_104 = arith.constant 0 : index
    %78 = vector.load %arg7[%c0_103, %c0_104] : memref<256x128xf32, #tpu.memory_space<vmem>>, vector<256x128xf32>
    tpu.vector_store %arg7[%c0_103, %c0_104], %77 {strides = array<i32>} : memref<256x128xf32, #tpu.memory_space<vmem>>, vector<256x128xf32>,
    %c0_105 = arith.constant 0 : index
    %c0_106 = arith.constant 0 : index
    %79 = vector.load %arg7[%c0_105, %c0_106] : memref<256x128xf32, #tpu.memory_space<vmem>>, vector<256x128xf32>
    %c0_107 = arith.constant 0 : index
    %c0_108 = arith.constant 0 : index
    %80 = vector.load %arg4[%c0_107, %c0_108] : memref<1x128xf32, #tpu.memory_space<vmem>>, vector<1x128xf32>
    %81 = vector.broadcast %80 : vector<1x128xf32> to vector<256x128xf32>
    %82 = arith.mulf %79, %81 : vector<256x128xf32>
    %c0_109 = arith.constant 0 : index
    %c0_110 = arith.constant 0 : index
    %83 = vector.load %arg5[%c0_109, %c0_110] : memref<1x128xf32, #tpu.memory_space<vmem>>, vector<1x128xf32>
    %84 = vector.broadcast %83 : vector<1x128xf32> to vector<256x128xf32>
    %85 = arith.addf %82, %84 : vector<256x128xf32>
    %86 = arith.negf %85 : vector<256x128xf32>
    %87 = math.exp %86 : vector<256x128xf32>
    %cst_111 = arith.constant 1.000000e+00 : f32
    %88 = vector.broadcast %cst_111 : f32 to vector<256x128xf32>
    %89 = arith.addf %88, %87 : vector<256x128xf32>
    %90 = arith.divf %88, %89 : vector<256x128xf32>
    %91 = arith.mulf %85, %90 : vector<256x128xf32>
    %c0_112 = arith.constant 0 : index
    %c0_113 = arith.constant 0 : index
    %c0_114 = arith.constant 0 : index
    %c0_115 = arith.constant 0 : index
    %92 = vector.load %arg6[%c0_112, %c0_113, %c0_114, %c0_115] : memref<1x1x256x128xf32, #tpu.memory_space<vmem>>, vector<1x1x256x128xf32>
    %93 = vector.shape_cast %92 : vector<1x1x256x128xf32> to vector<256x128xf32>
    %94 = vector.shape_cast %91 : vector<256x128xf32> to vector<1x1x256x128xf32>
    tpu.vector_store %arg6[%c0_112, %c0_113, %c0_114, %c0_115], %94 {strides = array<i32>} : memref<1x1x256x128xf32, #tpu.memory_space<vmem>>, vector<1x1x256x128xf32>,
    return
  }
  func.func @transform_0(%arg0: i32, %arg1: i32) -> (i32, i32, i32, i32, i32) {
    %c0_i32 = arith.constant 0 : i32
    %c0_i32_0 = arith.constant 0 : i32
    %c0_i32_1 = arith.constant 0 : i32
    %c0_i32_2 = arith.constant 0 : i32
    return %arg0, %arg1, %c0_i32, %c0_i32_0, %c0_i32_1 : i32, i32, i32, i32, i32
  }
  func.func @transform_1(%arg0: i32, %arg1: i32) -> (i32, i32, i32) {
    %c0_i32 = arith.constant 0 : i32
    %c0_i32_0 = arith.constant 0 : i32
    %c0_i32_1 = arith.constant 0 : i32
    %c0_i32_2 = arith.constant 0 : i32
    return %c0_i32, %c0_i32_0, %c0_i32_1 : i32, i32, i32
  }
  func.func @transform_2(%arg0: i32, %arg1: i32) -> (i32, i32) {
    %c0_i32 = arith.constant 0 : i32
    %c0_i32_0 = arith.constant 0 : i32
    %c0_i32_1 = arith.constant 0 : i32
    return %c0_i32, %c0_i32_0 : i32, i32
  }
  func.func @transform_3(%arg0: i32, %arg1: i32) -> (i32, i32) {
    %c0_i32 = arith.constant 0 : i32
    %c0_i32_0 = arith.constant 0 : i32
    %c0_i32_1 = arith.constant 0 : i32
    return %c0_i32, %c0_i32_0 : i32, i32
  }
  func.func @transform_4(%arg0: i32, %arg1: i32) -> (i32, i32, i32, i32) {
    %c0_i32 = arith.constant 0 : i32
    %c0_i32_0 = arith.constant 0 : i32
    %c0_i32_1 = arith.constant 0 : i32
    return %arg0, %arg1, %c0_i32, %c0_i32_0 : i32, i32, i32, i32
  }
}

</mosaic_0001>

<llo_original>
// kernel: tpu_custom_call.1
$region0: #{tpu_custom_call.1}
  #allocation0 [shape = 'u32[]', space=smem, size = 0x4, offset = 0x4, fixed_abs, tag = 'smem constant byte address 0x4 - core index']
  #allocation1 [shape = 'u32[144,128]{1,0:T(1,128)}', space=vmem, size = 0x12000, scoped, tag = 'internal scratch']
  #allocation2 [shape = 'f32[256,128]{1,0:T(8,128)}', space=vmem, size = 0x20000, scoped, tag = 'scratch operand']
  %s0 = inlined_call_operand.vmem [shape: bf16[2,1,18,18,128], index: 0, kind: input, shape index: {}]
  %s1 = inlined_call_operand.vmem [shape: bf16[9,128,128], index: 1, kind: input, shape index: {}]
  %s2 = inlined_call_operand.vmem [shape: f32[1,128], index: 2, kind: input, shape index: {}]
  %s3 = inlined_call_operand.vmem [shape: f32[1,128], index: 3, kind: input, shape index: {}]
  %s4 = inlined_call_operand.hbm [shape: f32[2,1,256,128], index: 4, kind: output, shape index: {}]
  %s5 = sld [smem:[#allocation0]]
  $region49: #{tpu_custom_call.1} parent=0
    _
  %s7 = ssub.s32 1, %s5
  %s8 = scalar_select 0, %s7, %s5
  $region1: #{tpu_custom_call.1} parent=0
    #allocation3 [shape = 'u8[262144]{0}', space=vmem, size = 0x40000, scoped, tag = 'output window, operand 0']
    #allocation4 [shape = 's32[2]{0}', space=sflag, size = 0x8, scoped, tag = 'scoped memory for tpu_custom_call.1']
    %9 = vsyncpa [#allocation4], 0
    %s10 = scalar_lea.sflag [#allocation4], 1
    %11 = vsyncpa %s10, 0
    loop: start=0, step=1, limit=4
    $region2: #{tpu_custom_call.1} parent=1 // loop_pre_header
      _
    $region3: #{tpu_custom_call.1} parent=1 // loop_header
      %s13 = sphi 0, %s17
      %p14 = scmp.ge.s32.totalorder %s13, 4
      %s20 = sphi 0, %s32
      %s21 = sphi 0, %s28
      %s22 = sphi 0, %s20
      %s23 = sphi 0, %s21
      %s24 = sphi 0, %s22
      %s25 = sphi 0, %s23
      %s37 = sphi 0, %s39
      %s40 = sphi 0, %s37
      %s41 = sphi 0, %s40
      %s57 = sphi 0, %s41
      %s61 = sphi 0, %s61
      %s63 = sphi 0, %s61
      %s64 = sphi 0, %s63
      %s78 = sphi 0, %s64
      %s82 = sphi 0, %s82
      %s84 = sphi 0, %s82
      %s85 = sphi 0, %s84
      %s99 = sphi 0, %s85
      %s103 = sphi 0, %s103
      %s105 = sphi 0, %s103
      %s106 = sphi 0, %s105
      %s120 = sphi 0, %s106
      %s128 = sphi 0, %s130
      %s131 = sphi 0, %s128
      %s132 = sphi 0, %s131
      %s148 = sphi 0, %s132
    $region4: #{tpu_custom_call.1} parent=1 // loop_header_branch
      %16 = sbr.rel (%p14) target = $region8
    $region5: #{tpu_custom_call.1} parent=1 // loop_body
      %s18 = ssub.s32 %s13, 1
      %s19 = ssub.s32 %s13, 2
      %s26 = sadd.s32 1, %s21
      %p27 = scmp.ge.s32.totalorder %s26, 1
      %s28 = scalar_select %p27, 0, %s26
      %s29 = sadd.s32 1, %s20
      %s30 = scalar_select %p27, %s29, %s20
      %p31 = scmp.ge.s32.totalorder %s30, 2
      %s32 = scalar_select %p31, 0, %s30
      %s33 = ssub.s32 %s20, %s32
      %s34 = ssub.s32 %s21, %s28
      %s35 = sor.u32 %s33, %s34
      %p36 = scmp.eq.s32.totalorder %s35, 0
      %s38 = sadd.s32 %s37, 1
      %s39 = scalar_select %p36, %s37, %s38
      %p42 = pneg %p36
      %p43 = scmp.eq.s32.totalorder %s13, 1
      %p44 = por %p42, %p43
      %p45 = scmp.ne.s32.totalorder %s37, %s40
      %p46 = scmp.eq.s32.totalorder %s13, 0
      %p47 = por %p45, %p46
      %p48 = scmp.ne.s32.totalorder %s37, %s40
      %p49 = scmp.eq.s32.totalorder %s18, 1
      %p50 = por %p48, %p49
      %p51 = scmp.ne.s32.totalorder %s40, %s41
      %p52 = scmp.eq.s32.totalorder %s18, 0
      %p53 = por %p51, %p52
      %p54 = scmp.ne.s32.totalorder %s40, %s41
      %p55 = scmp.eq.s32.totalorder %s19, 1
      %p56 = por %p54, %p55
      %p58 = scmp.ne.s32.totalorder %s41, %s57
      %p59 = scmp.eq.s32.totalorder %s19, 0
      %p60 = por %p58, %p59
      %s62 = sadd.s32 %s61, 1
      %p65 = scmp.eq.s32.totalorder %s13, 1
      %p66 = scmp.ne.s32.totalorder %s61, %s63
      %p67 = scmp.eq.s32.totalorder %s13, 0
      %p68 = por %p66, %p67
      %p69 = scmp.ne.s32.totalorder %s61, %s63
      %p70 = scmp.eq.s32.totalorder %s18, 1
      %p71 = por %p69, %p70
      %p72 = scmp.ne.s32.totalorder %s63, %s64
      %p73 = scmp.eq.s32.totalorder %s18, 0
      %p74 = por %p72, %p73
      %p75 = scmp.ne.s32.totalorder %s63, %s64
      %p76 = scmp.eq.s32.totalorder %s19, 1
      %p77 = por %p75, %p76
      %p79 = scmp.ne.s32.totalorder %s64, %s78
      %p80 = scmp.eq.s32.totalorder %s19, 0
      %p81 = por %p79, %p80
      %s83 = sadd.s32 %s82, 1
      %p86 = scmp.eq.s32.totalorder %s13, 1
      %p87 = scmp.ne.s32.totalorder %s82, %s84
      %p88 = scmp.eq.s32.totalorder %s13, 0
      %p89 = por %p87, %p88
      %p90 = scmp.ne.s32.totalorder %s82, %s84
      %p91 = scmp.eq.s32.totalorder %s18, 1
      %p92 = por %p90, %p91
      %p93 = scmp.ne.s32.totalorder %s84, %s85
      %p94 = scmp.eq.s32.totalorder %s18, 0
      %p95 = por %p93, %p94
      %p96 = scmp.ne.s32.totalorder %s84, %s85
      %p97 = scmp.eq.s32.totalorder %s19, 1
      %p98 = por %p96, %p97
      %p100 = scmp.ne.s32.totalorder %s85, %s99
      %p101 = scmp.eq.s32.totalorder %s19, 0
      %p102 = por %p100, %p101
      %s104 = sadd.s32 %s103, 1
      %p107 = scmp.eq.s32.totalorder %s13, 1
      %p108 = scmp.ne.s32.totalorder %s103, %s105
      %p109 = scmp.eq.s32.totalorder %s13, 0
      %p110 = por %p108, %p109
      %p111 = scmp.ne.s32.totalorder %s103, %s105
      %p112 = scmp.eq.s32.totalorder %s18, 1
      %p113 = por %p111, %p112
      %p114 = scmp.ne.s32.totalorder %s105, %s106
      %p115 = scmp.eq.s32.totalorder %s18, 0
      %p116 = por %p114, %p115
      %p117 = scmp.ne.s32.totalorder %s105, %s106
      %p118 = scmp.eq.s32.totalorder %s19, 1
      %p119 = por %p117, %p118
      %p121 = scmp.ne.s32.totalorder %s106, %s120
      %p122 = scmp.eq.s32.totalorder %s19, 0
      %p123 = por %p121, %p122
      %s124 = ssub.s32 %s20, %s32
      %s125 = ssub.s32 %s21, %s28
      %s126 = sor.u32 %s124, %s125
      %p127 = scmp.eq.s32.totalorder %s126, 0
      %s129 = sadd.s32 %s128, 1
      %s130 = scalar_select %p127, %s128, %s129
      %p133 = pneg %p127
      %p134 = scmp.eq.s32.totalorder %s13, 1
      %p135 = por %p133, %p134
      %p136 = scmp.ne.s32.totalorder %s128, %s131
      %p137 = scmp.eq.s32.totalorder %s13, 0
      %p138 = por %p136, %p137
      %p139 = scmp.ne.s32.totalorder %s128, %s131
      %p140 = scmp.eq.s32.totalorder %s18, 1
      %p141 = por %p139, %p140
      %p142 = scmp.ne.s32.totalorder %s131, %s132
      %p143 = scmp.eq.s32.totalorder %s18, 0
      %p144 = por %p142, %p143
      %p145 = scmp.ne.s32.totalorder %s131, %s132
      %p146 = scmp.eq.s32.totalorder %s19, 1
      %p147 = por %p145, %p146
      %p149 = scmp.ne.s32.totalorder %s132, %s148
      %p150 = scmp.eq.s32.totalorder %s19, 0
      %p151 = por %p149, %p150
      %p152 = scmp.le.s32.totalorder 1, %s13
      %p153 = scmp.lt.s32.totalorder %s13, 3
      %p154 = pnand %p152, %p153
      %p155 = pneg %p154
      // Predicated region
      $region9: #{tpu_custom_call.1} parent=5 // pred_check
        _
      $region10: #{tpu_custom_call.1} parent=5 // pred_check_branch
        %157 = sbr.rel (%p154) target = $region12
      $region11: #{tpu_custom_call.1} parent=5 // pred_region
        %s158 = ssub.s32 %s13, 1
        // Predicated region
        $region13: #{tpu_custom_call.1} parent=11 // pred_check
          %p159 = pneg %p74
        $region14: #{tpu_custom_call.1} parent=11 // pred_check_branch
          %161 = sbr.rel (%p159) target = $region16
        $region15: #{tpu_custom_call.1} parent=11 // pred_region
          _
        $region16: #{tpu_custom_call.1} parent=11 // pred_fallthru
          _
        // Predicated region
        $region17: #{tpu_custom_call.1} parent=11 // pred_check
          %p162 = pneg %p95
        $region18: #{tpu_custom_call.1} parent=11 // pred_check_branch
          %164 = sbr.rel (%p162) target = $region20
        $region19: #{tpu_custom_call.1} parent=11 // pred_region
          _
        $region20: #{tpu_custom_call.1} parent=11 // pred_fallthru
          _
        // Predicated region
        $region21: #{tpu_custom_call.1} parent=11 // pred_check
          %p165 = pneg %p116
        $region22: #{tpu_custom_call.1} parent=11 // pred_check_branch
          %167 = sbr.rel (%p165) target = $region24
        $region23: #{tpu_custom_call.1} parent=11 // pred_region
          _
        $region24: #{tpu_custom_call.1} parent=11 // pred_fallthru
          _
      $region12: #{tpu_custom_call.1} parent=5 // pred_fallthru
        _
      %p168 = scmp.lt.s32.totalorder %s13, 2
      // Predicated region
      $region25: #{tpu_custom_call.1} parent=5 // pred_check
        %p169 = pneg %p168
      $region26: #{tpu_custom_call.1} parent=5 // pred_check_branch
        %171 = sbr.rel (%p169) target = $region28
      $region27: #{tpu_custom_call.1} parent=5 // pred_region
        // Predicated region
        $region29: #{tpu_custom_call.1} parent=27 // pred_check
          %p172 = pneg %p47
        $region30: #{tpu_custom_call.1} parent=27 // pred_check_branch
          %174 = sbr.rel (%p172) target = $region32
        $region31: #{tpu_custom_call.1} parent=27 // pred_region
          %p175 = scmp.lt.s32.totalorder %s20, 1
          %s176 = scalar_select %p175, %s20, 1
          %p177 = scmp.lt.s32.totalorder %s21, 0
          %s178 = scalar_select %p177, %s21, 0
          %s179 = smul.addr %s178, 54
          %s180 = smul.addr %s176, 54
          %s181 = sadd.s32 %s179, %s180
          %s182 = smul.addr %s181, 4
          %s183 = scalar_lea.vmem %s0, %s182
        $region32: #{tpu_custom_call.1} parent=27 // pred_fallthru
          _
      $region28: #{tpu_custom_call.1} parent=5 // pred_fallthru
        _
      %p184 = scmp.le.s32.totalorder 1, %s13
      %p185 = scmp.lt.s32.totalorder %s13, 3
      %p186 = pnand %p184, %p185
      %p187 = pneg %p186
      // Predicated region
      $region33: #{tpu_custom_call.1} parent=5 // pred_check
        _
      $region34: #{tpu_custom_call.1} parent=5 // pred_check_branch
        %189 = sbr.rel (%p186) target = $region36
      $region35: #{tpu_custom_call.1} parent=5 // pred_region
        %s190 = ssub.s32 %s13, 1
        %p191 = scmp.lt.s32.totalorder %s22, 1
        %s192 = scalar_select %p191, %s22, 1
        %p193 = scmp.lt.s32.totalorder %s23, 0
        %s194 = scalar_select %p193, %s23, 0
        %s195 = smul.addr %s194, 54
        %s196 = smul.addr %s192, 54
        %s197 = sadd.s32 %s195, %s196
        %s198 = smul.addr %s197, 4
        %s199 = scalar_lea.vmem %s0, %s198
        %p200 = pneg %p53
        %p201 = pneg %p50
        %p202 = pneg %p74
        %p203 = pneg %p71
        %p204 = pneg %p95
        %p205 = pneg %p92
        %p206 = pneg %p116
        %p207 = pneg %p113
        %p208 = pneg %p144
        %p209 = pneg %p141
        %s210 = sand.u32 %s131, 1
        %s211 = scalar_lea.sflag [#allocation4], %s210
        %s212 = sand.u32 %s131, 1
        %s213 = smul.addr %s212, 256
        %s214 = scalar_lea.vmem [#allocation3], %s213
        %p215 = scmp.lt.s32.totalorder %s22, 1
        %s216 = scalar_select %p215, %s22, 1
        %p217 = scmp.lt.s32.totalorder %s23, 0
        %s218 = scalar_select %p217, %s23, 0
        %s219 = smul.addr %s218, 54
        %s220 = smul.addr %s216, 54
        %s221 = sadd.s32 %s219, %s220
        %s222 = smul.addr %s221, 4
        %s223 = scalar_lea.vmem %s0, %s222
        %v225 = vld [vmem:[%s223] sm:$0xf]
        %v226 = vld [vmem:[%s223 + $0x4] sm:$0xf]
        %v227 = vld [vmem:[%s223 + $0xc] sm:$0xf]
        %v228 = vld [vmem:[%s223 + $0x10] sm:$0xf]
        %v229 = vld [vmem:[%s223 + $0x18] sm:$0xf]
        %v230 = vld [vmem:[%s223 + $0x1c] sm:$0xf]
        %v231 = vld [vmem:[%s223 + $0x24] sm:$0xf]
        %v232 = vld [vmem:[%s223 + $0x28] sm:$0xf]
        %v233 = vld [vmem:[%s223 + $0x30] sm:$0xf]
        %v234 = vld [vmem:[%s223 + $0x34] sm:$0xf]
        %v235 = vld [vmem:[%s223 + $0x3c] sm:$0xf]
        %v236 = vld [vmem:[%s223 + $0x40] sm:$0xf]
        %v237 = vld [vmem:[%s223 + $0x48] sm:$0xf]
        %v238 = vld [vmem:[%s223 + $0x4c] sm:$0xf]
        %v239 = vld [vmem:[%s223 + $0x54] sm:$0xf]
        %v240 = vld [vmem:[%s223 + $0x58] sm:$0xf]
        %v241 = vld [vmem:[%s223 + $0x60] sm:$0xf]
        %v242 = vld [vmem:[%s223 + $0x64] sm:$0xf]
        %v243 = vld [vmem:[%s223 + $0x6c] sm:$0xf]
        %v244 = vld [vmem:[%s223 + $0x70] sm:$0xf]
        %v245 = vld [vmem:[%s223 + $0x78] sm:$0xf]
        %v246 = vld [vmem:[%s223 + $0x7c] sm:$0xf]
        %v247 = vld [vmem:[%s223 + $0x84] sm:$0xf]
        %v248 = vld [vmem:[%s223 + $0x88] sm:$0xf]
        %v249 = vld [vmem:[%s223 + $0x90] sm:$0xf]
        %v250 = vld [vmem:[%s223 + $0x94] sm:$0xf]
        %v251 = vld [vmem:[%s223 + $0x9c] sm:$0xf]
        %v252 = vld [vmem:[%s223 + $0xa0] sm:$0xf]
        %v253 = vld [vmem:[%s223 + $0xa8] sm:$0xf]
        %v254 = vld [vmem:[%s223 + $0xac] sm:$0xf]
        %v255 = vld [vmem:[%s223 + $0xb4] sm:$0xf]
        %v256 = vld [vmem:[%s223 + $0xb8] sm:$0xf]
        %v257 = vld [vmem:[%s1] sm:$0xf]
        %v258 = vld [vmem:[%s1 + $0x4] sm:$0xf]
        %v259 = vld [vmem:[%s1 + $0x8] sm:$0xf]
        %v260 = vld [vmem:[%s1 + $0xc] sm:$0xf]
        %v261 = vld [vmem:[%s1 + $0x10] sm:$0xf]
        %v262 = vld [vmem:[%s1 + $0x14] sm:$0xf]
        %v263 = vld [vmem:[%s1 + $0x18] sm:$0xf]
        %v264 = vld [vmem:[%s1 + $0x1c] sm:$0xf]
        %v265 = vld [vmem:[%s1 + $0x20] sm:$0xf]
        %v266 = vld [vmem:[%s1 + $0x24] sm:$0xf]
        %v267 = vld [vmem:[%s1 + $0x28] sm:$0xf]
        %v268 = vld [vmem:[%s1 + $0x2c] sm:$0xf]
        %v269 = vld [vmem:[%s1 + $0x30] sm:$0xf]
        %v270 = vld [vmem:[%s1 + $0x34] sm:$0xf]
        %v271 = vld [vmem:[%s1 + $0x38] sm:$0xf]
        %v272 = vld [vmem:[%s1 + $0x3c] sm:$0xf]
        %v305 = vunpack.c.l.b16 %v225
        %v306 = vunpack.c.l.b16 %v226
        %v307 = vunpack.c.l.b16 %v227
        %v308 = vunpack.c.l.b16 %v228
        %v309 = vunpack.c.l.b16 %v229
        %v310 = vunpack.c.l.b16 %v230
        %v311 = vunpack.c.l.b16 %v231
        %v312 = vunpack.c.l.b16 %v232
        %v313 = vunpack.c.l.b16 %v233
        %v314 = vunpack.c.l.b16 %v234
        %v315 = vunpack.c.l.b16 %v235
        %v316 = vunpack.c.l.b16 %v236
        %v317 = vunpack.c.l.b16 %v237
        %v318 = vunpack.c.l.b16 %v238
        %v319 = vunpack.c.l.b16 %v239
        %v320 = vunpack.c.l.b16 %v240
        %v321 = vunpack.c.l.b16 %v241
        %v322 = vunpack.c.l.b16 %v242
        %v323 = vunpack.c.l.b16 %v243
        %v324 = vunpack.c.l.b16 %v244
        %v325 = vunpack.c.l.b16 %v245
        %v326 = vunpack.c.l.b16 %v246
        %v327 = vunpack.c.l.b16 %v247
        %v328 = vunpack.c.l.b16 %v248
        %v329 = vunpack.c.l.b16 %v249
        %v330 = vunpack.c.l.b16 %v250
        %v331 = vunpack.c.l.b16 %v251
        %v332 = vunpack.c.l.b16 %v252
        %v333 = vunpack.c.l.b16 %v253
        %v334 = vunpack.c.l.b16 %v254
        %v335 = vunpack.c.l.b16 %v255
        %v336 = vunpack.c.l.b16 %v256
        %v337 = vpack.c.b16 %v306, %v305
        %v338 = vpack.c.b16 %v308, %v307
        %v339 = vpack.c.b16 %v310, %v309
        %v340 = vpack.c.b16 %v312, %v311
        %v341 = vpack.c.b16 %v314, %v313
        %v342 = vpack.c.b16 %v316, %v315
        %v343 = vpack.c.b16 %v318, %v317
        %v344 = vpack.c.b16 %v320, %v319
        %v345 = vpack.c.b16 %v322, %v321
        %v346 = vpack.c.b16 %v324, %v323
        %v347 = vpack.c.b16 %v326, %v325
        %v348 = vpack.c.b16 %v328, %v327
        %v349 = vpack.c.b16 %v330, %v329
        %v350 = vpack.c.b16 %v332, %v331
        %v351 = vpack.c.b16 %v334, %v333
        %v352 = vpack.c.b16 %v336, %v335
        %v385 = vunpack.c.l.b16 %v257
        %v386 = vunpack.c.l.b16 %v258
        %v387 = vunpack.c.l.b16 %v259
        %v388 = vunpack.c.l.b16 %v260
        %v389 = vunpack.c.l.b16 %v261
        %v390 = vunpack.c.l.b16 %v262
        %v391 = vunpack.c.l.b16 %v263
        %v392 = vunpack.c.l.b16 %v264
        %v393 = vunpack.c.l.b16 %v265
        %v394 = vunpack.c.l.b16 %v266
        %v395 = vunpack.c.l.b16 %v267
        %v396 = vunpack.c.l.b16 %v268
        %v397 = vunpack.c.l.b16 %v269
        %v398 = vunpack.c.l.b16 %v270
        %v399 = vunpack.c.l.b16 %v271
        %v400 = vunpack.c.l.b16 %v272
        %v401 = vpack.c.b16 %v386, %v385
        %v402 = vpack.c.b16 %v388, %v387
        %v403 = vpack.c.b16 %v390, %v389
        %v404 = vpack.c.b16 %v392, %v391
        %v405 = vpack.c.b16 %v394, %v393
        %v406 = vpack.c.b16 %v396, %v395
        %v407 = vpack.c.b16 %v398, %v397
        %v408 = vpack.c.b16 %v400, %v399
        %417 = vmatprep.subr.bf16.mxu0 0
        %418 = vmatpush1.bf16.msra.mxu0 %v401
        %419 = vmatprep.subr.bf16.mxu0 0
        %420 = vmatpush1.bf16.msra.mxu0 %v402
        %421 = vmatprep.subr.bf16.mxu0 0
        %422 = vmatpush1.bf16.msra.mxu0 %v403
        %423 = vmatprep.subr.bf16.mxu0 0
        %424 = vmatpush1.bf16.msra.mxu0 %v404
        %425 = vmatprep.subr.bf16.mxu0 0
        %426 = vmatpush1.bf16.msra.mxu0 %v405
        %427 = vmatprep.subr.bf16.mxu0 0
        %428 = vmatpush1.bf16.msra.mxu0 %v406
        %429 = vmatprep.subr.bf16.mxu0 0
        %430 = vmatpush1.bf16.msra.mxu0 %v407
        %431 = vmatprep.subr.bf16.mxu0 0
        %432 = vmatpush1.bf16.msra.mxu0 %v408
        %433 = vmatprep.subr.bf16.mxu0 0
        %434 = vmatpush1.bf16.msra.mxu0 0
        %435 = vmatprep.subr.bf16.mxu0 0
        %436 = vmatpush1.bf16.msra.mxu0 0
        %437 = vmatprep.subr.bf16.mxu0 0
        %438 = vmatpush1.bf16.msra.mxu0 0
        %439 = vmatprep.subr.bf16.mxu0 0
        %440 = vmatpush1.bf16.msra.mxu0 0
        %441 = vmatprep.subr.bf16.mxu0 0
        %442 = vmatpush1.bf16.msra.mxu0 0
        %443 = vmatprep.subr.bf16.mxu0 0
        %444 = vmatpush1.bf16.msra.mxu0 0
        %445 = vmatprep.subr.bf16.mxu0 0
        %446 = vmatpush1.bf16.msra.mxu0 0
        %447 = vmatprep.subr.bf16.mxu0 0
        %448 = vmatpush1.bf16.msra.mxu0 0
        %449 = vmatprep.mubr.bf16.mxu0 0
        %450 = vmatmul.mubr.bf16.gmra.mrb[0].mxu0 %v337
        %v451 = vpop.f32.mrb[0].mxu0
        %v452 = vadd.f32 0.0, %v451
        %v453 = vpop.f32.mrb[0].mxu0
        %v454 = vpop.f32.mrb[0].mxu0
        %v455 = vadd.f32 0.0, %v454
        %v456 = vpop.f32.mrb[0].mxu0
        %457 = vmatprep.mubr.bf16.mxu0 0
        %458 = vmatmul.mubr.bf16.gmra.mrb[0].mxu0 %v338
        %v459 = vpop.f32.mrb[0].mxu0
        %v460 = vadd.f32 0.0, %v459
        %v461 = vpop.f32.mrb[0].mxu0
        %v462 = vpop.f32.mrb[0].mxu0
        %v463 = vadd.f32 0.0, %v462
        %v464 = vpop.f32.mrb[0].mxu0
        %465 = vmatprep.mubr.bf16.mxu0 0
        %466 = vmatmul.mubr.bf16.gmra.mrb[0].mxu0 %v339
        %v467 = vpop.f32.mrb[0].mxu0
        %v468 = vadd.f32 0.0, %v467
        %v469 = vpop.f32.mrb[0].mxu0
        %v470 = vpop.f32.mrb[0].mxu0
        %v471 = vadd.f32 0.0, %v470
        %v472 = vpop.f32.mrb[0].mxu0
        %473 = vmatprep.mubr.bf16.mxu0 0
        %474 = vmatmul.mubr.bf16.gmra.mrb[0].mxu0 %v340
        %v475 = vpop.f32.mrb[0].mxu0
        %v476 = vadd.f32 0.0, %v475
        %v477 = vpop.f32.mrb[0].mxu0
        %v478 = vpop.f32.mrb[0].mxu0
        %v479 = vadd.f32 0.0, %v478
        %v480 = vpop.f32.mrb[0].mxu0
        %481 = vmatprep.mubr.bf16.mxu0 0
        %482 = vmatmul.mubr.bf16.gmra.mrb[0].mxu0 %v341
        %v483 = vpop.f32.mrb[0].mxu0
        %v484 = vadd.f32 0.0, %v483
        %v485 = vpop.f32.mrb[0].mxu0
        %v486 = vpop.f32.mrb[0].mxu0
        %v487 = vadd.f32 0.0, %v486
        %v488 = vpop.f32.mrb[0].mxu0
        %489 = vmatprep.mubr.bf16.mxu0 0
        %490 = vmatmul.mubr.bf16.gmra.mrb[0].mxu0 %v342
        %v491 = vpop.f32.mrb[0].mxu0
        %v492 = vadd.f32 0.0, %v491
        %v493 = vpop.f32.mrb[0].mxu0
        %v494 = vpop.f32.mrb[0].mxu0
        %v495 = vadd.f32 0.0, %v494
        %v496 = vpop.f32.mrb[0].mxu0
        %497 = vmatprep.mubr.bf16.mxu0 0
        %498 = vmatmul.mubr.bf16.gmra.mrb[0].mxu0 %v343
        %v499 = vpop.f32.mrb[0].mxu0
        %v500 = vadd.f32 0.0, %v499
        %v501 = vpop.f32.mrb[0].mxu0
        %v502 = vpop.f32.mrb[0].mxu0
        %v503 = vadd.f32 0.0, %v502
        %v504 = vpop.f32.mrb[0].mxu0
        %505 = vmatprep.mubr.bf16.mxu0 0
        %506 = vmatmul.mubr.bf16.gmra.mrb[0].mxu0 %v344
        %v507 = vpop.f32.mrb[0].mxu0
        %v508 = vadd.f32 0.0, %v507
        %v509 = vpop.f32.mrb[0].mxu0
        %v510 = vpop.f32.mrb[0].mxu0
        %v511 = vadd.f32 0.0, %v510
        %v512 = vpop.f32.mrb[0].mxu0
        %513 = vmatprep.mubr.bf16.mxu0 0
        %514 = vmatmul.mubr.bf16.gmra.mrb[0].mxu0 %v345
        %v515 = vpop.f32.mrb[0].mxu0
        %v516 = vadd.f32 0.0, %v515
        %v517 = vpop.f32.mrb[0].mxu0
        %v518 = vpop.f32.mrb[0].mxu0
        %v519 = vadd.f32 0.0, %v518
        %v520 = vpop.f32.mrb[0].mxu0
        %521 = vmatprep.mubr.bf16.mxu0 0
        %522 = vmatmul.mubr.bf16.gmra.mrb[0].mxu0 %v346
        %v523 = vpop.f32.mrb[0].mxu0
        %v524 = vadd.f32 0.0, %v523
        %v525 = vpop.f32.mrb[0].mxu0
        %v526 = vpop.f32.mrb[0].mxu0
        %v527 = vadd.f32 0.0, %v526
        %v528 = vpop.f32.mrb[0].mxu0
        %529 = vmatprep.mubr.bf16.mxu0 0
        %530 = vmatmul.mubr.bf16.gmra.mrb[0].mxu0 %v347
        %v531 = vpop.f32.mrb[0].mxu0
        %v532 = vadd.f32 0.0, %v531
        %v533 = vpop.f32.mrb[0].mxu0
        %v534 = vpop.f32.mrb[0].mxu0
        %v535 = vadd.f32 0.0, %v534
        %v536 = vpop.f32.mrb[0].mxu0
        %537 = vmatprep.mubr.bf16.mxu0 0
        %538 = vmatmul.mubr.bf16.gmra.mrb[0].mxu0 %v348
        %v539 = vpop.f32.mrb[0].mxu0
        %v540 = vadd.f32 0.0, %v539
        %v541 = vpop.f32.mrb[0].mxu0
        %v542 = vpop.f32.mrb[0].mxu0
        %v543 = vadd.f32 0.0, %v542
        %v544 = vpop.f32.mrb[0].mxu0
        %545 = vmatprep.mubr.bf16.mxu0 0
        %546 = vmatmul.mubr.bf16.gmra.mrb[0].mxu0 %v349
        %v547 = vpop.f32.mrb[0].mxu0
        %v548 = vadd.f32 0.0, %v547
        %v549 = vpop.f32.mrb[0].mxu0
        %v550 = vpop.f32.mrb[0].mxu0
        %v551 = vadd.f32 0.0, %v550
        %v552 = vpop.f32.mrb[0].mxu0
        %553 = vmatprep.mubr.bf16.mxu0 0
        %554 = vmatmul.mubr.bf16.gmra.mrb[0].mxu0 %v350
        %v555 = vpop.f32.mrb[0].mxu0
        %v556 = vadd.f32 0.0, %v555
        %v557 = vpop.f32.mrb[0].mxu0
        %v558 = vpop.f32.mrb[0].mxu0
        %v559 = vadd.f32 0.0, %v558
        %v560 = vpop.f32.mrb[0].mxu0
        %561 = vmatprep.mubr.bf16.mxu0 0
        %562 = vmatmul.mubr.bf16.gmra.mrb[0].mxu0 %v351
        %v563 = vpop.f32.mrb[0].mxu0
        %v564 = vadd.f32 0.0, %v563
        %v565 = vpop.f32.mrb[0].mxu0
        %v566 = vpop.f32.mrb[0].mxu0
        %v567 = vadd.f32 0.0, %v566
        %v568 = vpop.f32.mrb[0].mxu0
        %569 = vmatprep.mubr.bf16.mxu0 0
        %570 = vmatmul.mubr.bf16.gmra.mrb[0].mxu0 %v352
        %v571 = vpop.f32.mrb[0].mxu0
        %v572 = vadd.f32 0.0, %v571
        %v573 = vpop.f32.mrb[0].mxu0
        %v574 = vpop.f32.mrb[0].mxu0
        %v575 = vadd.f32 0.0, %v574
        %v576 = vpop.f32.mrb[0].mxu0
        %577 = vdwg.mxu0
        %578 = vst [vmem:[#allocation2] sm:$0xff] %v452
        %579 = vst [vmem:[#allocation2 + $0x8] sm:$0xff] %v455
        %580 = vst [vmem:[#allocation2 + $0x10] sm:$0xff] %v460
        %581 = vst [vmem:[#allocation2 + $0x18] sm:$0xff] %v463
        %582 = vst [vmem:[#allocation2 + $0x20] sm:$0xff] %v468
        %583 = vst [vmem:[#allocation2 + $0x28] sm:$0xff] %v471
        %584 = vst [vmem:[#allocation2 + $0x30] sm:$0xff] %v476
        %585 = vst [vmem:[#allocation2 + $0x38] sm:$0xff] %v479
        %586 = vst [vmem:[#allocation2 + $0x40] sm:$0xff] %v484
        %587 = vst [vmem:[#allocation2 + $0x48] sm:$0xff] %v487
        %588 = vst [vmem:[#allocation2 + $0x50] sm:$0xff] %v492
        %589 = vst [vmem:[#allocation2 + $0x58] sm:$0xff] %v495
        %590 = vst [vmem:[#allocation2 + $0x60] sm:$0xff] %v500
        %591 = vst [vmem:[#allocation2 + $0x68] sm:$0xff] %v503
        %592 = vst [vmem:[#allocation2 + $0x70] sm:$0xff] %v508
        %593 = vst [vmem:[#allocation2 + $0x78] sm:$0xff] %v511
        %594 = vst [vmem:[#allocation2 + $0x80] sm:$0xff] %v516
        %595 = vst [vmem:[#allocation2 + $0x88] sm:$0xff] %v519
        %596 = vst [vmem:[#allocation2 + $0x90] sm:$0xff] %v524
        %597 = vst [vmem:[#allocation2 + $0x98] sm:$0xff] %v527
        %598 = vst [vmem:[#allocation2 + $0xa0] sm:$0xff] %v532
        %599 = vst [vmem:[#allocation2 + $0xa8] sm:$0xff] %v535
        %600 = vst [vmem:[#allocation2 + $0xb0] sm:$0xff] %v540
        %601 = vst [vmem:[#allocation2 + $0xb8] sm:$0xff] %v543
        %602 = vst [vmem:[#allocation2 + $0xc0] sm:$0xff] %v548
        %603 = vst [vmem:[#allocation2 + $0xc8] sm:$0xff] %v551
        %604 = vst [vmem:[#allocation2 + $0xd0] sm:$0xff] %v556
        %605 = vst [vmem:[#allocation2 + $0xd8] sm:$0xff] %v559
        %606 = vst [vmem:[#allocation2 + $0xe0] sm:$0xff] %v564
        %607 = vst [vmem:[#allocation2 + $0xe8] sm:$0xff] %v567
        %608 = vst [vmem:[#allocation2 + $0xf0] sm:$0xff] %v572
        %609 = vst [vmem:[#allocation2 + $0xf8] sm:$0xff] %v575
        %v610 = vld [vmem:[%s223] sm:$0xf]
        %v611 = vld [vmem:[%s223 + $0x4] sm:$0xf]
        %v612 = vld [vmem:[%s223 + $0x8] sm:$0x1]
        %v613 = vld [vmem:[%s223 + $0xc] sm:$0xf]
        %v614 = vld [vmem:[%s223 + $0x10] sm:$0xf]
        %v615 = vld [vmem:[%s223 + $0x14] sm:$0x1]
        %v616 = vld [vmem:[%s223 + $0x18] sm:$0xf]
        %v617 = vld [vmem:[%s223 + $0x1c] sm:$0xf]
        %v618 = vld [vmem:[%s223 + $0x20] sm:$0x1]
        %v619 = vld [vmem:[%s223 + $0x24] sm:$0xf]
        %v620 = vld [vmem:[%s223 + $0x28] sm:$0xf]
        %v621 = vld [vmem:[%s223 + $0x2c] sm:$0x1]
        %v622 = vld [vmem:[%s223 + $0x30] sm:$0xf]
        %v623 = vld [vmem:[%s223 + $0x34] sm:$0xf]
        %v624 = vld [vmem:[%s223 + $0x38] sm:$0x1]
        %v625 = vld [vmem:[%s223 + $0x3c] sm:$0xf]
        %v626 = vld [vmem:[%s223 + $0x40] sm:$0xf]
        %v627 = vld [vmem:[%s223 + $0x44] sm:$0x1]
        %v628 = vld [vmem:[%s223 + $0x48] sm:$0xf]
        %v629 = vld [vmem:[%s223 + $0x4c] sm:$0xf]
        %v630 = vld [vmem:[%s223 + $0x50] sm:$0x1]
        %v631 = vld [vmem:[%s223 + $0x54] sm:$0xf]
        %v632 = vld [vmem:[%s223 + $0x58] sm:$0xf]
        %v633 = vld [vmem:[%s223 + $0x5c] sm:$0x1]
        %v634 = vld [vmem:[%s223 + $0x60] sm:$0xf]
        %v635 = vld [vmem:[%s223 + $0x64] sm:$0xf]
        %v636 = vld [vmem:[%s223 + $0x68] sm:$0x1]
        %v637 = vld [vmem:[%s223 + $0x6c] sm:$0xf]
        %v638 = vld [vmem:[%s223 + $0x70] sm:$0xf]
        %v639 = vld [vmem:[%s223 + $0x74] sm:$0x1]
        %v640 = vld [vmem:[%s223 + $0x78] sm:$0xf]
        %v641 = vld [vmem:[%s223 + $0x7c] sm:$0xf]
        %v642 = vld [vmem:[%s223 + $0x80] sm:$0x1]
        %v643 = vld [vmem:[%s223 + $0x84] sm:$0xf]
        %v644 = vld [vmem:[%s223 + $0x88] sm:$0xf]
        %v645 = vld [vmem:[%s223 + $0x8c] sm:$0x1]
        %v646 = vld [vmem:[%s223 + $0x90] sm:$0xf]
        %v647 = vld [vmem:[%s223 + $0x94] sm:$0xf]
        %v648 = vld [vmem:[%s223 + $0x98] sm:$0x1]
        %v649 = vld [vmem:[%s223 + $0x9c] sm:$0xf]
        %v650 = vld [vmem:[%s223 + $0xa0] sm:$0xf]
        %v651 = vld [vmem:[%s223 + $0xa4] sm:$0x1]
        %v652 = vld [vmem:[%s223 + $0xa8] sm:$0xf]
        %v653 = vld [vmem:[%s223 + $0xac] sm:$0xf]
        %v654 = vld [vmem:[%s223 + $0xb0] sm:$0x1]
        %v655 = vld [vmem:[%s223 + $0xb4] sm:$0xf]
        %v656 = vld [vmem:[%s223 + $0xb8] sm:$0xf]
        %v657 = vld [vmem:[%s223 + $0xbc] sm:$0x1]
        %vm658 = vsmask.f32 3328
        %vm659 = vsmask.f32 7440
        %vm660 = vmor %vm658, %vm659
        %v662 = vshrl.u32 %v610, 16
        %v664 = vrot.slane %v662, 4
        %v665 = vshll.u32 %v610, 16
        %v667 = vrot.slane %v665, 5
        %v668 = vor.u32 %v664, %v667
        %v669 = vrot.slane %v668, 4
        %v671 = vshll.u32 %v611, 16
        %v673 = vrot.slane %v671, 5
        %v674 = vsel %vm660, %v669, %v673
        %v675 = vshrl.u32 %v611, 16
        %v677 = vrot.slane %v675, 4
        %v678 = vor.u32 %v677, %v673
        %v679 = vrot.slane %v678, 4
        %v681 = vshll.u32 %v612, 16
        %v683 = vrot.slane %v681, 5
        %v684 = vsel %vm660, %v679, %v683
        %v686 = vshrl.u32 %v613, 16
        %v688 = vrot.slane %v686, 4
        %v689 = vshll.u32 %v613, 16
        %v691 = vrot.slane %v689, 5
        %v692 = vor.u32 %v688, %v691
        %v693 = vrot.slane %v692, 4
        %v695 = vshll.u32 %v614, 16
        %v697 = vrot.slane %v695, 5
        %v698 = vsel %vm660, %v693, %v697
        %v699 = vshrl.u32 %v614, 16
        %v701 = vrot.slane %v699, 4
        %v702 = vor.u32 %v701, %v697
        %v703 = vrot.slane %v702, 4
        %v705 = vshll.u32 %v615, 16
        %v707 = vrot.slane %v705, 5
        %v708 = vsel %vm660, %v703, %v707
        %v710 = vshrl.u32 %v616, 16
        %v712 = vrot.slane %v710, 4
        %v713 = vshll.u32 %v616, 16
        %v715 = vrot.slane %v713, 5
        %v716 = vor.u32 %v712, %v715
        %v717 = vrot.slane %v716, 4
        %v719 = vshll.u32 %v617, 16
        %v721 = vrot.slane %v719, 5
        %v722 = vsel %vm660, %v717, %v721
        %v723 = vshrl.u32 %v617, 16
        %v725 = vrot.slane %v723, 4
        %v726 = vor.u32 %v725, %v721
        %v727 = vrot.slane %v726, 4
        %v729 = vshll.u32 %v618, 16
        %v731 = vrot.slane %v729, 5
        %v732 = vsel %vm660, %v727, %v731
        %v734 = vshrl.u32 %v619, 16
        %v736 = vrot.slane %v734, 4
        %v737 = vshll.u32 %v619, 16
        %v739 = vrot.slane %v737, 5
        %v740 = vor.u32 %v736, %v739
        %v741 = vrot.slane %v740, 4
        %v743 = vshll.u32 %v620, 16
        %v745 = vrot.slane %v743, 5
        %v746 = vsel %vm660, %v741, %v745
        %v747 = vshrl.u32 %v620, 16
        %v749 = vrot.slane %v747, 4
        %v750 = vor.u32 %v749, %v745
        %v751 = vrot.slane %v750, 4
        %v753 = vshll.u32 %v621, 16
        %v755 = vrot.slane %v753, 5
        %v756 = vsel %vm660, %v751, %v755
        %v758 = vshrl.u32 %v622, 16
        %v760 = vrot.slane %v758, 4
        %v761 = vshll.u32 %v622, 16
        %v763 = vrot.slane %v761, 5
        %v764 = vor.u32 %v760, %v763
        %v765 = vrot.slane %v764, 4
        %v767 = vshll.u32 %v623, 16
        %v769 = vrot.slane %v767, 5
        %v770 = vsel %vm660, %v765, %v769
        %v771 = vshrl.u32 %v623, 16
        %v773 = vrot.slane %v771, 4
        %v774 = vor.u32 %v773, %v769
        %v775 = vrot.slane %v774, 4
        %v777 = vshll.u32 %v624, 16
        %v779 = vrot.slane %v777, 5
        %v780 = vsel %vm660, %v775, %v779
        %v782 = vshrl.u32 %v625, 16
        %v784 = vrot.slane %v782, 4
        %v785 = vshll.u32 %v625, 16
        %v787 = vrot.slane %v785, 5
        %v788 = vor.u32 %v784, %v787
        %v789 = vrot.slane %v788, 4
        %v791 = vshll.u32 %v626, 16
        %v793 = vrot.slane %v791, 5
        %v794 = vsel %vm660, %v789, %v793
        %v795 = vshrl.u32 %v626, 16
        %v797 = vrot.slane %v795, 4
        %v798 = vor.u32 %v797, %v793
        %v799 = vrot.slane %v798, 4
        %v801 = vshll.u32 %v627, 16
        %v803 = vrot.slane %v801, 5
        %v804 = vsel %vm660, %v799, %v803
        %v806 = vshrl.u32 %v628, 16
        %v808 = vrot.slane %v806, 4
        %v809 = vshll.u32 %v628, 16
        %v811 = vrot.slane %v809, 5
        %v812 = vor.u32 %v808, %v811
        %v813 = vrot.slane %v812, 4
        %v815 = vshll.u32 %v629, 16
        %v817 = vrot.slane %v815, 5
        %v818 = vsel %vm660, %v813, %v817
        %v819 = vshrl.u32 %v629, 16
        %v821 = vrot.slane %v819, 4
        %v822 = vor.u32 %v821, %v817
        %v823 = vrot.slane %v822, 4
        %v825 = vshll.u32 %v630, 16
        %v827 = vrot.slane %v825, 5
        %v828 = vsel %vm660, %v823, %v827
        %v830 = vshrl.u32 %v631, 16
        %v832 = vrot.slane %v830, 4
        %v833 = vshll.u32 %v631, 16
        %v835 = vrot.slane %v833, 5
        %v836 = vor.u32 %v832, %v835
        %v837 = vrot.slane %v836, 4
        %v839 = vshll.u32 %v632, 16
        %v841 = vrot.slane %v839, 5
        %v842 = vsel %vm660, %v837, %v841
        %v843 = vshrl.u32 %v632, 16
        %v845 = vrot.slane %v843, 4
        %v846 = vor.u32 %v845, %v841
        %v847 = vrot.slane %v846, 4
        %v849 = vshll.u32 %v633, 16
        %v851 = vrot.slane %v849, 5
        %v852 = vsel %vm660, %v847, %v851
        %v854 = vshrl.u32 %v634, 16
        %v856 = vrot.slane %v854, 4
        %v857 = vshll.u32 %v634, 16
        %v859 = vrot.slane %v857, 5
        %v860 = vor.u32 %v856, %v859
        %v861 = vrot.slane %v860, 4
        %v863 = vshll.u32 %v635, 16
        %v865 = vrot.slane %v863, 5
        %v866 = vsel %vm660, %v861, %v865
        %v867 = vshrl.u32 %v635, 16
        %v869 = vrot.slane %v867, 4
        %v870 = vor.u32 %v869, %v865
        %v871 = vrot.slane %v870, 4
        %v873 = vshll.u32 %v636, 16
        %v875 = vrot.slane %v873, 5
        %v876 = vsel %vm660, %v871, %v875
        %v878 = vshrl.u32 %v637, 16
        %v880 = vrot.slane %v878, 4
        %v881 = vshll.u32 %v637, 16
        %v883 = vrot.slane %v881, 5
        %v884 = vor.u32 %v880, %v883
        %v885 = vrot.slane %v884, 4
        %v887 = vshll.u32 %v638, 16
        %v889 = vrot.slane %v887, 5
        %v890 = vsel %vm660, %v885, %v889
        %v891 = vshrl.u32 %v638, 16
        %v893 = vrot.slane %v891, 4
        %v894 = vor.u32 %v893, %v889
        %v895 = vrot.slane %v894, 4
        %v897 = vshll.u32 %v639, 16
        %v899 = vrot.slane %v897, 5
        %v900 = vsel %vm660, %v895, %v899
        %v902 = vshrl.u32 %v640, 16
        %v904 = vrot.slane %v902, 4
        %v905 = vshll.u32 %v640, 16
        %v907 = vrot.slane %v905, 5
        %v908 = vor.u32 %v904, %v907
        %v909 = vrot.slane %v908, 4
        %v911 = vshll.u32 %v641, 16
        %v913 = vrot.slane %v911, 5
        %v914 = vsel %vm660, %v909, %v913
        %v915 = vshrl.u32 %v641, 16
        %v917 = vrot.slane %v915, 4
        %v918 = vor.u32 %v917, %v913
        %v919 = vrot.slane %v918, 4
        %v921 = vshll.u32 %v642, 16
        %v923 = vrot.slane %v921, 5
        %v924 = vsel %vm660, %v919, %v923
        %v926 = vshrl.u32 %v643, 16
        %v928 = vrot.slane %v926, 4
        %v929 = vshll.u32 %v643, 16
        %v931 = vrot.slane %v929, 5
        %v932 = vor.u32 %v928, %v931
        %v933 = vrot.slane %v932, 4
        %v935 = vshll.u32 %v644, 16
        %v937 = vrot.slane %v935, 5
        %v938 = vsel %vm660, %v933, %v937
        %v939 = vshrl.u32 %v644, 16
        %v941 = vrot.slane %v939, 4
        %v942 = vor.u32 %v941, %v937
        %v943 = vrot.slane %v942, 4
        %v945 = vshll.u32 %v645, 16
        %v947 = vrot.slane %v945, 5
        %v948 = vsel %vm660, %v943, %v947
        %v950 = vshrl.u32 %v646, 16
        %v952 = vrot.slane %v950, 4
        %v953 = vshll.u32 %v646, 16
        %v955 = vrot.slane %v953, 5
        %v956 = vor.u32 %v952, %v955
        %v957 = vrot.slane %v956, 4
        %v959 = vshll.u32 %v647, 16
        %v961 = vrot.slane %v959, 5
        %v962 = vsel %vm660, %v957, %v961
        %v963 = vshrl.u32 %v647, 16
        %v965 = vrot.slane %v963, 4
        %v966 = vor.u32 %v965, %v961
        %v967 = vrot.slane %v966, 4
        %v969 = vshll.u32 %v648, 16
        %v971 = vrot.slane %v969, 5
        %v972 = vsel %vm660, %v967, %v971
        %v974 = vshrl.u32 %v649, 16
        %v976 = vrot.slane %v974, 4
        %v977 = vshll.u32 %v649, 16
        %v979 = vrot.slane %v977, 5
        %v980 = vor.u32 %v976, %v979
        %v981 = vrot.slane %v980, 4
        %v983 = vshll.u32 %v650, 16
        %v985 = vrot.slane %v983, 5
        %v986 = vsel %vm660, %v981, %v985
        %v987 = vshrl.u32 %v650, 16
        %v989 = vrot.slane %v987, 4
        %v990 = vor.u32 %v989, %v985
        %v991 = vrot.slane %v990, 4
        %v993 = vshll.u32 %v651, 16
        %v995 = vrot.slane %v993, 5
        %v996 = vsel %vm660, %v991, %v995
        %v998 = vshrl.u32 %v652, 16
        %v1000 = vrot.slane %v998, 4
        %v1001 = vshll.u32 %v652, 16
        %v1003 = vrot.slane %v1001, 5
        %v1004 = vor.u32 %v1000, %v1003
        %v1005 = vrot.slane %v1004, 4
        %v1007 = vshll.u32 %v653, 16
        %v1009 = vrot.slane %v1007, 5
        %v1010 = vsel %vm660, %v1005, %v1009
        %v1011 = vshrl.u32 %v653, 16
        %v1013 = vrot.slane %v1011, 4
        %v1014 = vor.u32 %v1013, %v1009
        %v1015 = vrot.slane %v1014, 4
        %v1017 = vshll.u32 %v654, 16
        %v1019 = vrot.slane %v1017, 5
        %v1020 = vsel %vm660, %v1015, %v1019
        %v1022 = vshrl.u32 %v655, 16
        %v1024 = vrot.slane %v1022, 4
        %v1025 = vshll.u32 %v655, 16
        %v1027 = vrot.slane %v1025, 5
        %v1028 = vor.u32 %v1024, %v1027
        %v1029 = vrot.slane %v1028, 4
        %v1031 = vshll.u32 %v656, 16
        %v1033 = vrot.slane %v1031, 5
        %v1034 = vsel %vm660, %v1029, %v1033
        %v1035 = vshrl.u32 %v656, 16
        %v1037 = vrot.slane %v1035, 4
        %v1038 = vor.u32 %v1037, %v1033
        %v1039 = vrot.slane %v1038, 4
        %v1041 = vshll.u32 %v657, 16
        %v1043 = vrot.slane %v1041, 5
        %v1044 = vsel %vm660, %v1039, %v1043
        %s1045 = scalar_lea.vmem %s1, 64
        %v1046 = vld [vmem:[%s1045] sm:$0xf]
        %v1047 = vld [vmem:[%s1045 + $0x4] sm:$0xf]
        %v1048 = vld [vmem:[%s1045 + $0x8] sm:$0xf]
        %v1049 = vld [vmem:[%s1045 + $0xc] sm:$0xf]
        %v1050 = vld [vmem:[%s1045 + $0x10] sm:$0xf]
        %v1051 = vld [vmem:[%s1045 + $0x14] sm:$0xf]
        %v1052 = vld [vmem:[%s1045 + $0x18] sm:$0xf]
        %v1053 = vld [vmem:[%s1045 + $0x1c] sm:$0xf]
        %v1054 = vld [vmem:[%s1045 + $0x20] sm:$0xf]
        %v1055 = vld [vmem:[%s1045 + $0x24] sm:$0xf]
        %v1056 = vld [vmem:[%s1045 + $0x28] sm:$0xf]
        %v1057 = vld [vmem:[%s1045 + $0x2c] sm:$0xf]
        %v1058 = vld [vmem:[%s1045 + $0x30] sm:$0xf]
        %v1059 = vld [vmem:[%s1045 + $0x34] sm:$0xf]
        %v1060 = vld [vmem:[%s1045 + $0x38] sm:$0xf]
        %v1061 = vld [vmem:[%s1045 + $0x3c] sm:$0xf]
        %v1062 = vunpack.c.l.b16 %v674
        %v1063 = vunpack.c.l.b16 %v684
        %v1064 = vunpack.c.l.b16 %v698
        %v1065 = vunpack.c.l.b16 %v708
        %v1066 = vunpack.c.l.b16 %v722
        %v1067 = vunpack.c.l.b16 %v732
        %v1068 = vunpack.c.l.b16 %v746
        %v1069 = vunpack.c.l.b16 %v756
        %v1070 = vunpack.c.l.b16 %v770
        %v1071 = vunpack.c.l.b16 %v780
        %v1072 = vunpack.c.l.b16 %v794
        %v1073 = vunpack.c.l.b16 %v804
        %v1074 = vunpack.c.l.b16 %v818
        %v1075 = vunpack.c.l.b16 %v828
        %v1076 = vunpack.c.l.b16 %v842
        %v1077 = vunpack.c.l.b16 %v852
        %v1078 = vunpack.c.l.b16 %v866
        %v1079 = vunpack.c.l.b16 %v876
        %v1080 = vunpack.c.l.b16 %v890
        %v1081 = vunpack.c.l.b16 %v900
        %v1082 = vunpack.c.l.b16 %v914
        %v1083 = vunpack.c.l.b16 %v924
        %v1084 = vunpack.c.l.b16 %v938
        %v1085 = vunpack.c.l.b16 %v948
        %v1086 = vunpack.c.l.b16 %v962
        %v1087 = vunpack.c.l.b16 %v972
        %v1088 = vunpack.c.l.b16 %v986
        %v1089 = vunpack.c.l.b16 %v996
        %v1090 = vunpack.c.l.b16 %v1010
        %v1091 = vunpack.c.l.b16 %v1020
        %v1092 = vunpack.c.l.b16 %v1034
        %v1093 = vunpack.c.l.b16 %v1044
        %v1094 = vpack.c.b16 %v1063, %v1062
        %v1095 = vpack.c.b16 %v1065, %v1064
        %v1096 = vpack.c.b16 %v1067, %v1066
        %v1097 = vpack.c.b16 %v1069, %v1068
        %v1098 = vpack.c.b16 %v1071, %v1070
        %v1099 = vpack.c.b16 %v1073, %v1072
        %v1100 = vpack.c.b16 %v1075, %v1074
        %v1101 = vpack.c.b16 %v1077, %v1076
        %v1102 = vpack.c.b16 %v1079, %v1078
        %v1103 = vpack.c.b16 %v1081, %v1080
        %v1104 = vpack.c.b16 %v1083, %v1082
        %v1105 = vpack.c.b16 %v1085, %v1084
        %v1106 = vpack.c.b16 %v1087, %v1086
        %v1107 = vpack.c.b16 %v1089, %v1088
        %v1108 = vpack.c.b16 %v1091, %v1090
        %v1109 = vpack.c.b16 %v1093, %v1092
        %v1142 = vunpack.c.l.b16 %v1046
        %v1143 = vunpack.c.l.b16 %v1047
        %v1144 = vunpack.c.l.b16 %v1048
        %v1145 = vunpack.c.l.b16 %v1049
        %v1146 = vunpack.c.l.b16 %v1050
        %v1147 = vunpack.c.l.b16 %v1051
        %v1148 = vunpack.c.l.b16 %v1052
        %v1149 = vunpack.c.l.b16 %v1053
        %v1150 = vunpack.c.l.b16 %v1054
        %v1151 = vunpack.c.l.b16 %v1055
        %v1152 = vunpack.c.l.b16 %v1056
        %v1153 = vunpack.c.l.b16 %v1057
        %v1154 = vunpack.c.l.b16 %v1058
        %v1155 = vunpack.c.l.b16 %v1059
        %v1156 = vunpack.c.l.b16 %v1060
        %v1157 = vunpack.c.l.b16 %v1061
        %v1158 = vpack.c.b16 %v1143, %v1142
        %v1159 = vpack.c.b16 %v1145, %v1144
        %v1160 = vpack.c.b16 %v1147, %v1146
        %v1161 = vpack.c.b16 %v1149, %v1148
        %v1162 = vpack.c.b16 %v1151, %v1150
        %v1163 = vpack.c.b16 %v1153, %v1152
        %v1164 = vpack.c.b16 %v1155, %v1154
        %v1165 = vpack.c.b16 %v1157, %v1156
        %1174 = vmatprep.subr.bf16.mxu0 0
        %1175 = vmatpush1.bf16.msra.mxu0 %v1158
        %1176 = vmatprep.subr.bf16.mxu0 0
        %1177 = vmatpush1.bf16.msra.mxu0 %v1159
        %1178 = vmatprep.subr.bf16.mxu0 0
        %1179 = vmatpush1.bf16.msra.mxu0 %v1160
        %1180 = vmatprep.subr.bf16.mxu0 0
        %1181 = vmatpush1.bf16.msra.mxu0 %v1161
        %1182 = vmatprep.subr.bf16.mxu0 0
        %1183 = vmatpush1.bf16.msra.mxu0 %v1162
        %1184 = vmatprep.subr.bf16.mxu0 0
        %1185 = vmatpush1.bf16.msra.mxu0 %v1163
        %1186 = vmatprep.subr.bf16.mxu0 0
        %1187 = vmatpush1.bf16.msra.mxu0 %v1164
        %1188 = vmatprep.subr.bf16.mxu0 0
        %1189 = vmatpush1.bf16.msra.mxu0 %v1165
        %1190 = vmatprep.subr.bf16.mxu0 0
        %1191 = vmatpush1.bf16.msra.mxu0 0
        %1192 = vmatprep.subr.bf16.mxu0 0
        %1193 = vmatpush1.bf16.msra.mxu0 0
        %1194 = vmatprep.subr.bf16.mxu0 0
        %1195 = vmatpush1.bf16.msra.mxu0 0
        %1196 = vmatprep.subr.bf16.mxu0 0
        %1197 = vmatpush1.bf16.msra.mxu0 0
        %1198 = vmatprep.subr.bf16.mxu0 0
        %1199 = vmatpush1.bf16.msra.mxu0 0
        %1200 = vmatprep.subr.bf16.mxu0 0
        %1201 = vmatpush1.bf16.msra.mxu0 0
        %1202 = vmatprep.subr.bf16.mxu0 0
        %1203 = vmatpush1.bf16.msra.mxu0 0
        %1204 = vmatprep.subr.bf16.mxu0 0
        %1205 = vmatpush1.bf16.msra.mxu0 0
        %1206 = vmatprep.mubr.bf16.mxu0 0
        %1207 = vmatmul.mubr.bf16.gmra.mrb[0].mxu0 %v1094
        %v1208 = vpop.f32.mrb[0].mxu0
        %v1209 = vadd.f32 0.0, %v1208
        %v1210 = vpop.f32.mrb[0].mxu0
        %v1211 = vpop.f32.mrb[0].mxu0
        %v1212 = vadd.f32 0.0, %v1211
        %v1213 = vpop.f32.mrb[0].mxu0
        %1214 = vmatprep.mubr.bf16.mxu0 0
        %1215 = vmatmul.mubr.bf16.gmra.mrb[0].mxu0 %v1095
        %v1216 = vpop.f32.mrb[0].mxu0
        %v1217 = vadd.f32 0.0, %v1216
        %v1218 = vpop.f32.mrb[0].mxu0
        %v1219 = vpop.f32.mrb[0].mxu0
        %v1220 = vadd.f32 0.0, %v1219
        %v1221 = vpop.f32.mrb[0].mxu0
        %1222 = vmatprep.mubr.bf16.mxu0 0
        %1223 = vmatmul.mubr.bf16.gmra.mrb[0].mxu0 %v1096
        %v1224 = vpop.f32.mrb[0].mxu0
        %v1225 = vadd.f32 0.0, %v1224
        %v1226 = vpop.f32.mrb[0].mxu0
        %v1227 = vpop.f32.mrb[0].mxu0
        %v1228 = vadd.f32 0.0, %v1227
        %v1229 = vpop.f32.mrb[0].mxu0
        %1230 = vmatprep.mubr.bf16.mxu0 0
        %1231 = vmatmul.mubr.bf16.gmra.mrb[0].mxu0 %v1097
        %v1232 = vpop.f32.mrb[0].mxu0
        %v1233 = vadd.f32 0.0, %v1232
        %v1234 = vpop.f32.mrb[0].mxu0
        %v1235 = vpop.f32.mrb[0].mxu0
        %v1236 = vadd.f32 0.0, %v1235
        %v1237 = vpop.f32.mrb[0].mxu0
        %1238 = vmatprep.mubr.bf16.mxu0 0
        %1239 = vmatmul.mubr.bf16.gmra.mrb[0].mxu0 %v1098
        %v1240 = vpop.f32.mrb[0].mxu0
        %v1241 = vadd.f32 0.0, %v1240
        %v1242 = vpop.f32.mrb[0].mxu0
        %v1243 = vpop.f32.mrb[0].mxu0
        %v1244 = vadd.f32 0.0, %v1243
        %v1245 = vpop.f32.mrb[0].mxu0
        %1246 = vmatprep.mubr.bf16.mxu0 0
        %1247 = vmatmul.mubr.bf16.gmra.mrb[0].mxu0 %v1099
        %v1248 = vpop.f32.mrb[0].mxu0
        %v1249 = vadd.f32 0.0, %v1248
        %v1250 = vpop.f32.mrb[0].mxu0
        %v1251 = vpop.f32.mrb[0].mxu0
        %v1252 = vadd.f32 0.0, %v1251
        %v1253 = vpop.f32.mrb[0].mxu0
        %1254 = vmatprep.mubr.bf16.mxu0 0
        %1255 = vmatmul.mubr.bf16.gmra.mrb[0].mxu0 %v1100
        %v1256 = vpop.f32.mrb[0].mxu0
        %v1257 = vadd.f32 0.0, %v1256
        %v1258 = vpop.f32.mrb[0].mxu0
        %v1259 = vpop.f32.mrb[0].mxu0
        %v1260 = vadd.f32 0.0, %v1259
        %v1261 = vpop.f32.mrb[0].mxu0
        %1262 = vmatprep.mubr.bf16.mxu0 0
        %1263 = vmatmul.mubr.bf16.gmra.mrb[0].mxu0 %v1101
        %v1264 = vpop.f32.mrb[0].mxu0
        %v1265 = vadd.f32 0.0, %v1264
        %v1266 = vpop.f32.mrb[0].mxu0
        %v1267 = vpop.f32.mrb[0].mxu0
        %v1268 = vadd.f32 0.0, %v1267
        %v1269 = vpop.f32.mrb[0].mxu0
        %1270 = vmatprep.mubr.bf16.mxu0 0
        %1271 = vmatmul.mubr.bf16.gmra.mrb[0].mxu0 %v1102
        %v1272 = vpop.f32.mrb[0].mxu0
        %v1273 = vadd.f32 0.0, %v1272
        %v1274 = vpop.f32.mrb[0].mxu0
        %v1275 = vpop.f32.mrb[0].mxu0
        %v1276 = vadd.f32 0.0, %v1275
        %v1277 = vpop.f32.mrb[0].mxu0
        %1278 = vmatprep.mubr.bf16.mxu0 0
        %1279 = vmatmul.mubr.bf16.gmra.mrb[0].mxu0 %v1103
        %v1280 = vpop.f32.mrb[0].mxu0
        %v1281 = vadd.f32 0.0, %v1280
        %v1282 = vpop.f32.mrb[0].mxu0
        %v1283 = vpop.f32.mrb[0].mxu0
        %v1284 = vadd.f32 0.0, %v1283
        %v1285 = vpop.f32.mrb[0].mxu0
        %1286 = vmatprep.mubr.bf16.mxu0 0
        %1287 = vmatmul.mubr.bf16.gmra.mrb[0].mxu0 %v1104
        %v1288 = vpop.f32.mrb[0].mxu0
        %v1289 = vadd.f32 0.0, %v1288
        %v1290 = vpop.f32.mrb[0].mxu0
        %v1291 = vpop.f32.mrb[0].mxu0
        %v1292 = vadd.f32 0.0, %v1291
        %v1293 = vpop.f32.mrb[0].mxu0
        %1294 = vmatprep.mubr.bf16.mxu0 0
        %1295 = vmatmul.mubr.bf16.gmra.mrb[0].mxu0 %v1105
        %v1296 = vpop.f32.mrb[0].mxu0
        %v1297 = vadd.f32 0.0, %v1296
        %v1298 = vpop.f32.mrb[0].mxu0
        %v1299 = vpop.f32.mrb[0].mxu0
        %v1300 = vadd.f32 0.0, %v1299
        %v1301 = vpop.f32.mrb[0].mxu0
        %1302 = vmatprep.mubr.bf16.mxu0 0
        %1303 = vmatmul.mubr.bf16.gmra.mrb[0].mxu0 %v1106
        %v1304 = vpop.f32.mrb[0].mxu0
        %v1305 = vadd.f32 0.0, %v1304
        %v1306 = vpop.f32.mrb[0].mxu0
        %v1307 = vpop.f32.mrb[0].mxu0
        %v1308 = vadd.f32 0.0, %v1307
        %v1309 = vpop.f32.mrb[0].mxu0
        %1310 = vmatprep.mubr.bf16.mxu0 0
        %1311 = vmatmul.mubr.bf16.gmra.mrb[0].mxu0 %v1107
        %v1312 = vpop.f32.mrb[0].mxu0
        %v1313 = vadd.f32 0.0, %v1312
        %v1314 = vpop.f32.mrb[0].mxu0
        %v1315 = vpop.f32.mrb[0].mxu0
        %v1316 = vadd.f32 0.0, %v1315
        %v1317 = vpop.f32.mrb[0].mxu0
        %1318 = vmatprep.mubr.bf16.mxu0 0
        %1319 = vmatmul.mubr.bf16.gmra.mrb[0].mxu0 %v1108
        %v1320 = vpop.f32.mrb[0].mxu0
        %v1321 = vadd.f32 0.0, %v1320
        %v1322 = vpop.f32.mrb[0].mxu0
        %v1323 = vpop.f32.mrb[0].mxu0
        %v1324 = vadd.f32 0.0, %v1323
        %v1325 = vpop.f32.mrb[0].mxu0
        %1326 = vmatprep.mubr.bf16.mxu0 0
        %1327 = vmatmul.mubr.bf16.gmra.mrb[0].mxu0 %v1109
        %v1328 = vpop.f32.mrb[0].mxu0
        %v1329 = vadd.f32 0.0, %v1328
        %v1330 = vpop.f32.mrb[0].mxu0
        %v1331 = vpop.f32.mrb[0].mxu0
        %v1332 = vadd.f32 0.0, %v1331
        %v1333 = vpop.f32.mrb[0].mxu0
        %1334 = vdwg.mxu0
        %v1335 = vld [vmem:[#allocation2] sm:$0xff]
        %v1336 = vld [vmem:[#allocation2 + $0x8] sm:$0xff]
        %v1337 = vld [vmem:[#allocation2 + $0x10] sm:$0xff]
        %v1338 = vld [vmem:[#allocation2 + $0x18] sm:$0xff]
        %v1339 = vld [vmem:[#allocation2 + $0x20] sm:$0xff]
        %v1340 = vld [vmem:[#allocation2 + $0x28] sm:$0xff]
        %v1341 = vld [vmem:[#allocation2 + $0x30] sm:$0xff]
        %v1342 = vld [vmem:[#allocation2 + $0x38] sm:$0xff]
        %v1343 = vld [vmem:[#allocation2 + $0x40] sm:$0xff]
        %v1344 = vld [vmem:[#allocation2 + $0x48] sm:$0xff]
        %v1345 = vld [vmem:[#allocation2 + $0x50] sm:$0xff]
        %v1346 = vld [vmem:[#allocation2 + $0x58] sm:$0xff]
        %v1347 = vld [vmem:[#allocation2 + $0x60] sm:$0xff]
        %v1348 = vld [vmem:[#allocation2 + $0x68] sm:$0xff]
        %v1349 = vld [vmem:[#allocation2 + $0x70] sm:$0xff]
        %v1350 = vld [vmem:[#allocation2 + $0x78] sm:$0xff]
        %v1351 = vld [vmem:[#allocation2 + $0x80] sm:$0xff]
        %v1352 = vld [vmem:[#allocation2 + $0x88] sm:$0xff]
        %v1353 = vld [vmem:[#allocation2 + $0x90] sm:$0xff]
        %v1354 = vld [vmem:[#allocation2 + $0x98] sm:$0xff]
        %v1355 = vld [vmem:[#allocation2 + $0xa0] sm:$0xff]
        %v1356 = vld [vmem:[#allocation2 + $0xa8] sm:$0xff]
        %v1357 = vld [vmem:[#allocation2 + $0xb0] sm:$0xff]
        %v1358 = vld [vmem:[#allocation2 + $0xb8] sm:$0xff]
        %v1359 = vld [vmem:[#allocation2 + $0xc0] sm:$0xff]
        %v1360 = vld [vmem:[#allocation2 + $0xc8] sm:$0xff]
        %v1361 = vld [vmem:[#allocation2 + $0xd0] sm:$0xff]
        %v1362 = vld [vmem:[#allocation2 + $0xd8] sm:$0xff]
        %v1363 = vld [vmem:[#allocation2 + $0xe0] sm:$0xff]
        %v1364 = vld [vmem:[#allocation2 + $0xe8] sm:$0xff]
        %v1365 = vld [vmem:[#allocation2 + $0xf0] sm:$0xff]
        %v1366 = vld [vmem:[#allocation2 + $0xf8] sm:$0xff]
        %v1367 = vadd.f32 %v1335, %v1209
        %v1368 = vadd.f32 %v1336, %v1212
        %v1369 = vadd.f32 %v1337, %v1217
        %v1370 = vadd.f32 %v1338, %v1220
        %v1371 = vadd.f32 %v1339, %v1225
        %v1372 = vadd.f32 %v1340, %v1228
        %v1373 = vadd.f32 %v1341, %v1233
        %v1374 = vadd.f32 %v1342, %v1236
        %v1375 = vadd.f32 %v1343, %v1241
        %v1376 = vadd.f32 %v1344, %v1244
        %v1377 = vadd.f32 %v1345, %v1249
        %v1378 = vadd.f32 %v1346, %v1252
        %v1379 = vadd.f32 %v1347, %v1257
        %v1380 = vadd.f32 %v1348, %v1260
        %v1381 = vadd.f32 %v1349, %v1265
        %v1382 = vadd.f32 %v1350, %v1268
        %v1383 = vadd.f32 %v1351, %v1273
        %v1384 = vadd.f32 %v1352, %v1276
        %v1385 = vadd.f32 %v1353, %v1281
        %v1386 = vadd.f32 %v1354, %v1284
        %v1387 = vadd.f32 %v1355, %v1289
        %v1388 = vadd.f32 %v1356, %v1292
        %v1389 = vadd.f32 %v1357, %v1297
        %v1390 = vadd.f32 %v1358, %v1300
        %v1391 = vadd.f32 %v1359, %v1305
        %v1392 = vadd.f32 %v1360, %v1308
        %v1393 = vadd.f32 %v1361, %v1313
        %v1394 = vadd.f32 %v1362, %v1316
        %v1395 = vadd.f32 %v1363, %v1321
        %v1396 = vadd.f32 %v1364, %v1324
        %v1397 = vadd.f32 %v1365, %v1329
        %v1398 = vadd.f32 %v1366, %v1332
        %1399 = vst [vmem:[#allocation2] sm:$0xff] %v1367
        %1400 = vst [vmem:[#allocation2 + $0x8] sm:$0xff] %v1368
        %1401 = vst [vmem:[#allocation2 + $0x10] sm:$0xff] %v1369
        %1402 = vst [vmem:[#allocation2 + $0x18] sm:$0xff] %v1370
        %1403 = vst [vmem:[#allocation2 + $0x20] sm:$0xff] %v1371
        %1404 = vst [vmem:[#allocation2 + $0x28] sm:$0xff] %v1372
        %1405 = vst [vmem:[#allocation2 + $0x30] sm:$0xff] %v1373
        %1406 = vst [vmem:[#allocation2 + $0x38] sm:$0xff] %v1374
        %1407 = vst [vmem:[#allocation2 + $0x40] sm:$0xff] %v1375
        %1408 = vst [vmem:[#allocation2 + $0x48] sm:$0xff] %v1376
        %1409 = vst [vmem:[#allocation2 + $0x50] sm:$0xff] %v1377
        %1410 = vst [vmem:[#allocation2 + $0x58] sm:$0xff] %v1378
        %1411 = vst [vmem:[#allocation2 + $0x60] sm:$0xff] %v1379
        %1412 = vst [vmem:[#allocation2 + $0x68] sm:$0xff] %v1380
        %1413 = vst [vmem:[#allocation2 + $0x70] sm:$0xff] %v1381
        %1414 = vst [vmem:[#allocation2 + $0x78] sm:$0xff] %v1382
        %1415 = vst [vmem:[#allocation2 + $0x80] sm:$0xff] %v1383
        %1416 = vst [vmem:[#allocation2 + $0x88] sm:$0xff] %v1384
        %1417 = vst [vmem:[#allocation2 + $0x90] sm:$0xff] %v1385
        %1418 = vst [vmem:[#allocation2 + $0x98] sm:$0xff] %v1386
        %1419 = vst [vmem:[#allocation2 + $0xa0] sm:$0xff] %v1387
        %1420 = vst [vmem:[#allocation2 + $0xa8] sm:$0xff] %v1388
        %1421 = vst [vmem:[#allocation2 + $0xb0] sm:$0xff] %v1389
        %1422 = vst [vmem:[#allocation2 + $0xb8] sm:$0xff] %v1390
        %1423 = vst [vmem:[#allocation2 + $0xc0] sm:$0xff] %v1391
        %1424 = vst [vmem:[#allocation2 + $0xc8] sm:$0xff] %v1392
        %1425 = vst [vmem:[#allocation2 + $0xd0] sm:$0xff] %v1393
        %1426 = vst [vmem:[#allocation2 + $0xd8] sm:$0xff] %v1394
        %1427 = vst [vmem:[#allocation2 + $0xe0] sm:$0xff] %v1395
        %1428 = vst [vmem:[#allocation2 + $0xe8] sm:$0xff] %v1396
        %1429 = vst [vmem:[#allocation2 + $0xf0] sm:$0xff] %v1397
        %1430 = vst [vmem:[#allocation2 + $0xf8] sm:$0xff] %v1398
        %v1431 = vld [vmem:[%s223] sm:$0xe]
        %v1432 = vld [vmem:[%s223 + $0x4] sm:$0xf]
        %v1433 = vld [vmem:[%s223 + $0x8] sm:$0x1]
        %v1434 = vld [vmem:[%s223 + $0xc] sm:$0xe]
        %v1435 = vld [vmem:[%s223 + $0x10] sm:$0xf]
        %v1436 = vld [vmem:[%s223 + $0x14] sm:$0x1]
        %v1437 = vld [vmem:[%s223 + $0x18] sm:$0xe]
        %v1438 = vld [vmem:[%s223 + $0x1c] sm:$0xf]
        %v1439 = vld [vmem:[%s223 + $0x20] sm:$0x1]
        %v1440 = vld [vmem:[%s223 + $0x24] sm:$0xe]
        %v1441 = vld [vmem:[%s223 + $0x28] sm:$0xf]
        %v1442 = vld [vmem:[%s223 + $0x2c] sm:$0x1]
        %v1443 = vld [vmem:[%s223 + $0x30] sm:$0xe]
        %v1444 = vld [vmem:[%s223 + $0x34] sm:$0xf]
        %v1445 = vld [vmem:[%s223 + $0x38] sm:$0x1]
        %v1446 = vld [vmem:[%s223 + $0x3c] sm:$0xe]
        %v1447 = vld [vmem:[%s223 + $0x40] sm:$0xf]
        %v1448 = vld [vmem:[%s223 + $0x44] sm:$0x1]
        %v1449 = vld [vmem:[%s223 + $0x48] sm:$0xe]
        %v1450 = vld [vmem:[%s223 + $0x4c] sm:$0xf]
        %v1451 = vld [vmem:[%s223 + $0x50] sm:$0x1]
        %v1452 = vld [vmem:[%s223 + $0x54] sm:$0xe]
        %v1453 = vld [vmem:[%s223 + $0x58] sm:$0xf]
        %v1454 = vld [vmem:[%s223 + $0x5c] sm:$0x1]
        %v1455 = vld [vmem:[%s223 + $0x60] sm:$0xe]
        %v1456 = vld [vmem:[%s223 + $0x64] sm:$0xf]
        %v1457 = vld [vmem:[%s223 + $0x68] sm:$0x1]
        %v1458 = vld [vmem:[%s223 + $0x6c] sm:$0xe]
        %v1459 = vld [vmem:[%s223 + $0x70] sm:$0xf]
        %v1460 = vld [vmem:[%s223 + $0x74] sm:$0x1]
        %v1461 = vld [vmem:[%s223 + $0x78] sm:$0xe]
        %v1462 = vld [vmem:[%s223 + $0x7c] sm:$0xf]
        %v1463 = vld [vmem:[%s223 + $0x80] sm:$0x1]
        %v1464 = vld [vmem:[%s223 + $0x84] sm:$0xe]
        %v1465 = vld [vmem:[%s223 + $0x88] sm:$0xf]
        %v1466 = vld [vmem:[%s223 + $0x8c] sm:$0x1]
        %v1467 = vld [vmem:[%s223 + $0x90] sm:$0xe]
        %v1468 = vld [vmem:[%s223 + $0x94] sm:$0xf]
        %v1469 = vld [vmem:[%s223 + $0x98] sm:$0x1]
        %v1470 = vld [vmem:[%s223 + $0x9c] sm:$0xe]
        %v1471 = vld [vmem:[%s223 + $0xa0] sm:$0xf]
        %v1472 = vld [vmem:[%s223 + $0xa4] sm:$0x1]
        %v1473 = vld [vmem:[%s223 + $0xa8] sm:$0xe]
        %v1474 = vld [vmem:[%s223 + $0xac] sm:$0xf]
        %v1475 = vld [vmem:[%s223 + $0xb0] sm:$0x1]
        %v1476 = vld [vmem:[%s223 + $0xb4] sm:$0xe]
        %v1477 = vld [vmem:[%s223 + $0xb8] sm:$0xf]
        %v1478 = vld [vmem:[%s223 + $0xbc] sm:$0x1]
        %vm1527 = vcmask 1042432
        %vm1528 = vcmask 1046532
        %vm1529 = vmor %vm1527, %vm1528
        %v1530 = vrot.slane %v1431, 5
        %v1531 = vrot.slane %v1530, 4
        %v1532 = vrot.slane %v1432, 5
        %v1533 = vsel %vm1529, %v1531, %v1532
        %v1534 = vrot.slane %v1532, 4
        %v1535 = vrot.slane %v1433, 5
        %v1536 = vsel %vm1529, %v1534, %v1535
        %v1537 = vrot.slane %v1434, 5
        %v1538 = vrot.slane %v1537, 4
        %v1539 = vrot.slane %v1435, 5
        %v1540 = vsel %vm1529, %v1538, %v1539
        %v1541 = vrot.slane %v1539, 4
        %v1542 = vrot.slane %v1436, 5
        %v1543 = vsel %vm1529, %v1541, %v1542
        %v1544 = vrot.slane %v1437, 5
        %v1545 = vrot.slane %v1544, 4
        %v1546 = vrot.slane %v1438, 5
        %v1547 = vsel %vm1529, %v1545, %v1546
        %v1548 = vrot.slane %v1546, 4
        %v1549 = vrot.slane %v1439, 5
        %v1550 = vsel %vm1529, %v1548, %v1549
        %v1551 = vrot.slane %v1440, 5
        %v1552 = vrot.slane %v1551, 4
        %v1553 = vrot.slane %v1441, 5
        %v1554 = vsel %vm1529, %v1552, %v1553
        %v1555 = vrot.slane %v1553, 4
        %v1556 = vrot.slane %v1442, 5
        %v1557 = vsel %vm1529, %v1555, %v1556
        %v1558 = vrot.slane %v1443, 5
        %v1559 = vrot.slane %v1558, 4
        %v1560 = vrot.slane %v1444, 5
        %v1561 = vsel %vm1529, %v1559, %v1560
        %v1562 = vrot.slane %v1560, 4
        %v1563 = vrot.slane %v1445, 5
        %v1564 = vsel %vm1529, %v1562, %v1563
        %v1565 = vrot.slane %v1446, 5
        %v1566 = vrot.slane %v1565, 4
        %v1567 = vrot.slane %v1447, 5
        %v1568 = vsel %vm1529, %v1566, %v1567
        %v1569 = vrot.slane %v1567, 4
        %v1570 = vrot.slane %v1448, 5
        %v1571 = vsel %vm1529, %v1569, %v1570
        %v1572 = vrot.slane %v1449, 5
        %v1573 = vrot.slane %v1572, 4
        %v1574 = vrot.slane %v1450, 5
        %v1575 = vsel %vm1529, %v1573, %v1574
        %v1576 = vrot.slane %v1574, 4
        %v1577 = vrot.slane %v1451, 5
        %v1578 = vsel %vm1529, %v1576, %v1577
        %v1579 = vrot.slane %v1452, 5
        %v1580 = vrot.slane %v1579, 4
        %v1581 = vrot.slane %v1453, 5
        %v1582 = vsel %vm1529, %v1580, %v1581
        %v1583 = vrot.slane %v1581, 4
        %v1584 = vrot.slane %v1454, 5
        %v1585 = vsel %vm1529, %v1583, %v1584
        %v1586 = vrot.slane %v1455, 5
        %v1587 = vrot.slane %v1586, 4
        %v1588 = vrot.slane %v1456, 5
        %v1589 = vsel %vm1529, %v1587, %v1588
        %v1590 = vrot.slane %v1588, 4
        %v1591 = vrot.slane %v1457, 5
        %v1592 = vsel %vm1529, %v1590, %v1591
        %v1593 = vrot.slane %v1458, 5
        %v1594 = vrot.slane %v1593, 4
        %v1595 = vrot.slane %v1459, 5
        %v1596 = vsel %vm1529, %v1594, %v1595
        %v1597 = vrot.slane %v1595, 4
        %v1598 = vrot.slane %v1460, 5
        %v1599 = vsel %vm1529, %v1597, %v1598
        %v1600 = vrot.slane %v1461, 5
        %v1601 = vrot.slane %v1600, 4
        %v1602 = vrot.slane %v1462, 5
        %v1603 = vsel %vm1529, %v1601, %v1602
        %v1604 = vrot.slane %v1602, 4
        %v1605 = vrot.slane %v1463, 5
        %v1606 = vsel %vm1529, %v1604, %v1605
        %v1607 = vrot.slane %v1464, 5
        %v1608 = vrot.slane %v1607, 4
        %v1609 = vrot.slane %v1465, 5
        %v1610 = vsel %vm1529, %v1608, %v1609
        %v1611 = vrot.slane %v1609, 4
        %v1612 = vrot.slane %v1466, 5
        %v1613 = vsel %vm1529, %v1611, %v1612
        %v1614 = vrot.slane %v1467, 5
        %v1615 = vrot.slane %v1614, 4
        %v1616 = vrot.slane %v1468, 5
        %v1617 = vsel %vm1529, %v1615, %v1616
        %v1618 = vrot.slane %v1616, 4
        %v1619 = vrot.slane %v1469, 5
        %v1620 = vsel %vm1529, %v1618, %v1619
        %v1621 = vrot.slane %v1470, 5
        %v1622 = vrot.slane %v1621, 4
        %v1623 = vrot.slane %v1471, 5
        %v1624 = vsel %vm1529, %v1622, %v1623
        %v1625 = vrot.slane %v1623, 4
        %v1626 = vrot.slane %v1472, 5
        %v1627 = vsel %vm1529, %v1625, %v1626
        %v1628 = vrot.slane %v1473, 5
        %v1629 = vrot.slane %v1628, 4
        %v1630 = vrot.slane %v1474, 5
        %v1631 = vsel %vm1529, %v1629, %v1630
        %v1632 = vrot.slane %v1630, 4
        %v1633 = vrot.slane %v1475, 5
        %v1634 = vsel %vm1529, %v1632, %v1633
        %v1635 = vrot.slane %v1476, 5
        %v1636 = vrot.slane %v1635, 4
        %v1637 = vrot.slane %v1477, 5
        %v1638 = vsel %vm1529, %v1636, %v1637
        %v1639 = vrot.slane %v1637, 4
        %v1640 = vrot.slane %v1478, 5
        %v1641 = vsel %vm1529, %v1639, %v1640
        %s1642 = scalar_lea.vmem %s1, 128
        %v1643 = vld [vmem:[%s1642] sm:$0xf]
        %v1644 = vld [vmem:[%s1642 + $0x4] sm:$0xf]
        %v1645 = vld [vmem:[%s1642 + $0x8] sm:$0xf]
        %v1646 = vld [vmem:[%s1642 + $0xc] sm:$0xf]
        %v1647 = vld [vmem:[%s1642 + $0x10] sm:$0xf]
        %v1648 = vld [vmem:[%s1642 + $0x14] sm:$0xf]
        %v1649 = vld [vmem:[%s1642 + $0x18] sm:$0xf]
        %v1650 = vld [vmem:[%s1642 + $0x1c] sm:$0xf]
        %v1651 = vld [vmem:[%s1642 + $0x20] sm:$0xf]
        %v1652 = vld [vmem:[%s1642 + $0x24] sm:$0xf]
        %v1653 = vld [vmem:[%s1642 + $0x28] sm:$0xf]
        %v1654 = vld [vmem:[%s1642 + $0x2c] sm:$0xf]
        %v1655 = vld [vmem:[%s1642 + $0x30] sm:$0xf]
        %v1656 = vld [vmem:[%s1642 + $0x34] sm:$0xf]
        %v1657 = vld [vmem:[%s1642 + $0x38] sm:$0xf]
        %v1658 = vld [vmem:[%s1642 + $0x3c] sm:$0xf]
        %v1659 = vunpack.c.l.b16 %v1533
        %v1660 = vunpack.c.l.b16 %v1536
        %v1661 = vunpack.c.l.b16 %v1540
        %v1662 = vunpack.c.l.b16 %v1543
        %v1663 = vunpack.c.l.b16 %v1547
        %v1664 = vunpack.c.l.b16 %v1550
        %v1665 = vunpack.c.l.b16 %v1554
        %v1666 = vunpack.c.l.b16 %v1557
        %v1667 = vunpack.c.l.b16 %v1561
        %v1668 = vunpack.c.l.b16 %v1564
        %v1669 = vunpack.c.l.b16 %v1568
        %v1670 = vunpack.c.l.b16 %v1571
        %v1671 = vunpack.c.l.b16 %v1575
        %v1672 = vunpack.c.l.b16 %v1578
        %v1673 = vunpack.c.l.b16 %v1582
        %v1674 = vunpack.c.l.b16 %v1585
        %v1675 = vunpack.c.l.b16 %v1589
        %v1676 = vunpack.c.l.b16 %v1592
        %v1677 = vunpack.c.l.b16 %v1596
        %v1678 = vunpack.c.l.b16 %v1599
        %v1679 = vunpack.c.l.b16 %v1603
        %v1680 = vunpack.c.l.b16 %v1606
        %v1681 = vunpack.c.l.b16 %v1610
        %v1682 = vunpack.c.l.b16 %v1613
        %v1683 = vunpack.c.l.b16 %v1617
        %v1684 = vunpack.c.l.b16 %v1620
        %v1685 = vunpack.c.l.b16 %v1624
        %v1686 = vunpack.c.l.b16 %v1627
        %v1687 = vunpack.c.l.b16 %v1631
        %v1688 = vunpack.c.l.b16 %v1634
        %v1689 = vunpack.c.l.b16 %v1638
        %v1690 = vunpack.c.l.b16 %v1641
        %v1691 = vpack.c.b16 %v1660, %v1659
        %v1692 = vpack.c.b16 %v1662, %v1661
        %v1693 = vpack.c.b16 %v1664, %v1663
        %v1694 = vpack.c.b16 %v1666, %v1665
        %v1695 = vpack.c.b16 %v1668, %v1667
        %v1696 = vpack.c.b16 %v1670, %v1669
        %v1697 = vpack.c.b16 %v1672, %v1671
        %v1698 = vpack.c.b16 %v1674, %v1673
        %v1699 = vpack.c.b16 %v1676, %v1675
        %v1700 = vpack.c.b16 %v1678, %v1677
        %v1701 = vpack.c.b16 %v1680, %v1679
        %v1702 = vpack.c.b16 %v1682, %v1681
        %v1703 = vpack.c.b16 %v1684, %v1683
        %v1704 = vpack.c.b16 %v1686, %v1685
        %v1705 = vpack.c.b16 %v1688, %v1687
        %v1706 = vpack.c.b16 %v1690, %v1689
        %v1739 = vunpack.c.l.b16 %v1643
        %v1740 = vunpack.c.l.b16 %v1644
        %v1741 = vunpack.c.l.b16 %v1645
        %v1742 = vunpack.c.l.b16 %v1646
        %v1743 = vunpack.c.l.b16 %v1647
        %v1744 = vunpack.c.l.b16 %v1648
        %v1745 = vunpack.c.l.b16 %v1649
        %v1746 = vunpack.c.l.b16 %v1650
        %v1747 = vunpack.c.l.b16 %v1651
        %v1748 = vunpack.c.l.b16 %v1652
        %v1749 = vunpack.c.l.b16 %v1653
        %v1750 = vunpack.c.l.b16 %v1654
        %v1751 = vunpack.c.l.b16 %v1655
        %v1752 = vunpack.c.l.b16 %v1656
        %v1753 = vunpack.c.l.b16 %v1657
        %v1754 = vunpack.c.l.b16 %v1658
        %v1755 = vpack.c.b16 %v1740, %v1739
        %v1756 = vpack.c.b16 %v1742, %v1741
        %v1757 = vpack.c.b16 %v1744, %v1743
        %v1758 = vpack.c.b16 %v1746, %v1745
        %v1759 = vpack.c.b16 %v1748, %v1747
        %v1760 = vpack.c.b16 %v1750, %v1749
        %v1761 = vpack.c.b16 %v1752, %v1751
        %v1762 = vpack.c.b16 %v1754, %v1753
        %1771 = vmatprep.subr.bf16.mxu0 0
        %1772 = vmatpush1.bf16.msra.mxu0 %v1755
        %1773 = vmatprep.subr.bf16.mxu0 0
        %1774 = vmatpush1.bf16.msra.mxu0 %v1756
        %1775 = vmatprep.subr.bf16.mxu0 0
        %1776 = vmatpush1.bf16.msra.mxu0 %v1757
        %1777 = vmatprep.subr.bf16.mxu0 0
        %1778 = vmatpush1.bf16.msra.mxu0 %v1758
        %1779 = vmatprep.subr.bf16.mxu0 0
        %1780 = vmatpush1.bf16.msra.mxu0 %v1759
        %1781 = vmatprep.subr.bf16.mxu0 0
        %1782 = vmatpush1.bf16.msra.mxu0 %v1760
        %1783 = vmatprep.subr.bf16.mxu0 0
        %1784 = vmatpush1.bf16.msra.mxu0 %v1761
        %1785 = vmatprep.subr.bf16.mxu0 0
        %1786 = vmatpush1.bf16.msra.mxu0 %v1762
        %1787 = vmatprep.subr.bf16.mxu0 0
        %1788 = vmatpush1.bf16.msra.mxu0 0
        %1789 = vmatprep.subr.bf16.mxu0 0
        %1790 = vmatpush1.bf16.msra.mxu0 0
        %1791 = vmatprep.subr.bf16.mxu0 0
        %1792 = vmatpush1.bf16.msra.mxu0 0
        %1793 = vmatprep.subr.bf16.mxu0 0
        %1794 = vmatpush1.bf16.msra.mxu0 0
        %1795 = vmatprep.subr.bf16.mxu0 0
        %1796 = vmatpush1.bf16.msra.mxu0 0
        %1797 = vmatprep.subr.bf16.mxu0 0
        %1798 = vmatpush1.bf16.msra.mxu0 0
        %1799 = vmatprep.subr.bf16.mxu0 0
        %1800 = vmatpush1.bf16.msra.mxu0 0
        %1801 = vmatprep.subr.bf16.mxu0 0
        %1802 = vmatpush1.bf16.msra.mxu0 0
        %1803 = vmatprep.mubr.bf16.mxu0 0
        %1804 = vmatmul.mubr.bf16.gmra.mrb[0].mxu0 %v1691
        %v1805 = vpop.f32.mrb[0].mxu0
        %v1806 = vadd.f32 0.0, %v1805
        %v1807 = vpop.f32.mrb[0].mxu0
        %v1808 = vpop.f32.mrb[0].mxu0
        %v1809 = vadd.f32 0.0, %v1808
        %v1810 = vpop.f32.mrb[0].mxu0
        %1811 = vmatprep.mubr.bf16.mxu0 0
        %1812 = vmatmul.mubr.bf16.gmra.mrb[0].mxu0 %v1692
        %v1813 = vpop.f32.mrb[0].mxu0
        %v1814 = vadd.f32 0.0, %v1813
        %v1815 = vpop.f32.mrb[0].mxu0
        %v1816 = vpop.f32.mrb[0].mxu0
        %v1817 = vadd.f32 0.0, %v1816
        %v1818 = vpop.f32.mrb[0].mxu0
        %1819 = vmatprep.mubr.bf16.mxu0 0
        %1820 = vmatmul.mubr.bf16.gmra.mrb[0].mxu0 %v1693
        %v1821 = vpop.f32.mrb[0].mxu0
        %v1822 = vadd.f32 0.0, %v1821
        %v1823 = vpop.f32.mrb[0].mxu0
        %v1824 = vpop.f32.mrb[0].mxu0
        %v1825 = vadd.f32 0.0, %v1824
        %v1826 = vpop.f32.mrb[0].mxu0
        %1827 = vmatprep.mubr.bf16.mxu0 0
        %1828 = vmatmul.mubr.bf16.gmra.mrb[0].mxu0 %v1694
        %v1829 = vpop.f32.mrb[0].mxu0
        %v1830 = vadd.f32 0.0, %v1829
        %v1831 = vpop.f32.mrb[0].mxu0
        %v1832 = vpop.f32.mrb[0].mxu0
        %v1833 = vadd.f32 0.0, %v1832
        %v1834 = vpop.f32.mrb[0].mxu0
        %1835 = vmatprep.mubr.bf16.mxu0 0
        %1836 = vmatmul.mubr.bf16.gmra.mrb[0].mxu0 %v1695
        %v1837 = vpop.f32.mrb[0].mxu0
        %v1838 = vadd.f32 0.0, %v1837
        %v1839 = vpop.f32.mrb[0].mxu0
        %v1840 = vpop.f32.mrb[0].mxu0
        %v1841 = vadd.f32 0.0, %v1840
        %v1842 = vpop.f32.mrb[0].mxu0
        %1843 = vmatprep.mubr.bf16.mxu0 0
        %1844 = vmatmul.mubr.bf16.gmra.mrb[0].mxu0 %v1696
        %v1845 = vpop.f32.mrb[0].mxu0
        %v1846 = vadd.f32 0.0, %v1845
        %v1847 = vpop.f32.mrb[0].mxu0
        %v1848 = vpop.f32.mrb[0].mxu0
        %v1849 = vadd.f32 0.0, %v1848
        %v1850 = vpop.f32.mrb[0].mxu0
        %1851 = vmatprep.mubr.bf16.mxu0 0
        %1852 = vmatmul.mubr.bf16.gmra.mrb[0].mxu0 %v1697
        %v1853 = vpop.f32.mrb[0].mxu0
        %v1854 = vadd.f32 0.0, %v1853
        %v1855 = vpop.f32.mrb[0].mxu0
        %v1856 = vpop.f32.mrb[0].mxu0
        %v1857 = vadd.f32 0.0, %v1856
        %v1858 = vpop.f32.mrb[0].mxu0
        %1859 = vmatprep.mubr.bf16.mxu0 0
        %1860 = vmatmul.mubr.bf16.gmra.mrb[0].mxu0 %v1698
        %v1861 = vpop.f32.mrb[0].mxu0
        %v1862 = vadd.f32 0.0, %v1861
        %v1863 = vpop.f32.mrb[0].mxu0
        %v1864 = vpop.f32.mrb[0].mxu0
        %v1865 = vadd.f32 0.0, %v1864
        %v1866 = vpop.f32.mrb[0].mxu0
        %1867 = vmatprep.mubr.bf16.mxu0 0
        %1868 = vmatmul.mubr.bf16.gmra.mrb[0].mxu0 %v1699
        %v1869 = vpop.f32.mrb[0].mxu0
        %v1870 = vadd.f32 0.0, %v1869
        %v1871 = vpop.f32.mrb[0].mxu0
        %v1872 = vpop.f32.mrb[0].mxu0
        %v1873 = vadd.f32 0.0, %v1872
        %v1874 = vpop.f32.mrb[0].mxu0
        %1875 = vmatprep.mubr.bf16.mxu0 0
        %1876 = vmatmul.mubr.bf16.gmra.mrb[0].mxu0 %v1700
        %v1877 = vpop.f32.mrb[0].mxu0
        %v1878 = vadd.f32 0.0, %v1877
        %v1879 = vpop.f32.mrb[0].mxu0
        %v1880 = vpop.f32.mrb[0].mxu0
        %v1881 = vadd.f32 0.0, %v1880
        %v1882 = vpop.f32.mrb[0].mxu0
        %1883 = vmatprep.mubr.bf16.mxu0 0
        %1884 = vmatmul.mubr.bf16.gmra.mrb[0].mxu0 %v1701
        %v1885 = vpop.f32.mrb[0].mxu0
        %v1886 = vadd.f32 0.0, %v1885
        %v1887 = vpop.f32.mrb[0].mxu0
        %v1888 = vpop.f32.mrb[0].mxu0
        %v1889 = vadd.f32 0.0, %v1888
        %v1890 = vpop.f32.mrb[0].mxu0
        %1891 = vmatprep.mubr.bf16.mxu0 0
        %1892 = vmatmul.mubr.bf16.gmra.mrb[0].mxu0 %v1702
        %v1893 = vpop.f32.mrb[0].mxu0
        %v1894 = vadd.f32 0.0, %v1893
        %v1895 = vpop.f32.mrb[0].mxu0
        %v1896 = vpop.f32.mrb[0].mxu0
        %v1897 = vadd.f32 0.0, %v1896
        %v1898 = vpop.f32.mrb[0].mxu0
        %1899 = vmatprep.mubr.bf16.mxu0 0
        %1900 = vmatmul.mubr.bf16.gmra.mrb[0].mxu0 %v1703
        %v1901 = vpop.f32.mrb[0].mxu0
        %v1902 = vadd.f32 0.0, %v1901
        %v1903 = vpop.f32.mrb[0].mxu0
        %v1904 = vpop.f32.mrb[0].mxu0
        %v1905 = vadd.f32 0.0, %v1904
        %v1906 = vpop.f32.mrb[0].mxu0
        %1907 = vmatprep.mubr.bf16.mxu0 0
        %1908 = vmatmul.mubr.bf16.gmra.mrb[0].mxu0 %v1704
        %v1909 = vpop.f32.mrb[0].mxu0
        %v1910 = vadd.f32 0.0, %v1909
        %v1911 = vpop.f32.mrb[0].mxu0
        %v1912 = vpop.f32.mrb[0].mxu0
        %v1913 = vadd.f32 0.0, %v1912
        %v1914 = vpop.f32.mrb[0].mxu0
        %1915 = vmatprep.mubr.bf16.mxu0 0
        %1916 = vmatmul.mubr.bf16.gmra.mrb[0].mxu0 %v1705
        %v1917 = vpop.f32.mrb[0].mxu0
        %v1918 = vadd.f32 0.0, %v1917
        %v1919 = vpop.f32.mrb[0].mxu0
        %v1920 = vpop.f32.mrb[0].mxu0
        %v1921 = vadd.f32 0.0, %v1920
        %v1922 = vpop.f32.mrb[0].mxu0
        %1923 = vmatprep.mubr.bf16.mxu0 0
        %1924 = vmatmul.mubr.bf16.gmra.mrb[0].mxu0 %v1706
        %v1925 = vpop.f32.mrb[0].mxu0
        %v1926 = vadd.f32 0.0, %v1925
        %v1927 = vpop.f32.mrb[0].mxu0
        %v1928 = vpop.f32.mrb[0].mxu0
        %v1929 = vadd.f32 0.0, %v1928
        %v1930 = vpop.f32.mrb[0].mxu0
        %1931 = vdwg.mxu0
        %v1932 = vld [vmem:[#allocation2] sm:$0xff]
        %v1933 = vld [vmem:[#allocation2 + $0x8] sm:$0xff]
        %v1934 = vld [vmem:[#allocation2 + $0x10] sm:$0xff]
        %v1935 = vld [vmem:[#allocation2 + $0x18] sm:$0xff]
        %v1936 = vld [vmem:[#allocation2 + $0x20] sm:$0xff]
        %v1937 = vld [vmem:[#allocation2 + $0x28] sm:$0xff]
        %v1938 = vld [vmem:[#allocation2 + $0x30] sm:$0xff]
        %v1939 = vld [vmem:[#allocation2 + $0x38] sm:$0xff]
        %v1940 = vld [vmem:[#allocation2 + $0x40] sm:$0xff]
        %v1941 = vld [vmem:[#allocation2 + $0x48] sm:$0xff]
        %v1942 = vld [vmem:[#allocation2 + $0x50] sm:$0xff]
        %v1943 = vld [vmem:[#allocation2 + $0x58] sm:$0xff]
        %v1944 = vld [vmem:[#allocation2 + $0x60] sm:$0xff]
        %v1945 = vld [vmem:[#allocation2 + $0x68] sm:$0xff]
        %v1946 = vld [vmem:[#allocation2 + $0x70] sm:$0xff]
        %v1947 = vld [vmem:[#allocation2 + $0x78] sm:$0xff]
        %v1948 = vld [vmem:[#allocation2 + $0x80] sm:$0xff]
        %v1949 = vld [vmem:[#allocation2 + $0x88] sm:$0xff]
        %v1950 = vld [vmem:[#allocation2 + $0x90] sm:$0xff]
        %v1951 = vld [vmem:[#allocation2 + $0x98] sm:$0xff]
        %v1952 = vld [vmem:[#allocation2 + $0xa0] sm:$0xff]
        %v1953 = vld [vmem:[#allocation2 + $0xa8] sm:$0xff]
        %v1954 = vld [vmem:[#allocation2 + $0xb0] sm:$0xff]
        %v1955 = vld [vmem:[#allocation2 + $0xb8] sm:$0xff]
        %v1956 = vld [vmem:[#allocation2 + $0xc0] sm:$0xff]
        %v1957 = vld [vmem:[#allocation2 + $0xc8] sm:$0xff]
        %v1958 = vld [vmem:[#allocation2 + $0xd0] sm:$0xff]
        %v1959 = vld [vmem:[#allocation2 + $0xd8] sm:$0xff]
        %v1960 = vld [vmem:[#allocation2 + $0xe0] sm:$0xff]
        %v1961 = vld [vmem:[#allocation2 + $0xe8] sm:$0xff]
        %v1962 = vld [vmem:[#allocation2 + $0xf0] sm:$0xff]
        %v1963 = vld [vmem:[#allocation2 + $0xf8] sm:$0xff]
        %v1964 = vadd.f32 %v1932, %v1806
        %v1965 = vadd.f32 %v1933, %v1809
        %v1966 = vadd.f32 %v1934, %v1814
        %v1967 = vadd.f32 %v1935, %v1817
        %v1968 = vadd.f32 %v1936, %v1822
        %v1969 = vadd.f32 %v1937, %v1825
        %v1970 = vadd.f32 %v1938, %v1830
        %v1971 = vadd.f32 %v1939, %v1833
        %v1972 = vadd.f32 %v1940, %v1838
        %v1973 = vadd.f32 %v1941, %v1841
        %v1974 = vadd.f32 %v1942, %v1846
        %v1975 = vadd.f32 %v1943, %v1849
        %v1976 = vadd.f32 %v1944, %v1854
        %v1977 = vadd.f32 %v1945, %v1857
        %v1978 = vadd.f32 %v1946, %v1862
        %v1979 = vadd.f32 %v1947, %v1865
        %v1980 = vadd.f32 %v1948, %v1870
        %v1981 = vadd.f32 %v1949, %v1873
        %v1982 = vadd.f32 %v1950, %v1878
        %v1983 = vadd.f32 %v1951, %v1881
        %v1984 = vadd.f32 %v1952, %v1886
        %v1985 = vadd.f32 %v1953, %v1889
        %v1986 = vadd.f32 %v1954, %v1894
        %v1987 = vadd.f32 %v1955, %v1897
        %v1988 = vadd.f32 %v1956, %v1902
        %v1989 = vadd.f32 %v1957, %v1905
        %v1990 = vadd.f32 %v1958, %v1910
        %v1991 = vadd.f32 %v1959, %v1913
        %v1992 = vadd.f32 %v1960, %v1918
        %v1993 = vadd.f32 %v1961, %v1921
        %v1994 = vadd.f32 %v1962, %v1926
        %v1995 = vadd.f32 %v1963, %v1929
        %1996 = vst [vmem:[#allocation2] sm:$0xff] %v1964
        %1997 = vst [vmem:[#allocation2 + $0x8] sm:$0xff] %v1965
        %1998 = vst [vmem:[#allocation2 + $0x10] sm:$0xff] %v1966
        %1999 = vst [vmem:[#allocation2 + $0x18] sm:$0xff] %v1967
        %2000 = vst [vmem:[#allocation2 + $0x20] sm:$0xff] %v1968
        %2001 = vst [vmem:[#allocation2 + $0x28] sm:$0xff] %v1969
        %2002 = vst [vmem:[#allocation2 + $0x30] sm:$0xff] %v1970
        %2003 = vst [vmem:[#allocation2 + $0x38] sm:$0xff] %v1971
        %2004 = vst [vmem:[#allocation2 + $0x40] sm:$0xff] %v1972
        %2005 = vst [vmem:[#allocation2 + $0x48] sm:$0xff] %v1973
        %2006 = vst [vmem:[#allocation2 + $0x50] sm:$0xff] %v1974
        %2007 = vst [vmem:[#allocation2 + $0x58] sm:$0xff] %v1975
        %2008 = vst [vmem:[#allocation2 + $0x60] sm:$0xff] %v1976
        %2009 = vst [vmem:[#allocation2 + $0x68] sm:$0xff] %v1977
        %2010 = vst [vmem:[#allocation2 + $0x70] sm:$0xff] %v1978
        %2011 = vst [vmem:[#allocation2 + $0x78] sm:$0xff] %v1979
        %2012 = vst [vmem:[#allocation2 + $0x80] sm:$0xff] %v1980
        %2013 = vst [vmem:[#allocation2 + $0x88] sm:$0xff] %v1981
        %2014 = vst [vmem:[#allocation2 + $0x90] sm:$0xff] %v1982
        %2015 = vst [vmem:[#allocation2 + $0x98] sm:$0xff] %v1983
        %2016 = vst [vmem:[#allocation2 + $0xa0] sm:$0xff] %v1984
        %2017 = vst [vmem:[#allocation2 + $0xa8] sm:$0xff] %v1985
        %2018 = vst [vmem:[#allocation2 + $0xb0] sm:$0xff] %v1986
        %2019 = vst [vmem:[#allocation2 + $0xb8] sm:$0xff] %v1987
        %2020 = vst [vmem:[#allocation2 + $0xc0] sm:$0xff] %v1988
        %2021 = vst [vmem:[#allocation2 + $0xc8] sm:$0xff] %v1989
        %2022 = vst [vmem:[#allocation2 + $0xd0] sm:$0xff] %v1990
        %2023 = vst [vmem:[#allocation2 + $0xd8] sm:$0xff] %v1991
        %2024 = vst [vmem:[#allocation2 + $0xe0] sm:$0xff] %v1992
        %2025 = vst [vmem:[#allocation2 + $0xe8] sm:$0xff] %v1993
        %2026 = vst [vmem:[#allocation2 + $0xf0] sm:$0xff] %v1994
        %2027 = vst [vmem:[#allocation2 + $0xf8] sm:$0xff] %v1995
        %s2028 = scalar_lea.vmem %s223, 12
        %v2029 = vld [vmem:[%s2028] sm:$0xf]
        %v2030 = vld [vmem:[%s2028 + $0x4] sm:$0xf]
        %v2031 = vld [vmem:[%s2028 + $0xc] sm:$0xf]
        %v2032 = vld [vmem:[%s2028 + $0x10] sm:$0xf]
        %v2033 = vld [vmem:[%s2028 + $0x18] sm:$0xf]
        %v2034 = vld [vmem:[%s2028 + $0x1c] sm:$0xf]
        %v2035 = vld [vmem:[%s2028 + $0x24] sm:$0xf]
        %v2036 = vld [vmem:[%s2028 + $0x28] sm:$0xf]
        %v2037 = vld [vmem:[%s2028 + $0x30] sm:$0xf]
        %v2038 = vld [vmem:[%s2028 + $0x34] sm:$0xf]
        %v2039 = vld [vmem:[%s2028 + $0x3c] sm:$0xf]
        %v2040 = vld [vmem:[%s2028 + $0x40] sm:$0xf]
        %v2041 = vld [vmem:[%s2028 + $0x48] sm:$0xf]
        %v2042 = vld [vmem:[%s2028 + $0x4c] sm:$0xf]
        %v2043 = vld [vmem:[%s2028 + $0x54] sm:$0xf]
        %v2044 = vld [vmem:[%s2028 + $0x58] sm:$0xf]
        %v2045 = vld [vmem:[%s2028 + $0x60] sm:$0xf]
        %v2046 = vld [vmem:[%s2028 + $0x64] sm:$0xf]
        %v2047 = vld [vmem:[%s2028 + $0x6c] sm:$0xf]
        %v2048 = vld [vmem:[%s2028 + $0x70] sm:$0xf]
        %v2049 = vld [vmem:[%s2028 + $0x78] sm:$0xf]
        %v2050 = vld [vmem:[%s2028 + $0x7c] sm:$0xf]
        %v2051 = vld [vmem:[%s2028 + $0x84] sm:$0xf]
        %v2052 = vld [vmem:[%s2028 + $0x88] sm:$0xf]
        %v2053 = vld [vmem:[%s2028 + $0x90] sm:$0xf]
        %v2054 = vld [vmem:[%s2028 + $0x94] sm:$0xf]
        %v2055 = vld [vmem:[%s2028 + $0x9c] sm:$0xf]
        %v2056 = vld [vmem:[%s2028 + $0xa0] sm:$0xf]
        %v2057 = vld [vmem:[%s2028 + $0xa8] sm:$0xf]
        %v2058 = vld [vmem:[%s2028 + $0xac] sm:$0xf]
        %v2059 = vld [vmem:[%s2028 + $0xb4] sm:$0xf]
        %v2060 = vld [vmem:[%s2028 + $0xb8] sm:$0xf]
        %s2061 = scalar_lea.vmem %s1, 192
        %v2062 = vld [vmem:[%s2061] sm:$0xf]
        %v2063 = vld [vmem:[%s2061 + $0x4] sm:$0xf]
        %v2064 = vld [vmem:[%s2061 + $0x8] sm:$0xf]
        %v2065 = vld [vmem:[%s2061 + $0xc] sm:$0xf]
        %v2066 = vld [vmem:[%s2061 + $0x10] sm:$0xf]
        %v2067 = vld [vmem:[%s2061 + $0x14] sm:$0xf]
        %v2068 = vld [vmem:[%s2061 + $0x18] sm:$0xf]
        %v2069 = vld [vmem:[%s2061 + $0x1c] sm:$0xf]
        %v2070 = vld [vmem:[%s2061 + $0x20] sm:$0xf]
        %v2071 = vld [vmem:[%s2061 + $0x24] sm:$0xf]
        %v2072 = vld [vmem:[%s2061 + $0x28] sm:$0xf]
        %v2073 = vld [vmem:[%s2061 + $0x2c] sm:$0xf]
        %v2074 = vld [vmem:[%s2061 + $0x30] sm:$0xf]
        %v2075 = vld [vmem:[%s2061 + $0x34] sm:$0xf]
        %v2076 = vld [vmem:[%s2061 + $0x38] sm:$0xf]
        %v2077 = vld [vmem:[%s2061 + $0x3c] sm:$0xf]
        %v2110 = vunpack.c.l.b16 %v2029
        %v2111 = vunpack.c.l.b16 %v2030
        %v2112 = vunpack.c.l.b16 %v2031
        %v2113 = vunpack.c.l.b16 %v2032
        %v2114 = vunpack.c.l.b16 %v2033
        %v2115 = vunpack.c.l.b16 %v2034
        %v2116 = vunpack.c.l.b16 %v2035
        %v2117 = vunpack.c.l.b16 %v2036
        %v2118 = vunpack.c.l.b16 %v2037
        %v2119 = vunpack.c.l.b16 %v2038
        %v2120 = vunpack.c.l.b16 %v2039
        %v2121 = vunpack.c.l.b16 %v2040
        %v2122 = vunpack.c.l.b16 %v2041
        %v2123 = vunpack.c.l.b16 %v2042
        %v2124 = vunpack.c.l.b16 %v2043
        %v2125 = vunpack.c.l.b16 %v2044
        %v2126 = vunpack.c.l.b16 %v2045
        %v2127 = vunpack.c.l.b16 %v2046
        %v2128 = vunpack.c.l.b16 %v2047
        %v2129 = vunpack.c.l.b16 %v2048
        %v2130 = vunpack.c.l.b16 %v2049
        %v2131 = vunpack.c.l.b16 %v2050
        %v2132 = vunpack.c.l.b16 %v2051
        %v2133 = vunpack.c.l.b16 %v2052
        %v2134 = vunpack.c.l.b16 %v2053
        %v2135 = vunpack.c.l.b16 %v2054
        %v2136 = vunpack.c.l.b16 %v2055
        %v2137 = vunpack.c.l.b16 %v2056
        %v2138 = vunpack.c.l.b16 %v2057
        %v2139 = vunpack.c.l.b16 %v2058
        %v2140 = vunpack.c.l.b16 %v2059
        %v2141 = vunpack.c.l.b16 %v2060
        %v2142 = vpack.c.b16 %v2111, %v2110
        %v2143 = vpack.c.b16 %v2113, %v2112
        %v2144 = vpack.c.b16 %v2115, %v2114
        %v2145 = vpack.c.b16 %v2117, %v2116
        %v2146 = vpack.c.b16 %v2119, %v2118
        %v2147 = vpack.c.b16 %v2121, %v2120
        %v2148 = vpack.c.b16 %v2123, %v2122
        %v2149 = vpack.c.b16 %v2125, %v2124
        %v2150 = vpack.c.b16 %v2127, %v2126
        %v2151 = vpack.c.b16 %v2129, %v2128
        %v2152 = vpack.c.b16 %v2131, %v2130
        %v2153 = vpack.c.b16 %v2133, %v2132
        %v2154 = vpack.c.b16 %v2135, %v2134
        %v2155 = vpack.c.b16 %v2137, %v2136
        %v2156 = vpack.c.b16 %v2139, %v2138
        %v2157 = vpack.c.b16 %v2141, %v2140
        %v2190 = vunpack.c.l.b16 %v2062
        %v2191 = vunpack.c.l.b16 %v2063
        %v2192 = vunpack.c.l.b16 %v2064
        %v2193 = vunpack.c.l.b16 %v2065
        %v2194 = vunpack.c.l.b16 %v2066
        %v2195 = vunpack.c.l.b16 %v2067
        %v2196 = vunpack.c.l.b16 %v2068
        %v2197 = vunpack.c.l.b16 %v2069
        %v2198 = vunpack.c.l.b16 %v2070
        %v2199 = vunpack.c.l.b16 %v2071
        %v2200 = vunpack.c.l.b16 %v2072
        %v2201 = vunpack.c.l.b16 %v2073
        %v2202 = vunpack.c.l.b16 %v2074
        %v2203 = vunpack.c.l.b16 %v2075
        %v2204 = vunpack.c.l.b16 %v2076
        %v2205 = vunpack.c.l.b16 %v2077
        %v2206 = vpack.c.b16 %v2191, %v2190
        %v2207 = vpack.c.b16 %v2193, %v2192
        %v2208 = vpack.c.b16 %v2195, %v2194
        %v2209 = vpack.c.b16 %v2197, %v2196
        %v2210 = vpack.c.b16 %v2199, %v2198
        %v2211 = vpack.c.b16 %v2201, %v2200
        %v2212 = vpack.c.b16 %v2203, %v2202
        %v2213 = vpack.c.b16 %v2205, %v2204
        %2222 = vmatprep.subr.bf16.mxu0 0
        %2223 = vmatpush1.bf16.msra.mxu0 %v2206
        %2224 = vmatprep.subr.bf16.mxu0 0
        %2225 = vmatpush1.bf16.msra.mxu0 %v2207
        %2226 = vmatprep.subr.bf16.mxu0 0
        %2227 = vmatpush1.bf16.msra.mxu0 %v2208
        %2228 = vmatprep.subr.bf16.mxu0 0
        %2229 = vmatpush1.bf16.msra.mxu0 %v2209
        %2230 = vmatprep.subr.bf16.mxu0 0
        %2231 = vmatpush1.bf16.msra.mxu0 %v2210
        %2232 = vmatprep.subr.bf16.mxu0 0
        %2233 = vmatpush1.bf16.msra.mxu0 %v2211
        %2234 = vmatprep.subr.bf16.mxu0 0
        %2235 = vmatpush1.bf16.msra.mxu0 %v2212
        %2236 = vmatprep.subr.bf16.mxu0 0
        %2237 = vmatpush1.bf16.msra.mxu0 %v2213
        %2238 = vmatprep.subr.bf16.mxu0 0
        %2239 = vmatpush1.bf16.msra.mxu0 0
        %2240 = vmatprep.subr.bf16.mxu0 0
        %2241 = vmatpush1.bf16.msra.mxu0 0
        %2242 = vmatprep.subr.bf16.mxu0 0
        %2243 = vmatpush1.bf16.msra.mxu0 0
        %2244 = vmatprep.subr.bf16.mxu0 0
        %2245 = vmatpush1.bf16.msra.mxu0 0
        %2246 = vmatprep.subr.bf16.mxu0 0
        %2247 = vmatpush1.bf16.msra.mxu0 0
        %2248 = vmatprep.subr.bf16.mxu0 0
        %2249 = vmatpush1.bf16.msra.mxu0 0
        %2250 = vmatprep.subr.bf16.mxu0 0
        %2251 = vmatpush1.bf16.msra.mxu0 0
        %2252 = vmatprep.subr.bf16.mxu0 0
        %2253 = vmatpush1.bf16.msra.mxu0 0
        %2254 = vmatprep.mubr.bf16.mxu0 0
        %2255 = vmatmul.mubr.bf16.gmra.mrb[0].mxu0 %v2142
        %v2256 = vpop.f32.mrb[0].mxu0
        %v2257 = vadd.f32 0.0, %v2256
        %v2258 = vpop.f32.mrb[0].mxu0
        %v2259 = vpop.f32.mrb[0].mxu0
        %v2260 = vadd.f32 0.0, %v2259
        %v2261 = vpop.f32.mrb[0].mxu0
        %2262 = vmatprep.mubr.bf16.mxu0 0
        %2263 = vmatmul.mubr.bf16.gmra.mrb[0].mxu0 %v2143
        %v2264 = vpop.f32.mrb[0].mxu0
        %v2265 = vadd.f32 0.0, %v2264
        %v2266 = vpop.f32.mrb[0].mxu0
        %v2267 = vpop.f32.mrb[0].mxu0
        %v2268 = vadd.f32 0.0, %v2267
        %v2269 = vpop.f32.mrb[0].mxu0
        %2270 = vmatprep.mubr.bf16.mxu0 0
        %2271 = vmatmul.mubr.bf16.gmra.mrb[0].mxu0 %v2144
        %v2272 = vpop.f32.mrb[0].mxu0
        %v2273 = vadd.f32 0.0, %v2272
        %v2274 = vpop.f32.mrb[0].mxu0
        %v2275 = vpop.f32.mrb[0].mxu0
        %v2276 = vadd.f32 0.0, %v2275
        %v2277 = vpop.f32.mrb[0].mxu0
        %2278 = vmatprep.mubr.bf16.mxu0 0
        %2279 = vmatmul.mubr.bf16.gmra.mrb[0].mxu0 %v2145
        %v2280 = vpop.f32.mrb[0].mxu0
        %v2281 = vadd.f32 0.0, %v2280
        %v2282 = vpop.f32.mrb[0].mxu0
        %v2283 = vpop.f32.mrb[0].mxu0
        %v2284 = vadd.f32 0.0, %v2283
        %v2285 = vpop.f32.mrb[0].mxu0
        %2286 = vmatprep.mubr.bf16.mxu0 0
        %2287 = vmatmul.mubr.bf16.gmra.mrb[0].mxu0 %v2146
        %v2288 = vpop.f32.mrb[0].mxu0
        %v2289 = vadd.f32 0.0, %v2288
        %v2290 = vpop.f32.mrb[0].mxu0
        %v2291 = vpop.f32.mrb[0].mxu0
        %v2292 = vadd.f32 0.0, %v2291
        %v2293 = vpop.f32.mrb[0].mxu0
        %2294 = vmatprep.mubr.bf16.mxu0 0
        %2295 = vmatmul.mubr.bf16.gmra.mrb[0].mxu0 %v2147
        %v2296 = vpop.f32.mrb[0].mxu0
        %v2297 = vadd.f32 0.0, %v2296
        %v2298 = vpop.f32.mrb[0].mxu0
        %v2299 = vpop.f32.mrb[0].mxu0
        %v2300 = vadd.f32 0.0, %v2299
        %v2301 = vpop.f32.mrb[0].mxu0
        %2302 = vmatprep.mubr.bf16.mxu0 0
        %2303 = vmatmul.mubr.bf16.gmra.mrb[0].mxu0 %v2148
        %v2304 = vpop.f32.mrb[0].mxu0
        %v2305 = vadd.f32 0.0, %v2304
        %v2306 = vpop.f32.mrb[0].mxu0
        %v2307 = vpop.f32.mrb[0].mxu0
        %v2308 = vadd.f32 0.0, %v2307
        %v2309 = vpop.f32.mrb[0].mxu0
        %2310 = vmatprep.mubr.bf16.mxu0 0
        %2311 = vmatmul.mubr.bf16.gmra.mrb[0].mxu0 %v2149
        %v2312 = vpop.f32.mrb[0].mxu0
        %v2313 = vadd.f32 0.0, %v2312
        %v2314 = vpop.f32.mrb[0].mxu0
        %v2315 = vpop.f32.mrb[0].mxu0
        %v2316 = vadd.f32 0.0, %v2315
        %v2317 = vpop.f32.mrb[0].mxu0
        %2318 = vmatprep.mubr.bf16.mxu0 0
        %2319 = vmatmul.mubr.bf16.gmra.mrb[0].mxu0 %v2150
        %v2320 = vpop.f32.mrb[0].mxu0
        %v2321 = vadd.f32 0.0, %v2320
        %v2322 = vpop.f32.mrb[0].mxu0
        %v2323 = vpop.f32.mrb[0].mxu0
        %v2324 = vadd.f32 0.0, %v2323
        %v2325 = vpop.f32.mrb[0].mxu0
        %2326 = vmatprep.mubr.bf16.mxu0 0
        %2327 = vmatmul.mubr.bf16.gmra.mrb[0].mxu0 %v2151
        %v2328 = vpop.f32.mrb[0].mxu0
        %v2329 = vadd.f32 0.0, %v2328
        %v2330 = vpop.f32.mrb[0].mxu0
        %v2331 = vpop.f32.mrb[0].mxu0
        %v2332 = vadd.f32 0.0, %v2331
        %v2333 = vpop.f32.mrb[0].mxu0
        %2334 = vmatprep.mubr.bf16.mxu0 0
        %2335 = vmatmul.mubr.bf16.gmra.mrb[0].mxu0 %v2152
        %v2336 = vpop.f32.mrb[0].mxu0
        %v2337 = vadd.f32 0.0, %v2336
        %v2338 = vpop.f32.mrb[0].mxu0
        %v2339 = vpop.f32.mrb[0].mxu0
        %v2340 = vadd.f32 0.0, %v2339
        %v2341 = vpop.f32.mrb[0].mxu0
        %2342 = vmatprep.mubr.bf16.mxu0 0
        %2343 = vmatmul.mubr.bf16.gmra.mrb[0].mxu0 %v2153
        %v2344 = vpop.f32.mrb[0].mxu0
        %v2345 = vadd.f32 0.0, %v2344
        %v2346 = vpop.f32.mrb[0].mxu0
        %v2347 = vpop.f32.mrb[0].mxu0
        %v2348 = vadd.f32 0.0, %v2347
        %v2349 = vpop.f32.mrb[0].mxu0
        %2350 = vmatprep.mubr.bf16.mxu0 0
        %2351 = vmatmul.mubr.bf16.gmra.mrb[0].mxu0 %v2154
        %v2352 = vpop.f32.mrb[0].mxu0
        %v2353 = vadd.f32 0.0, %v2352
        %v2354 = vpop.f32.mrb[0].mxu0
        %v2355 = vpop.f32.mrb[0].mxu0
        %v2356 = vadd.f32 0.0, %v2355
        %v2357 = vpop.f32.mrb[0].mxu0
        %2358 = vmatprep.mubr.bf16.mxu0 0
        %2359 = vmatmul.mubr.bf16.gmra.mrb[0].mxu0 %v2155
        %v2360 = vpop.f32.mrb[0].mxu0
        %v2361 = vadd.f32 0.0, %v2360
        %v2362 = vpop.f32.mrb[0].mxu0
        %v2363 = vpop.f32.mrb[0].mxu0
        %v2364 = vadd.f32 0.0, %v2363
        %v2365 = vpop.f32.mrb[0].mxu0
        %2366 = vmatprep.mubr.bf16.mxu0 0
        %2367 = vmatmul.mubr.bf16.gmra.mrb[0].mxu0 %v2156
        %v2368 = vpop.f32.mrb[0].mxu0
        %v2369 = vadd.f32 0.0, %v2368
        %v2370 = vpop.f32.mrb[0].mxu0
        %v2371 = vpop.f32.mrb[0].mxu0
        %v2372 = vadd.f32 0.0, %v2371
        %v2373 = vpop.f32.mrb[0].mxu0
        %2374 = vmatprep.mubr.bf16.mxu0 0
        %2375 = vmatmul.mubr.bf16.gmra.mrb[0].mxu0 %v2157
        %v2376 = vpop.f32.mrb[0].mxu0
        %v2377 = vadd.f32 0.0, %v2376
        %v2378 = vpop.f32.mrb[0].mxu0
        %v2379 = vpop.f32.mrb[0].mxu0
        %v2380 = vadd.f32 0.0, %v2379
        %v2381 = vpop.f32.mrb[0].mxu0
        %2382 = vdwg.mxu0
        %v2383 = vld [vmem:[#allocation2] sm:$0xff]
        %v2384 = vld [vmem:[#allocation2 + $0x8] sm:$0xff]
        %v2385 = vld [vmem:[#allocation2 + $0x10] sm:$0xff]
        %v2386 = vld [vmem:[#allocation2 + $0x18] sm:$0xff]
        %v2387 = vld [vmem:[#allocation2 + $0x20] sm:$0xff]
        %v2388 = vld [vmem:[#allocation2 + $0x28] sm:$0xff]
        %v2389 = vld [vmem:[#allocation2 + $0x30] sm:$0xff]
        %v2390 = vld [vmem:[#allocation2 + $0x38] sm:$0xff]
        %v2391 = vld [vmem:[#allocation2 + $0x40] sm:$0xff]
        %v2392 = vld [vmem:[#allocation2 + $0x48] sm:$0xff]
        %v2393 = vld [vmem:[#allocation2 + $0x50] sm:$0xff]
        %v2394 = vld [vmem:[#allocation2 + $0x58] sm:$0xff]
        %v2395 = vld [vmem:[#allocation2 + $0x60] sm:$0xff]
        %v2396 = vld [vmem:[#allocation2 + $0x68] sm:$0xff]
        %v2397 = vld [vmem:[#allocation2 + $0x70] sm:$0xff]
        %v2398 = vld [vmem:[#allocation2 + $0x78] sm:$0xff]
        %v2399 = vld [vmem:[#allocation2 + $0x80] sm:$0xff]
        %v2400 = vld [vmem:[#allocation2 + $0x88] sm:$0xff]
        %v2401 = vld [vmem:[#allocation2 + $0x90] sm:$0xff]
        %v2402 = vld [vmem:[#allocation2 + $0x98] sm:$0xff]
        %v2403 = vld [vmem:[#allocation2 + $0xa0] sm:$0xff]
        %v2404 = vld [vmem:[#allocation2 + $0xa8] sm:$0xff]
        %v2405 = vld [vmem:[#allocation2 + $0xb0] sm:$0xff]
        %v2406 = vld [vmem:[#allocation2 + $0xb8] sm:$0xff]
        %v2407 = vld [vmem:[#allocation2 + $0xc0] sm:$0xff]
        %v2408 = vld [vmem:[#allocation2 + $0xc8] sm:$0xff]
        %v2409 = vld [vmem:[#allocation2 + $0xd0] sm:$0xff]
        %v2410 = vld [vmem:[#allocation2 + $0xd8] sm:$0xff]
        %v2411 = vld [vmem:[#allocation2 + $0xe0] sm:$0xff]
        %v2412 = vld [vmem:[#allocation2 + $0xe8] sm:$0xff]
        %v2413 = vld [vmem:[#allocation2 + $0xf0] sm:$0xff]
        %v2414 = vld [vmem:[#allocation2 + $0xf8] sm:$0xff]
        %v2415 = vadd.f32 %v2383, %v2257
        %v2416 = vadd.f32 %v2384, %v2260
        %v2417 = vadd.f32 %v2385, %v2265
        %v2418 = vadd.f32 %v2386, %v2268
        %v2419 = vadd.f32 %v2387, %v2273
        %v2420 = vadd.f32 %v2388, %v2276
        %v2421 = vadd.f32 %v2389, %v2281
        %v2422 = vadd.f32 %v2390, %v2284
        %v2423 = vadd.f32 %v2391, %v2289
        %v2424 = vadd.f32 %v2392, %v2292
        %v2425 = vadd.f32 %v2393, %v2297
        %v2426 = vadd.f32 %v2394, %v2300
        %v2427 = vadd.f32 %v2395, %v2305
        %v2428 = vadd.f32 %v2396, %v2308
        %v2429 = vadd.f32 %v2397, %v2313
        %v2430 = vadd.f32 %v2398, %v2316
        %v2431 = vadd.f32 %v2399, %v2321
        %v2432 = vadd.f32 %v2400, %v2324
        %v2433 = vadd.f32 %v2401, %v2329
        %v2434 = vadd.f32 %v2402, %v2332
        %v2435 = vadd.f32 %v2403, %v2337
        %v2436 = vadd.f32 %v2404, %v2340
        %v2437 = vadd.f32 %v2405, %v2345
        %v2438 = vadd.f32 %v2406, %v2348
        %v2439 = vadd.f32 %v2407, %v2353
        %v2440 = vadd.f32 %v2408, %v2356
        %v2441 = vadd.f32 %v2409, %v2361
        %v2442 = vadd.f32 %v2410, %v2364
        %v2443 = vadd.f32 %v2411, %v2369
        %v2444 = vadd.f32 %v2412, %v2372
        %v2445 = vadd.f32 %v2413, %v2377
        %v2446 = vadd.f32 %v2414, %v2380
        %2447 = vst [vmem:[#allocation2] sm:$0xff] %v2415
        %2448 = vst [vmem:[#allocation2 + $0x8] sm:$0xff] %v2416
        %2449 = vst [vmem:[#allocation2 + $0x10] sm:$0xff] %v2417
        %2450 = vst [vmem:[#allocation2 + $0x18] sm:$0xff] %v2418
        %2451 = vst [vmem:[#allocation2 + $0x20] sm:$0xff] %v2419
        %2452 = vst [vmem:[#allocation2 + $0x28] sm:$0xff] %v2420
        %2453 = vst [vmem:[#allocation2 + $0x30] sm:$0xff] %v2421
        %2454 = vst [vmem:[#allocation2 + $0x38] sm:$0xff] %v2422
        %2455 = vst [vmem:[#allocation2 + $0x40] sm:$0xff] %v2423
        %2456 = vst [vmem:[#allocation2 + $0x48] sm:$0xff] %v2424
        %2457 = vst [vmem:[#allocation2 + $0x50] sm:$0xff] %v2425
        %2458 = vst [vmem:[#allocation2 + $0x58] sm:$0xff] %v2426
        %2459 = vst [vmem:[#allocation2 + $0x60] sm:$0xff] %v2427
        %2460 = vst [vmem:[#allocation2 + $0x68] sm:$0xff] %v2428
        %2461 = vst [vmem:[#allocation2 + $0x70] sm:$0xff] %v2429
        %2462 = vst [vmem:[#allocation2 + $0x78] sm:$0xff] %v2430
        %2463 = vst [vmem:[#allocation2 + $0x80] sm:$0xff] %v2431
        %2464 = vst [vmem:[#allocation2 + $0x88] sm:$0xff] %v2432
        %2465 = vst [vmem:[#allocation2 + $0x90] sm:$0xff] %v2433
        %2466 = vst [vmem:[#allocation2 + $0x98] sm:$0xff] %v2434
        %2467 = vst [vmem:[#allocation2 + $0xa0] sm:$0xff] %v2435
        %2468 = vst [vmem:[#allocation2 + $0xa8] sm:$0xff] %v2436
        %2469 = vst [vmem:[#allocation2 + $0xb0] sm:$0xff] %v2437
        %2470 = vst [vmem:[#allocation2 + $0xb8] sm:$0xff] %v2438
        %2471 = vst [vmem:[#allocation2 + $0xc0] sm:$0xff] %v2439
        %2472 = vst [vmem:[#allocation2 + $0xc8] sm:$0xff] %v2440
        %2473 = vst [vmem:[#allocation2 + $0xd0] sm:$0xff] %v2441
        %2474 = vst [vmem:[#allocation2 + $0xd8] sm:$0xff] %v2442
        %2475 = vst [vmem:[#allocation2 + $0xe0] sm:$0xff] %v2443
        %2476 = vst [vmem:[#allocation2 + $0xe8] sm:$0xff] %v2444
        %2477 = vst [vmem:[#allocation2 + $0xf0] sm:$0xff] %v2445
        %2478 = vst [vmem:[#allocation2 + $0xf8] sm:$0xff] %v2446
        %v2479 = vld [vmem:[%s2028] sm:$0xf]
        %v2480 = vld [vmem:[%s2028 + $0x4] sm:$0xf]
        %v2481 = vld [vmem:[%s2028 + $0x8] sm:$0x1]
        %v2482 = vld [vmem:[%s2028 + $0xc] sm:$0xf]
        %v2483 = vld [vmem:[%s2028 + $0x10] sm:$0xf]
        %v2484 = vld [vmem:[%s2028 + $0x14] sm:$0x1]
        %v2485 = vld [vmem:[%s2028 + $0x18] sm:$0xf]
        %v2486 = vld [vmem:[%s2028 + $0x1c] sm:$0xf]
        %v2487 = vld [vmem:[%s2028 + $0x20] sm:$0x1]
        %v2488 = vld [vmem:[%s2028 + $0x24] sm:$0xf]
        %v2489 = vld [vmem:[%s2028 + $0x28] sm:$0xf]
        %v2490 = vld [vmem:[%s2028 + $0x2c] sm:$0x1]
        %v2491 = vld [vmem:[%s2028 + $0x30] sm:$0xf]
        %v2492 = vld [vmem:[%s2028 + $0x34] sm:$0xf]
        %v2493 = vld [vmem:[%s2028 + $0x38] sm:$0x1]
        %v2494 = vld [vmem:[%s2028 + $0x3c] sm:$0xf]
        %v2495 = vld [vmem:[%s2028 + $0x40] sm:$0xf]
        %v2496 = vld [vmem:[%s2028 + $0x44] sm:$0x1]
        %v2497 = vld [vmem:[%s2028 + $0x48] sm:$0xf]
        %v2498 = vld [vmem:[%s2028 + $0x4c] sm:$0xf]
        %v2499 = vld [vmem:[%s2028 + $0x50] sm:$0x1]
        %v2500 = vld [vmem:[%s2028 + $0x54] sm:$0xf]
        %v2501 = vld [vmem:[%s2028 + $0x58] sm:$0xf]
        %v2502 = vld [vmem:[%s2028 + $0x5c] sm:$0x1]
        %v2503 = vld [vmem:[%s2028 + $0x60] sm:$0xf]
        %v2504 = vld [vmem:[%s2028 + $0x64] sm:$0xf]
        %v2505 = vld [vmem:[%s2028 + $0x68] sm:$0x1]
        %v2506 = vld [vmem:[%s2028 + $0x6c] sm:$0xf]
        %v2507 = vld [vmem:[%s2028 + $0x70] sm:$0xf]
        %v2508 = vld [vmem:[%s2028 + $0x74] sm:$0x1]
        %v2509 = vld [vmem:[%s2028 + $0x78] sm:$0xf]
        %v2510 = vld [vmem:[%s2028 + $0x7c] sm:$0xf]
        %v2511 = vld [vmem:[%s2028 + $0x80] sm:$0x1]
        %v2512 = vld [vmem:[%s2028 + $0x84] sm:$0xf]
        %v2513 = vld [vmem:[%s2028 + $0x88] sm:$0xf]
        %v2514 = vld [vmem:[%s2028 + $0x8c] sm:$0x1]
        %v2515 = vld [vmem:[%s2028 + $0x90] sm:$0xf]
        %v2516 = vld [vmem:[%s2028 + $0x94] sm:$0xf]
        %v2517 = vld [vmem:[%s2028 + $0x98] sm:$0x1]
        %v2518 = vld [vmem:[%s2028 + $0x9c] sm:$0xf]
        %v2519 = vld [vmem:[%s2028 + $0xa0] sm:$0xf]
        %v2520 = vld [vmem:[%s2028 + $0xa4] sm:$0x1]
        %v2521 = vld [vmem:[%s2028 + $0xa8] sm:$0xf]
        %v2522 = vld [vmem:[%s2028 + $0xac] sm:$0xf]
        %v2523 = vld [vmem:[%s2028 + $0xb0] sm:$0x1]
        %v2524 = vld [vmem:[%s2028 + $0xb4] sm:$0xf]
        %v2525 = vld [vmem:[%s2028 + $0xb8] sm:$0xf]
        %v2526 = vld [vmem:[%s2028 + $0xbc] sm:$0x1]
        %v2528 = vshrl.u32 %v2479, 16
        %v2530 = vrot.slane %v2528, 4
        %v2531 = vshll.u32 %v2479, 16
        %v2533 = vrot.slane %v2531, 5
        %v2534 = vor.u32 %v2530, %v2533
        %v2535 = vrot.slane %v2534, 4
        %v2537 = vshll.u32 %v2480, 16
        %v2539 = vrot.slane %v2537, 5
        %v2540 = vsel %vm660, %v2535, %v2539
        %v2541 = vshrl.u32 %v2480, 16
        %v2543 = vrot.slane %v2541, 4
        %v2544 = vor.u32 %v2543, %v2539
        %v2545 = vrot.slane %v2544, 4
        %v2547 = vshll.u32 %v2481, 16
        %v2549 = vrot.slane %v2547, 5
        %v2550 = vsel %vm660, %v2545, %v2549
        %v2552 = vshrl.u32 %v2482, 16
        %v2554 = vrot.slane %v2552, 4
        %v2555 = vshll.u32 %v2482, 16
        %v2557 = vrot.slane %v2555, 5
        %v2558 = vor.u32 %v2554, %v2557
        %v2559 = vrot.slane %v2558, 4
        %v2561 = vshll.u32 %v2483, 16
        %v2563 = vrot.slane %v2561, 5
        %v2564 = vsel %vm660, %v2559, %v2563
        %v2565 = vshrl.u32 %v2483, 16
        %v2567 = vrot.slane %v2565, 4
        %v2568 = vor.u32 %v2567, %v2563
        %v2569 = vrot.slane %v2568, 4
        %v2571 = vshll.u32 %v2484, 16
        %v2573 = vrot.slane %v2571, 5
        %v2574 = vsel %vm660, %v2569, %v2573
        %v2576 = vshrl.u32 %v2485, 16
        %v2578 = vrot.slane %v2576, 4
        %v2579 = vshll.u32 %v2485, 16
        %v2581 = vrot.slane %v2579, 5
        %v2582 = vor.u32 %v2578, %v2581
        %v2583 = vrot.slane %v2582, 4
        %v2585 = vshll.u32 %v2486, 16
        %v2587 = vrot.slane %v2585, 5
        %v2588 = vsel %vm660, %v2583, %v2587
        %v2589 = vshrl.u32 %v2486, 16
        %v2591 = vrot.slane %v2589, 4
        %v2592 = vor.u32 %v2591, %v2587
        %v2593 = vrot.slane %v2592, 4
        %v2595 = vshll.u32 %v2487, 16
        %v2597 = vrot.slane %v2595, 5
        %v2598 = vsel %vm660, %v2593, %v2597
        %v2600 = vshrl.u32 %v2488, 16
        %v2602 = vrot.slane %v2600, 4
        %v2603 = vshll.u32 %v2488, 16
        %v2605 = vrot.slane %v2603, 5
        %v2606 = vor.u32 %v2602, %v2605
        %v2607 = vrot.slane %v2606, 4
        %v2609 = vshll.u32 %v2489, 16
        %v2611 = vrot.slane %v2609, 5
        %v2612 = vsel %vm660, %v2607, %v2611
        %v2613 = vshrl.u32 %v2489, 16
        %v2615 = vrot.slane %v2613, 4
        %v2616 = vor.u32 %v2615, %v2611
        %v2617 = vrot.slane %v2616, 4
        %v2619 = vshll.u32 %v2490, 16
        %v2621 = vrot.slane %v2619, 5
        %v2622 = vsel %vm660, %v2617, %v2621
        %v2624 = vshrl.u32 %v2491, 16
        %v2626 = vrot.slane %v2624, 4
        %v2627 = vshll.u32 %v2491, 16
        %v2629 = vrot.slane %v2627, 5
        %v2630 = vor.u32 %v2626, %v2629
        %v2631 = vrot.slane %v2630, 4
        %v2633 = vshll.u32 %v2492, 16
        %v2635 = vrot.slane %v2633, 5
        %v2636 = vsel %vm660, %v2631, %v2635
        %v2637 = vshrl.u32 %v2492, 16
        %v2639 = vrot.slane %v2637, 4
        %v2640 = vor.u32 %v2639, %v2635
        %v2641 = vrot.slane %v2640, 4
        %v2643 = vshll.u32 %v2493, 16
        %v2645 = vrot.slane %v2643, 5
        %v2646 = vsel %vm660, %v2641, %v2645
        %v2648 = vshrl.u32 %v2494, 16
        %v2650 = vrot.slane %v2648, 4
        %v2651 = vshll.u32 %v2494, 16
        %v2653 = vrot.slane %v2651, 5
        %v2654 = vor.u32 %v2650, %v2653
        %v2655 = vrot.slane %v2654, 4
        %v2657 = vshll.u32 %v2495, 16
        %v2659 = vrot.slane %v2657, 5
        %v2660 = vsel %vm660, %v2655, %v2659
        %v2661 = vshrl.u32 %v2495, 16
        %v2663 = vrot.slane %v2661, 4
        %v2664 = vor.u32 %v2663, %v2659
        %v2665 = vrot.slane %v2664, 4
        %v2667 = vshll.u32 %v2496, 16
        %v2669 = vrot.slane %v2667, 5
        %v2670 = vsel %vm660, %v2665, %v2669
        %v2672 = vshrl.u32 %v2497, 16
        %v2674 = vrot.slane %v2672, 4
        %v2675 = vshll.u32 %v2497, 16
        %v2677 = vrot.slane %v2675, 5
        %v2678 = vor.u32 %v2674, %v2677
        %v2679 = vrot.slane %v2678, 4
        %v2681 = vshll.u32 %v2498, 16
        %v2683 = vrot.slane %v2681, 5
        %v2684 = vsel %vm660, %v2679, %v2683
        %v2685 = vshrl.u32 %v2498, 16
        %v2687 = vrot.slane %v2685, 4
        %v2688 = vor.u32 %v2687, %v2683
        %v2689 = vrot.slane %v2688, 4
        %v2691 = vshll.u32 %v2499, 16
        %v2693 = vrot.slane %v2691, 5
        %v2694 = vsel %vm660, %v2689, %v2693
        %v2696 = vshrl.u32 %v2500, 16
        %v2698 = vrot.slane %v2696, 4
        %v2699 = vshll.u32 %v2500, 16
        %v2701 = vrot.slane %v2699, 5
        %v2702 = vor.u32 %v2698, %v2701
        %v2703 = vrot.slane %v2702, 4
        %v2705 = vshll.u32 %v2501, 16
        %v2707 = vrot.slane %v2705, 5
        %v2708 = vsel %vm660, %v2703, %v2707
        %v2709 = vshrl.u32 %v2501, 16
        %v2711 = vrot.slane %v2709, 4
        %v2712 = vor.u32 %v2711, %v2707
        %v2713 = vrot.slane %v2712, 4
        %v2715 = vshll.u32 %v2502, 16
        %v2717 = vrot.slane %v2715, 5
        %v2718 = vsel %vm660, %v2713, %v2717
        %v2720 = vshrl.u32 %v2503, 16
        %v2722 = vrot.slane %v2720, 4
        %v2723 = vshll.u32 %v2503, 16
        %v2725 = vrot.slane %v2723, 5
        %v2726 = vor.u32 %v2722, %v2725
        %v2727 = vrot.slane %v2726, 4
        %v2729 = vshll.u32 %v2504, 16
        %v2731 = vrot.slane %v2729, 5
        %v2732 = vsel %vm660, %v2727, %v2731
        %v2733 = vshrl.u32 %v2504, 16
        %v2735 = vrot.slane %v2733, 4
        %v2736 = vor.u32 %v2735, %v2731
        %v2737 = vrot.slane %v2736, 4
        %v2739 = vshll.u32 %v2505, 16
        %v2741 = vrot.slane %v2739, 5
        %v2742 = vsel %vm660, %v2737, %v2741
        %v2744 = vshrl.u32 %v2506, 16
        %v2746 = vrot.slane %v2744, 4
        %v2747 = vshll.u32 %v2506, 16
        %v2749 = vrot.slane %v2747, 5
        %v2750 = vor.u32 %v2746, %v2749
        %v2751 = vrot.slane %v2750, 4
        %v2753 = vshll.u32 %v2507, 16
        %v2755 = vrot.slane %v2753, 5
        %v2756 = vsel %vm660, %v2751, %v2755
        %v2757 = vshrl.u32 %v2507, 16
        %v2759 = vrot.slane %v2757, 4
        %v2760 = vor.u32 %v2759, %v2755
        %v2761 = vrot.slane %v2760, 4
        %v2763 = vshll.u32 %v2508, 16
        %v2765 = vrot.slane %v2763, 5
        %v2766 = vsel %vm660, %v2761, %v2765
        %v2768 = vshrl.u32 %v2509, 16
        %v2770 = vrot.slane %v2768, 4
        %v2771 = vshll.u32 %v2509, 16
        %v2773 = vrot.slane %v2771, 5
        %v2774 = vor.u32 %v2770, %v2773
        %v2775 = vrot.slane %v2774, 4
        %v2777 = vshll.u32 %v2510, 16
        %v2779 = vrot.slane %v2777, 5
        %v2780 = vsel %vm660, %v2775, %v2779
        %v2781 = vshrl.u32 %v2510, 16
        %v2783 = vrot.slane %v2781, 4
        %v2784 = vor.u32 %v2783, %v2779
        %v2785 = vrot.slane %v2784, 4
        %v2787 = vshll.u32 %v2511, 16
        %v2789 = vrot.slane %v2787, 5
        %v2790 = vsel %vm660, %v2785, %v2789
        %v2792 = vshrl.u32 %v2512, 16
        %v2794 = vrot.slane %v2792, 4
        %v2795 = vshll.u32 %v2512, 16
        %v2797 = vrot.slane %v2795, 5
        %v2798 = vor.u32 %v2794, %v2797
        %v2799 = vrot.slane %v2798, 4
        %v2801 = vshll.u32 %v2513, 16
        %v2803 = vrot.slane %v2801, 5
        %v2804 = vsel %vm660, %v2799, %v2803
        %v2805 = vshrl.u32 %v2513, 16
        %v2807 = vrot.slane %v2805, 4
        %v2808 = vor.u32 %v2807, %v2803
        %v2809 = vrot.slane %v2808, 4
        %v2811 = vshll.u32 %v2514, 16
        %v2813 = vrot.slane %v2811, 5
        %v2814 = vsel %vm660, %v2809, %v2813
        %v2816 = vshrl.u32 %v2515, 16
        %v2818 = vrot.slane %v2816, 4
        %v2819 = vshll.u32 %v2515, 16
        %v2821 = vrot.slane %v2819, 5
        %v2822 = vor.u32 %v2818, %v2821
        %v2823 = vrot.slane %v2822, 4
        %v2825 = vshll.u32 %v2516, 16
        %v2827 = vrot.slane %v2825, 5
        %v2828 = vsel %vm660, %v2823, %v2827
        %v2829 = vshrl.u32 %v2516, 16
        %v2831 = vrot.slane %v2829, 4
        %v2832 = vor.u32 %v2831, %v2827
        %v2833 = vrot.slane %v2832, 4
        %v2835 = vshll.u32 %v2517, 16
        %v2837 = vrot.slane %v2835, 5
        %v2838 = vsel %vm660, %v2833, %v2837
        %v2840 = vshrl.u32 %v2518, 16
        %v2842 = vrot.slane %v2840, 4
        %v2843 = vshll.u32 %v2518, 16
        %v2845 = vrot.slane %v2843, 5
        %v2846 = vor.u32 %v2842, %v2845
        %v2847 = vrot.slane %v2846, 4
        %v2849 = vshll.u32 %v2519, 16
        %v2851 = vrot.slane %v2849, 5
        %v2852 = vsel %vm660, %v2847, %v2851
        %v2853 = vshrl.u32 %v2519, 16
        %v2855 = vrot.slane %v2853, 4
        %v2856 = vor.u32 %v2855, %v2851
        %v2857 = vrot.slane %v2856, 4
        %v2859 = vshll.u32 %v2520, 16
        %v2861 = vrot.slane %v2859, 5
        %v2862 = vsel %vm660, %v2857, %v2861
        %v2864 = vshrl.u32 %v2521, 16
        %v2866 = vrot.slane %v2864, 4
        %v2867 = vshll.u32 %v2521, 16
        %v2869 = vrot.slane %v2867, 5
        %v2870 = vor.u32 %v2866, %v2869
        %v2871 = vrot.slane %v2870, 4
        %v2873 = vshll.u32 %v2522, 16
        %v2875 = vrot.slane %v2873, 5
        %v2876 = vsel %vm660, %v2871, %v2875
        %v2877 = vshrl.u32 %v2522, 16
        %v2879 = vrot.slane %v2877, 4
        %v2880 = vor.u32 %v2879, %v2875
        %v2881 = vrot.slane %v2880, 4
        %v2883 = vshll.u32 %v2523, 16
        %v2885 = vrot.slane %v2883, 5
        %v2886 = vsel %vm660, %v2881, %v2885
        %v2888 = vshrl.u32 %v2524, 16
        %v2890 = vrot.slane %v2888, 4
        %v2891 = vshll.u32 %v2524, 16
        %v2893 = vrot.slane %v2891, 5
        %v2894 = vor.u32 %v2890, %v2893
        %v2895 = vrot.slane %v2894, 4
        %v2897 = vshll.u32 %v2525, 16
        %v2899 = vrot.slane %v2897, 5
        %v2900 = vsel %vm660, %v2895, %v2899
        %v2901 = vshrl.u32 %v2525, 16
        %v2903 = vrot.slane %v2901, 4
        %v2904 = vor.u32 %v2903, %v2899
        %v2905 = vrot.slane %v2904, 4
        %v2907 = vshll.u32 %v2526, 16
        %v2909 = vrot.slane %v2907, 5
        %v2910 = vsel %vm660, %v2905, %v2909
        %s2911 = scalar_lea.vmem %s1, 256
        %v2912 = vld [vmem:[%s2911] sm:$0xf]
        %v2913 = vld [vmem:[%s2911 + $0x4] sm:$0xf]
        %v2914 = vld [vmem:[%s2911 + $0x8] sm:$0xf]
        %v2915 = vld [vmem:[%s2911 + $0xc] sm:$0xf]
        %v2916 = vld [vmem:[%s2911 + $0x10] sm:$0xf]
        %v2917 = vld [vmem:[%s2911 + $0x14] sm:$0xf]
        %v2918 = vld [vmem:[%s2911 + $0x18] sm:$0xf]
        %v2919 = vld [vmem:[%s2911 + $0x1c] sm:$0xf]
        %v2920 = vld [vmem:[%s2911 + $0x20] sm:$0xf]
        %v2921 = vld [vmem:[%s2911 + $0x24] sm:$0xf]
        %v2922 = vld [vmem:[%s2911 + $0x28] sm:$0xf]
        %v2923 = vld [vmem:[%s2911 + $0x2c] sm:$0xf]
        %v2924 = vld [vmem:[%s2911 + $0x30] sm:$0xf]
        %v2925 = vld [vmem:[%s2911 + $0x34] sm:$0xf]
        %v2926 = vld [vmem:[%s2911 + $0x38] sm:$0xf]
        %v2927 = vld [vmem:[%s2911 + $0x3c] sm:$0xf]
        %v2928 = vunpack.c.l.b16 %v2540
        %v2929 = vunpack.c.l.b16 %v2550
        %v2930 = vunpack.c.l.b16 %v2564
        %v2931 = vunpack.c.l.b16 %v2574
        %v2932 = vunpack.c.l.b16 %v2588
        %v2933 = vunpack.c.l.b16 %v2598
        %v2934 = vunpack.c.l.b16 %v2612
        %v2935 = vunpack.c.l.b16 %v2622
        %v2936 = vunpack.c.l.b16 %v2636
        %v2937 = vunpack.c.l.b16 %v2646
        %v2938 = vunpack.c.l.b16 %v2660
        %v2939 = vunpack.c.l.b16 %v2670
        %v2940 = vunpack.c.l.b16 %v2684
        %v2941 = vunpack.c.l.b16 %v2694
        %v2942 = vunpack.c.l.b16 %v2708
        %v2943 = vunpack.c.l.b16 %v2718
        %v2944 = vunpack.c.l.b16 %v2732
        %v2945 = vunpack.c.l.b16 %v2742
        %v2946 = vunpack.c.l.b16 %v2756
        %v2947 = vunpack.c.l.b16 %v2766
        %v2948 = vunpack.c.l.b16 %v2780
        %v2949 = vunpack.c.l.b16 %v2790
        %v2950 = vunpack.c.l.b16 %v2804
        %v2951 = vunpack.c.l.b16 %v2814
        %v2952 = vunpack.c.l.b16 %v2828
        %v2953 = vunpack.c.l.b16 %v2838
        %v2954 = vunpack.c.l.b16 %v2852
        %v2955 = vunpack.c.l.b16 %v2862
        %v2956 = vunpack.c.l.b16 %v2876
        %v2957 = vunpack.c.l.b16 %v2886
        %v2958 = vunpack.c.l.b16 %v2900
        %v2959 = vunpack.c.l.b16 %v2910
        %v2960 = vpack.c.b16 %v2929, %v2928
        %v2961 = vpack.c.b16 %v2931, %v2930
        %v2962 = vpack.c.b16 %v2933, %v2932
        %v2963 = vpack.c.b16 %v2935, %v2934
        %v2964 = vpack.c.b16 %v2937, %v2936
        %v2965 = vpack.c.b16 %v2939, %v2938
        %v2966 = vpack.c.b16 %v2941, %v2940
        %v2967 = vpack.c.b16 %v2943, %v2942
        %v2968 = vpack.c.b16 %v2945, %v2944
        %v2969 = vpack.c.b16 %v2947, %v2946
        %v2970 = vpack.c.b16 %v2949, %v2948
        %v2971 = vpack.c.b16 %v2951, %v2950
        %v2972 = vpack.c.b16 %v2953, %v2952
        %v2973 = vpack.c.b16 %v2955, %v2954
        %v2974 = vpack.c.b16 %v2957, %v2956
        %v2975 = vpack.c.b16 %v2959, %v2958
        %v3008 = vunpack.c.l.b16 %v2912
        %v3009 = vunpack.c.l.b16 %v2913
        %v3010 = vunpack.c.l.b16 %v2914
        %v3011 = vunpack.c.l.b16 %v2915
        %v3012 = vunpack.c.l.b16 %v2916
        %v3013 = vunpack.c.l.b16 %v2917
        %v3014 = vunpack.c.l.b16 %v2918
        %v3015 = vunpack.c.l.b16 %v2919
        %v3016 = vunpack.c.l.b16 %v2920
        %v3017 = vunpack.c.l.b16 %v2921
        %v3018 = vunpack.c.l.b16 %v2922
        %v3019 = vunpack.c.l.b16 %v2923
        %v3020 = vunpack.c.l.b16 %v2924
        %v3021 = vunpack.c.l.b16 %v2925
        %v3022 = vunpack.c.l.b16 %v2926
        %v3023 = vunpack.c.l.b16 %v2927
        %v3024 = vpack.c.b16 %v3009, %v3008
        %v3025 = vpack.c.b16 %v3011, %v3010
        %v3026 = vpack.c.b16 %v3013, %v3012
        %v3027 = vpack.c.b16 %v3015, %v3014
        %v3028 = vpack.c.b16 %v3017, %v3016
        %v3029 = vpack.c.b16 %v3019, %v3018
        %v3030 = vpack.c.b16 %v3021, %v3020
        %v3031 = vpack.c.b16 %v3023, %v3022
        %3040 = vmatprep.subr.bf16.mxu0 0
        %3041 = vmatpush1.bf16.msra.mxu0 %v3024
        %3042 = vmatprep.subr.bf16.mxu0 0
        %3043 = vmatpush1.bf16.msra.mxu0 %v3025
        %3044 = vmatprep.subr.bf16.mxu0 0
        %3045 = vmatpush1.bf16.msra.mxu0 %v3026
        %3046 = vmatprep.subr.bf16.mxu0 0
        %3047 = vmatpush1.bf16.msra.mxu0 %v3027
        %3048 = vmatprep.subr.bf16.mxu0 0
        %3049 = vmatpush1.bf16.msra.mxu0 %v3028
        %3050 = vmatprep.subr.bf16.mxu0 0
        %3051 = vmatpush1.bf16.msra.mxu0 %v3029
        %3052 = vmatprep.subr.bf16.mxu0 0
        %3053 = vmatpush1.bf16.msra.mxu0 %v3030
        %3054 = vmatprep.subr.bf16.mxu0 0
        %3055 = vmatpush1.bf16.msra.mxu0 %v3031
        %3056 = vmatprep.subr.bf16.mxu0 0
        %3057 = vmatpush1.bf16.msra.mxu0 0
        %3058 = vmatprep.subr.bf16.mxu0 0
        %3059 = vmatpush1.bf16.msra.mxu0 0
        %3060 = vmatprep.subr.bf16.mxu0 0
        %3061 = vmatpush1.bf16.msra.mxu0 0
        %3062 = vmatprep.subr.bf16.mxu0 0
        %3063 = vmatpush1.bf16.msra.mxu0 0
        %3064 = vmatprep.subr.bf16.mxu0 0
        %3065 = vmatpush1.bf16.msra.mxu0 0
        %3066 = vmatprep.subr.bf16.mxu0 0
        %3067 = vmatpush1.bf16.msra.mxu0 0
        %3068 = vmatprep.subr.bf16.mxu0 0
        %3069 = vmatpush1.bf16.msra.mxu0 0
        %3070 = vmatprep.subr.bf16.mxu0 0
        %3071 = vmatpush1.bf16.msra.mxu0 0
        %3072 = vmatprep.mubr.bf16.mxu0 0
        %3073 = vmatmul.mubr.bf16.gmra.mrb[0].mxu0 %v2960
        %v3074 = vpop.f32.mrb[0].mxu0
        %v3075 = vadd.f32 0.0, %v3074
        %v3076 = vpop.f32.mrb[0].mxu0
        %v3077 = vpop.f32.mrb[0].mxu0
        %v3078 = vadd.f32 0.0, %v3077
        %v3079 = vpop.f32.mrb[0].mxu0
        %3080 = vmatprep.mubr.bf16.mxu0 0
        %3081 = vmatmul.mubr.bf16.gmra.mrb[0].mxu0 %v2961
        %v3082 = vpop.f32.mrb[0].mxu0
        %v3083 = vadd.f32 0.0, %v3082
        %v3084 = vpop.f32.mrb[0].mxu0
        %v3085 = vpop.f32.mrb[0].mxu0
        %v3086 = vadd.f32 0.0, %v3085
        %v3087 = vpop.f32.mrb[0].mxu0
        %3088 = vmatprep.mubr.bf16.mxu0 0
        %3089 = vmatmul.mubr.bf16.gmra.mrb[0].mxu0 %v2962
        %v3090 = vpop.f32.mrb[0].mxu0
        %v3091 = vadd.f32 0.0, %v3090
        %v3092 = vpop.f32.mrb[0].mxu0
        %v3093 = vpop.f32.mrb[0].mxu0
        %v3094 = vadd.f32 0.0, %v3093
        %v3095 = vpop.f32.mrb[0].mxu0
        %3096 = vmatprep.mubr.bf16.mxu0 0
        %3097 = vmatmul.mubr.bf16.gmra.mrb[0].mxu0 %v2963
        %v3098 = vpop.f32.mrb[0].mxu0
        %v3099 = vadd.f32 0.0, %v3098
        %v3100 = vpop.f32.mrb[0].mxu0
        %v3101 = vpop.f32.mrb[0].mxu0
        %v3102 = vadd.f32 0.0, %v3101
        %v3103 = vpop.f32.mrb[0].mxu0
        %3104 = vmatprep.mubr.bf16.mxu0 0
        %3105 = vmatmul.mubr.bf16.gmra.mrb[0].mxu0 %v2964
        %v3106 = vpop.f32.mrb[0].mxu0
        %v3107 = vadd.f32 0.0, %v3106
        %v3108 = vpop.f32.mrb[0].mxu0
        %v3109 = vpop.f32.mrb[0].mxu0
        %v3110 = vadd.f32 0.0, %v3109
        %v3111 = vpop.f32.mrb[0].mxu0
        %3112 = vmatprep.mubr.bf16.mxu0 0
        %3113 = vmatmul.mubr.bf16.gmra.mrb[0].mxu0 %v2965
        %v3114 = vpop.f32.mrb[0].mxu0
        %v3115 = vadd.f32 0.0, %v3114
        %v3116 = vpop.f32.mrb[0].mxu0
        %v3117 = vpop.f32.mrb[0].mxu0
        %v3118 = vadd.f32 0.0, %v3117
        %v3119 = vpop.f32.mrb[0].mxu0
        %3120 = vmatprep.mubr.bf16.mxu0 0
        %3121 = vmatmul.mubr.bf16.gmra.mrb[0].mxu0 %v2966
        %v3122 = vpop.f32.mrb[0].mxu0
        %v3123 = vadd.f32 0.0, %v3122
        %v3124 = vpop.f32.mrb[0].mxu0
        %v3125 = vpop.f32.mrb[0].mxu0
        %v3126 = vadd.f32 0.0, %v3125
        %v3127 = vpop.f32.mrb[0].mxu0
        %3128 = vmatprep.mubr.bf16.mxu0 0
        %3129 = vmatmul.mubr.bf16.gmra.mrb[0].mxu0 %v2967
        %v3130 = vpop.f32.mrb[0].mxu0
        %v3131 = vadd.f32 0.0, %v3130
        %v3132 = vpop.f32.mrb[0].mxu0
        %v3133 = vpop.f32.mrb[0].mxu0
        %v3134 = vadd.f32 0.0, %v3133
        %v3135 = vpop.f32.mrb[0].mxu0
        %3136 = vmatprep.mubr.bf16.mxu0 0
        %3137 = vmatmul.mubr.bf16.gmra.mrb[0].mxu0 %v2968
        %v3138 = vpop.f32.mrb[0].mxu0
        %v3139 = vadd.f32 0.0, %v3138
        %v3140 = vpop.f32.mrb[0].mxu0
        %v3141 = vpop.f32.mrb[0].mxu0
        %v3142 = vadd.f32 0.0, %v3141
        %v3143 = vpop.f32.mrb[0].mxu0
        %3144 = vmatprep.mubr.bf16.mxu0 0
        %3145 = vmatmul.mubr.bf16.gmra.mrb[0].mxu0 %v2969
        %v3146 = vpop.f32.mrb[0].mxu0
        %v3147 = vadd.f32 0.0, %v3146
        %v3148 = vpop.f32.mrb[0].mxu0
        %v3149 = vpop.f32.mrb[0].mxu0
        %v3150 = vadd.f32 0.0, %v3149
        %v3151 = vpop.f32.mrb[0].mxu0
        %3152 = vmatprep.mubr.bf16.mxu0 0
        %3153 = vmatmul.mubr.bf16.gmra.mrb[0].mxu0 %v2970
        %v3154 = vpop.f32.mrb[0].mxu0
        %v3155 = vadd.f32 0.0, %v3154
        %v3156 = vpop.f32.mrb[0].mxu0
        %v3157 = vpop.f32.mrb[0].mxu0
        %v3158 = vadd.f32 0.0, %v3157
        %v3159 = vpop.f32.mrb[0].mxu0
        %3160 = vmatprep.mubr.bf16.mxu0 0
        %3161 = vmatmul.mubr.bf16.gmra.mrb[0].mxu0 %v2971
        %v3162 = vpop.f32.mrb[0].mxu0
        %v3163 = vadd.f32 0.0, %v3162
        %v3164 = vpop.f32.mrb[0].mxu0
        %v3165 = vpop.f32.mrb[0].mxu0
        %v3166 = vadd.f32 0.0, %v3165
        %v3167 = vpop.f32.mrb[0].mxu0
        %3168 = vmatprep.mubr.bf16.mxu0 0
        %3169 = vmatmul.mubr.bf16.gmra.mrb[0].mxu0 %v2972
        %v3170 = vpop.f32.mrb[0].mxu0
        %v3171 = vadd.f32 0.0, %v3170
        %v3172 = vpop.f32.mrb[0].mxu0
        %v3173 = vpop.f32.mrb[0].mxu0
        %v3174 = vadd.f32 0.0, %v3173
        %v3175 = vpop.f32.mrb[0].mxu0
        %3176 = vmatprep.mubr.bf16.mxu0 0
        %3177 = vmatmul.mubr.bf16.gmra.mrb[0].mxu0 %v2973
        %v3178 = vpop.f32.mrb[0].mxu0
        %v3179 = vadd.f32 0.0, %v3178
        %v3180 = vpop.f32.mrb[0].mxu0
        %v3181 = vpop.f32.mrb[0].mxu0
        %v3182 = vadd.f32 0.0, %v3181
        %v3183 = vpop.f32.mrb[0].mxu0
        %3184 = vmatprep.mubr.bf16.mxu0 0
        %3185 = vmatmul.mubr.bf16.gmra.mrb[0].mxu0 %v2974
        %v3186 = vpop.f32.mrb[0].mxu0
        %v3187 = vadd.f32 0.0, %v3186
        %v3188 = vpop.f32.mrb[0].mxu0
        %v3189 = vpop.f32.mrb[0].mxu0
        %v3190 = vadd.f32 0.0, %v3189
        %v3191 = vpop.f32.mrb[0].mxu0
        %3192 = vmatprep.mubr.bf16.mxu0 0
        %3193 = vmatmul.mubr.bf16.gmra.mrb[0].mxu0 %v2975
        %v3194 = vpop.f32.mrb[0].mxu0
        %v3195 = vadd.f32 0.0, %v3194
        %v3196 = vpop.f32.mrb[0].mxu0
        %v3197 = vpop.f32.mrb[0].mxu0
        %v3198 = vadd.f32 0.0, %v3197
        %v3199 = vpop.f32.mrb[0].mxu0
        %3200 = vdwg.mxu0
        %v3201 = vld [vmem:[#allocation2] sm:$0xff]
        %v3202 = vld [vmem:[#allocation2 + $0x8] sm:$0xff]
        %v3203 = vld [vmem:[#allocation2 + $0x10] sm:$0xff]
        %v3204 = vld [vmem:[#allocation2 + $0x18] sm:$0xff]
        %v3205 = vld [vmem:[#allocation2 + $0x20] sm:$0xff]
        %v3206 = vld [vmem:[#allocation2 + $0x28] sm:$0xff]
        %v3207 = vld [vmem:[#allocation2 + $0x30] sm:$0xff]
        %v3208 = vld [vmem:[#allocation2 + $0x38] sm:$0xff]
        %v3209 = vld [vmem:[#allocation2 + $0x40] sm:$0xff]
        %v3210 = vld [vmem:[#allocation2 + $0x48] sm:$0xff]
        %v3211 = vld [vmem:[#allocation2 + $0x50] sm:$0xff]
        %v3212 = vld [vmem:[#allocation2 + $0x58] sm:$0xff]
        %v3213 = vld [vmem:[#allocation2 + $0x60] sm:$0xff]
        %v3214 = vld [vmem:[#allocation2 + $0x68] sm:$0xff]
        %v3215 = vld [vmem:[#allocation2 + $0x70] sm:$0xff]
        %v3216 = vld [vmem:[#allocation2 + $0x78] sm:$0xff]
        %v3217 = vld [vmem:[#allocation2 + $0x80] sm:$0xff]
        %v3218 = vld [vmem:[#allocation2 + $0x88] sm:$0xff]
        %v3219 = vld [vmem:[#allocation2 + $0x90] sm:$0xff]
        %v3220 = vld [vmem:[#allocation2 + $0x98] sm:$0xff]
        %v3221 = vld [vmem:[#allocation2 + $0xa0] sm:$0xff]
        %v3222 = vld [vmem:[#allocation2 + $0xa8] sm:$0xff]
        %v3223 = vld [vmem:[#allocation2 + $0xb0] sm:$0xff]
        %v3224 = vld [vmem:[#allocation2 + $0xb8] sm:$0xff]
        %v3225 = vld [vmem:[#allocation2 + $0xc0] sm:$0xff]
        %v3226 = vld [vmem:[#allocation2 + $0xc8] sm:$0xff]
        %v3227 = vld [vmem:[#allocation2 + $0xd0] sm:$0xff]
        %v3228 = vld [vmem:[#allocation2 + $0xd8] sm:$0xff]
        %v3229 = vld [vmem:[#allocation2 + $0xe0] sm:$0xff]
        %v3230 = vld [vmem:[#allocation2 + $0xe8] sm:$0xff]
        %v3231 = vld [vmem:[#allocation2 + $0xf0] sm:$0xff]
        %v3232 = vld [vmem:[#allocation2 + $0xf8] sm:$0xff]
        %v3233 = vadd.f32 %v3201, %v3075
        %v3234 = vadd.f32 %v3202, %v3078
        %v3235 = vadd.f32 %v3203, %v3083
        %v3236 = vadd.f32 %v3204, %v3086
        %v3237 = vadd.f32 %v3205, %v3091
        %v3238 = vadd.f32 %v3206, %v3094
        %v3239 = vadd.f32 %v3207, %v3099
        %v3240 = vadd.f32 %v3208, %v3102
        %v3241 = vadd.f32 %v3209, %v3107
        %v3242 = vadd.f32 %v3210, %v3110
        %v3243 = vadd.f32 %v3211, %v3115
        %v3244 = vadd.f32 %v3212, %v3118
        %v3245 = vadd.f32 %v3213, %v3123
        %v3246 = vadd.f32 %v3214, %v3126
        %v3247 = vadd.f32 %v3215, %v3131
        %v3248 = vadd.f32 %v3216, %v3134
        %v3249 = vadd.f32 %v3217, %v3139
        %v3250 = vadd.f32 %v3218, %v3142
        %v3251 = vadd.f32 %v3219, %v3147
        %v3252 = vadd.f32 %v3220, %v3150
        %v3253 = vadd.f32 %v3221, %v3155
        %v3254 = vadd.f32 %v3222, %v3158
        %v3255 = vadd.f32 %v3223, %v3163
        %v3256 = vadd.f32 %v3224, %v3166
        %v3257 = vadd.f32 %v3225, %v3171
        %v3258 = vadd.f32 %v3226, %v3174
        %v3259 = vadd.f32 %v3227, %v3179
        %v3260 = vadd.f32 %v3228, %v3182
        %v3261 = vadd.f32 %v3229, %v3187
        %v3262 = vadd.f32 %v3230, %v3190
        %v3263 = vadd.f32 %v3231, %v3195
        %v3264 = vadd.f32 %v3232, %v3198
        %3265 = vst [vmem:[#allocation2] sm:$0xff] %v3233
        %3266 = vst [vmem:[#allocation2 + $0x8] sm:$0xff] %v3234
        %3267 = vst [vmem:[#allocation2 + $0x10] sm:$0xff] %v3235
        %3268 = vst [vmem:[#allocation2 + $0x18] sm:$0xff] %v3236
        %3269 = vst [vmem:[#allocation2 + $0x20] sm:$0xff] %v3237
        %3270 = vst [vmem:[#allocation2 + $0x28] sm:$0xff] %v3238
        %3271 = vst [vmem:[#allocation2 + $0x30] sm:$0xff] %v3239
        %3272 = vst [vmem:[#allocation2 + $0x38] sm:$0xff] %v3240
        %3273 = vst [vmem:[#allocation2 + $0x40] sm:$0xff] %v3241
        %3274 = vst [vmem:[#allocation2 + $0x48] sm:$0xff] %v3242
        %3275 = vst [vmem:[#allocation2 + $0x50] sm:$0xff] %v3243
        %3276 = vst [vmem:[#allocation2 + $0x58] sm:$0xff] %v3244
        %3277 = vst [vmem:[#allocation2 + $0x60] sm:$0xff] %v3245
        %3278 = vst [vmem:[#allocation2 + $0x68] sm:$0xff] %v3246
        %3279 = vst [vmem:[#allocation2 + $0x70] sm:$0xff] %v3247
        %3280 = vst [vmem:[#allocation2 + $0x78] sm:$0xff] %v3248
        %3281 = vst [vmem:[#allocation2 + $0x80] sm:$0xff] %v3249
        %3282 = vst [vmem:[#allocation2 + $0x88] sm:$0xff] %v3250
        %3283 = vst [vmem:[#allocation2 + $0x90] sm:$0xff] %v3251
        %3284 = vst [vmem:[#allocation2 + $0x98] sm:$0xff] %v3252
        %3285 = vst [vmem:[#allocation2 + $0xa0] sm:$0xff] %v3253
        %3286 = vst [vmem:[#allocation2 + $0xa8] sm:$0xff] %v3254
        %3287 = vst [vmem:[#allocation2 + $0xb0] sm:$0xff] %v3255
        %3288 = vst [vmem:[#allocation2 + $0xb8] sm:$0xff] %v3256
        %3289 = vst [vmem:[#allocation2 + $0xc0] sm:$0xff] %v3257
        %3290 = vst [vmem:[#allocation2 + $0xc8] sm:$0xff] %v3258
        %3291 = vst [vmem:[#allocation2 + $0xd0] sm:$0xff] %v3259
        %3292 = vst [vmem:[#allocation2 + $0xd8] sm:$0xff] %v3260
        %3293 = vst [vmem:[#allocation2 + $0xe0] sm:$0xff] %v3261
        %3294 = vst [vmem:[#allocation2 + $0xe8] sm:$0xff] %v3262
        %3295 = vst [vmem:[#allocation2 + $0xf0] sm:$0xff] %v3263
        %3296 = vst [vmem:[#allocation2 + $0xf8] sm:$0xff] %v3264
        %v3297 = vld [vmem:[%s2028] sm:$0xe]
        %v3298 = vld [vmem:[%s2028 + $0x4] sm:$0xf]
        %v3299 = vld [vmem:[%s2028 + $0x8] sm:$0x1]
        %v3300 = vld [vmem:[%s2028 + $0xc] sm:$0xe]
        %v3301 = vld [vmem:[%s2028 + $0x10] sm:$0xf]
        %v3302 = vld [vmem:[%s2028 + $0x14] sm:$0x1]
        %v3303 = vld [vmem:[%s2028 + $0x18] sm:$0xe]
        %v3304 = vld [vmem:[%s2028 + $0x1c] sm:$0xf]
        %v3305 = vld [vmem:[%s2028 + $0x20] sm:$0x1]
        %v3306 = vld [vmem:[%s2028 + $0x24] sm:$0xe]
        %v3307 = vld [vmem:[%s2028 + $0x28] sm:$0xf]
        %v3308 = vld [vmem:[%s2028 + $0x2c] sm:$0x1]
        %v3309 = vld [vmem:[%s2028 + $0x30] sm:$0xe]
        %v3310 = vld [vmem:[%s2028 + $0x34] sm:$0xf]
        %v3311 = vld [vmem:[%s2028 + $0x38] sm:$0x1]
        %v3312 = vld [vmem:[%s2028 + $0x3c] sm:$0xe]
        %v3313 = vld [vmem:[%s2028 + $0x40] sm:$0xf]
        %v3314 = vld [vmem:[%s2028 + $0x44] sm:$0x1]
        %v3315 = vld [vmem:[%s2028 + $0x48] sm:$0xe]
        %v3316 = vld [vmem:[%s2028 + $0x4c] sm:$0xf]
        %v3317 = vld [vmem:[%s2028 + $0x50] sm:$0x1]
        %v3318 = vld [vmem:[%s2028 + $0x54] sm:$0xe]
        %v3319 = vld [vmem:[%s2028 + $0x58] sm:$0xf]
        %v3320 = vld [vmem:[%s2028 + $0x5c] sm:$0x1]
        %v3321 = vld [vmem:[%s2028 + $0x60] sm:$0xe]
        %v3322 = vld [vmem:[%s2028 + $0x64] sm:$0xf]
        %v3323 = vld [vmem:[%s2028 + $0x68] sm:$0x1]
        %v3324 = vld [vmem:[%s2028 + $0x6c] sm:$0xe]
        %v3325 = vld [vmem:[%s2028 + $0x70] sm:$0xf]
        %v3326 = vld [vmem:[%s2028 + $0x74] sm:$0x1]
        %v3327 = vld [vmem:[%s2028 + $0x78] sm:$0xe]
        %v3328 = vld [vmem:[%s2028 + $0x7c] sm:$0xf]
        %v3329 = vld [vmem:[%s2028 + $0x80] sm:$0x1]
        %v3330 = vld [vmem:[%s2028 + $0x84] sm:$0xe]
        %v3331 = vld [vmem:[%s2028 + $0x88] sm:$0xf]
        %v3332 = vld [vmem:[%s2028 + $0x8c] sm:$0x1]
        %v3333 = vld [vmem:[%s2028 + $0x90] sm:$0xe]
        %v3334 = vld [vmem:[%s2028 + $0x94] sm:$0xf]
        %v3335 = vld [vmem:[%s2028 + $0x98] sm:$0x1]
        %v3336 = vld [vmem:[%s2028 + $0x9c] sm:$0xe]
        %v3337 = vld [vmem:[%s2028 + $0xa0] sm:$0xf]
        %v3338 = vld [vmem:[%s2028 + $0xa4] sm:$0x1]
        %v3339 = vld [vmem:[%s2028 + $0xa8] sm:$0xe]
        %v3340 = vld [vmem:[%s2028 + $0xac] sm:$0xf]
        %v3341 = vld [vmem:[%s2028 + $0xb0] sm:$0x1]
        %v3342 = vld [vmem:[%s2028 + $0xb4] sm:$0xe]
        %v3343 = vld [vmem:[%s2028 + $0xb8] sm:$0xf]
        %v3344 = vld [vmem:[%s2028 + $0xbc] sm:$0x1]
        %v3393 = vrot.slane %v3297, 5
        %v3394 = vrot.slane %v3393, 4
        %v3395 = vrot.slane %v3298, 5
        %v3396 = vsel %vm1529, %v3394, %v3395
        %v3397 = vrot.slane %v3395, 4
        %v3398 = vrot.slane %v3299, 5
        %v3399 = vsel %vm1529, %v3397, %v3398
        %v3400 = vrot.slane %v3300, 5
        %v3401 = vrot.slane %v3400, 4
        %v3402 = vrot.slane %v3301, 5
        %v3403 = vsel %vm1529, %v3401, %v3402
        %v3404 = vrot.slane %v3402, 4
        %v3405 = vrot.slane %v3302, 5
        %v3406 = vsel %vm1529, %v3404, %v3405
        %v3407 = vrot.slane %v3303, 5
        %v3408 = vrot.slane %v3407, 4
        %v3409 = vrot.slane %v3304, 5
        %v3410 = vsel %vm1529, %v3408, %v3409
        %v3411 = vrot.slane %v3409, 4
        %v3412 = vrot.slane %v3305, 5
        %v3413 = vsel %vm1529, %v3411, %v3412
        %v3414 = vrot.slane %v3306, 5
        %v3415 = vrot.slane %v3414, 4
        %v3416 = vrot.slane %v3307, 5
        %v3417 = vsel %vm1529, %v3415, %v3416
        %v3418 = vrot.slane %v3416, 4
        %v3419 = vrot.slane %v3308, 5
        %v3420 = vsel %vm1529, %v3418, %v3419
        %v3421 = vrot.slane %v3309, 5
        %v3422 = vrot.slane %v3421, 4
        %v3423 = vrot.slane %v3310, 5
        %v3424 = vsel %vm1529, %v3422, %v3423
        %v3425 = vrot.slane %v3423, 4
        %v3426 = vrot.slane %v3311, 5
        %v3427 = vsel %vm1529, %v3425, %v3426
        %v3428 = vrot.slane %v3312, 5
        %v3429 = vrot.slane %v3428, 4
        %v3430 = vrot.slane %v3313, 5
        %v3431 = vsel %vm1529, %v3429, %v3430
        %v3432 = vrot.slane %v3430, 4
        %v3433 = vrot.slane %v3314, 5
        %v3434 = vsel %vm1529, %v3432, %v3433
        %v3435 = vrot.slane %v3315, 5
        %v3436 = vrot.slane %v3435, 4
        %v3437 = vrot.slane %v3316, 5
        %v3438 = vsel %vm1529, %v3436, %v3437
        %v3439 = vrot.slane %v3437, 4
        %v3440 = vrot.slane %v3317, 5
        %v3441 = vsel %vm1529, %v3439, %v3440
        %v3442 = vrot.slane %v3318, 5
        %v3443 = vrot.slane %v3442, 4
        %v3444 = vrot.slane %v3319, 5
        %v3445 = vsel %vm1529, %v3443, %v3444
        %v3446 = vrot.slane %v3444, 4
        %v3447 = vrot.slane %v3320, 5
        %v3448 = vsel %vm1529, %v3446, %v3447
        %v3449 = vrot.slane %v3321, 5
        %v3450 = vrot.slane %v3449, 4
        %v3451 = vrot.slane %v3322, 5
        %v3452 = vsel %vm1529, %v3450, %v3451
        %v3453 = vrot.slane %v3451, 4
        %v3454 = vrot.slane %v3323, 5
        %v3455 = vsel %vm1529, %v3453, %v3454
        %v3456 = vrot.slane %v3324, 5
        %v3457 = vrot.slane %v3456, 4
        %v3458 = vrot.slane %v3325, 5
        %v3459 = vsel %vm1529, %v3457, %v3458
        %v3460 = vrot.slane %v3458, 4
        %v3461 = vrot.slane %v3326, 5
        %v3462 = vsel %vm1529, %v3460, %v3461
        %v3463 = vrot.slane %v3327, 5
        %v3464 = vrot.slane %v3463, 4
        %v3465 = vrot.slane %v3328, 5
        %v3466 = vsel %vm1529, %v3464, %v3465
        %v3467 = vrot.slane %v3465, 4
        %v3468 = vrot.slane %v3329, 5
        %v3469 = vsel %vm1529, %v3467, %v3468
        %v3470 = vrot.slane %v3330, 5
        %v3471 = vrot.slane %v3470, 4
        %v3472 = vrot.slane %v3331, 5
        %v3473 = vsel %vm1529, %v3471, %v3472
        %v3474 = vrot.slane %v3472, 4
        %v3475 = vrot.slane %v3332, 5
        %v3476 = vsel %vm1529, %v3474, %v3475
        %v3477 = vrot.slane %v3333, 5
        %v3478 = vrot.slane %v3477, 4
        %v3479 = vrot.slane %v3334, 5
        %v3480 = vsel %vm1529, %v3478, %v3479
        %v3481 = vrot.slane %v3479, 4
        %v3482 = vrot.slane %v3335, 5
        %v3483 = vsel %vm1529, %v3481, %v3482
        %v3484 = vrot.slane %v3336, 5
        %v3485 = vrot.slane %v3484, 4
        %v3486 = vrot.slane %v3337, 5
        %v3487 = vsel %vm1529, %v3485, %v3486
        %v3488 = vrot.slane %v3486, 4
        %v3489 = vrot.slane %v3338, 5
        %v3490 = vsel %vm1529, %v3488, %v3489
        %v3491 = vrot.slane %v3339, 5
        %v3492 = vrot.slane %v3491, 4
        %v3493 = vrot.slane %v3340, 5
        %v3494 = vsel %vm1529, %v3492, %v3493
        %v3495 = vrot.slane %v3493, 4
        %v3496 = vrot.slane %v3341, 5
        %v3497 = vsel %vm1529, %v3495, %v3496
        %v3498 = vrot.slane %v3342, 5
        %v3499 = vrot.slane %v3498, 4
        %v3500 = vrot.slane %v3343, 5
        %v3501 = vsel %vm1529, %v3499, %v3500
        %v3502 = vrot.slane %v3500, 4
        %v3503 = vrot.slane %v3344, 5
        %v3504 = vsel %vm1529, %v3502, %v3503
        %s3505 = scalar_lea.vmem %s1, 320
        %v3506 = vld [vmem:[%s3505] sm:$0xf]
        %v3507 = vld [vmem:[%s3505 + $0x4] sm:$0xf]
        %v3508 = vld [vmem:[%s3505 + $0x8] sm:$0xf]
        %v3509 = vld [vmem:[%s3505 + $0xc] sm:$0xf]
        %v3510 = vld [vmem:[%s3505 + $0x10] sm:$0xf]
        %v3511 = vld [vmem:[%s3505 + $0x14] sm:$0xf]
        %v3512 = vld [vmem:[%s3505 + $0x18] sm:$0xf]
        %v3513 = vld [vmem:[%s3505 + $0x1c] sm:$0xf]
        %v3514 = vld [vmem:[%s3505 + $0x20] sm:$0xf]
        %v3515 = vld [vmem:[%s3505 + $0x24] sm:$0xf]
        %v3516 = vld [vmem:[%s3505 + $0x28] sm:$0xf]
        %v3517 = vld [vmem:[%s3505 + $0x2c] sm:$0xf]
        %v3518 = vld [vmem:[%s3505 + $0x30] sm:$0xf]
        %v3519 = vld [vmem:[%s3505 + $0x34] sm:$0xf]
        %v3520 = vld [vmem:[%s3505 + $0x38] sm:$0xf]
        %v3521 = vld [vmem:[%s3505 + $0x3c] sm:$0xf]
        %v3522 = vunpack.c.l.b16 %v3396
        %v3523 = vunpack.c.l.b16 %v3399
        %v3524 = vunpack.c.l.b16 %v3403
        %v3525 = vunpack.c.l.b16 %v3406
        %v3526 = vunpack.c.l.b16 %v3410
        %v3527 = vunpack.c.l.b16 %v3413
        %v3528 = vunpack.c.l.b16 %v3417
        %v3529 = vunpack.c.l.b16 %v3420
        %v3530 = vunpack.c.l.b16 %v3424
        %v3531 = vunpack.c.l.b16 %v3427
        %v3532 = vunpack.c.l.b16 %v3431
        %v3533 = vunpack.c.l.b16 %v3434
        %v3534 = vunpack.c.l.b16 %v3438
        %v3535 = vunpack.c.l.b16 %v3441
        %v3536 = vunpack.c.l.b16 %v3445
        %v3537 = vunpack.c.l.b16 %v3448
        %v3538 = vunpack.c.l.b16 %v3452
        %v3539 = vunpack.c.l.b16 %v3455
        %v3540 = vunpack.c.l.b16 %v3459
        %v3541 = vunpack.c.l.b16 %v3462
        %v3542 = vunpack.c.l.b16 %v3466
        %v3543 = vunpack.c.l.b16 %v3469
        %v3544 = vunpack.c.l.b16 %v3473
        %v3545 = vunpack.c.l.b16 %v3476
        %v3546 = vunpack.c.l.b16 %v3480
        %v3547 = vunpack.c.l.b16 %v3483
        %v3548 = vunpack.c.l.b16 %v3487
        %v3549 = vunpack.c.l.b16 %v3490
        %v3550 = vunpack.c.l.b16 %v3494
        %v3551 = vunpack.c.l.b16 %v3497
        %v3552 = vunpack.c.l.b16 %v3501
        %v3553 = vunpack.c.l.b16 %v3504
        %v3554 = vpack.c.b16 %v3523, %v3522
        %v3555 = vpack.c.b16 %v3525, %v3524
        %v3556 = vpack.c.b16 %v3527, %v3526
        %v3557 = vpack.c.b16 %v3529, %v3528
        %v3558 = vpack.c.b16 %v3531, %v3530
        %v3559 = vpack.c.b16 %v3533, %v3532
        %v3560 = vpack.c.b16 %v3535, %v3534
        %v3561 = vpack.c.b16 %v3537, %v3536
        %v3562 = vpack.c.b16 %v3539, %v3538
        %v3563 = vpack.c.b16 %v3541, %v3540
        %v3564 = vpack.c.b16 %v3543, %v3542
        %v3565 = vpack.c.b16 %v3545, %v3544
        %v3566 = vpack.c.b16 %v3547, %v3546
        %v3567 = vpack.c.b16 %v3549, %v3548
        %v3568 = vpack.c.b16 %v3551, %v3550
        %v3569 = vpack.c.b16 %v3553, %v3552
        %v3602 = vunpack.c.l.b16 %v3506
        %v3603 = vunpack.c.l.b16 %v3507
        %v3604 = vunpack.c.l.b16 %v3508
        %v3605 = vunpack.c.l.b16 %v3509
        %v3606 = vunpack.c.l.b16 %v3510
        %v3607 = vunpack.c.l.b16 %v3511
        %v3608 = vunpack.c.l.b16 %v3512
        %v3609 = vunpack.c.l.b16 %v3513
        %v3610 = vunpack.c.l.b16 %v3514
        %v3611 = vunpack.c.l.b16 %v3515
        %v3612 = vunpack.c.l.b16 %v3516
        %v3613 = vunpack.c.l.b16 %v3517
        %v3614 = vunpack.c.l.b16 %v3518
        %v3615 = vunpack.c.l.b16 %v3519
        %v3616 = vunpack.c.l.b16 %v3520
        %v3617 = vunpack.c.l.b16 %v3521
        %v3618 = vpack.c.b16 %v3603, %v3602
        %v3619 = vpack.c.b16 %v3605, %v3604
        %v3620 = vpack.c.b16 %v3607, %v3606
        %v3621 = vpack.c.b16 %v3609, %v3608
        %v3622 = vpack.c.b16 %v3611, %v3610
        %v3623 = vpack.c.b16 %v3613, %v3612
        %v3624 = vpack.c.b16 %v3615, %v3614
        %v3625 = vpack.c.b16 %v3617, %v3616
        %3634 = vmatprep.subr.bf16.mxu0 0
        %3635 = vmatpush1.bf16.msra.mxu0 %v3618
        %3636 = vmatprep.subr.bf16.mxu0 0
        %3637 = vmatpush1.bf16.msra.mxu0 %v3619
        %3638 = vmatprep.subr.bf16.mxu0 0
        %3639 = vmatpush1.bf16.msra.mxu0 %v3620
        %3640 = vmatprep.subr.bf16.mxu0 0
        %3641 = vmatpush1.bf16.msra.mxu0 %v3621
        %3642 = vmatprep.subr.bf16.mxu0 0
        %3643 = vmatpush1.bf16.msra.mxu0 %v3622
        %3644 = vmatprep.subr.bf16.mxu0 0
        %3645 = vmatpush1.bf16.msra.mxu0 %v3623
        %3646 = vmatprep.subr.bf16.mxu0 0
        %3647 = vmatpush1.bf16.msra.mxu0 %v3624
        %3648 = vmatprep.subr.bf16.mxu0 0
        %3649 = vmatpush1.bf16.msra.mxu0 %v3625
        %3650 = vmatprep.subr.bf16.mxu0 0
        %3651 = vmatpush1.bf16.msra.mxu0 0
        %3652 = vmatprep.subr.bf16.mxu0 0
        %3653 = vmatpush1.bf16.msra.mxu0 0
        %3654 = vmatprep.subr.bf16.mxu0 0
        %3655 = vmatpush1.bf16.msra.mxu0 0
        %3656 = vmatprep.subr.bf16.mxu0 0
        %3657 = vmatpush1.bf16.msra.mxu0 0
        %3658 = vmatprep.subr.bf16.mxu0 0
        %3659 = vmatpush1.bf16.msra.mxu0 0
        %3660 = vmatprep.subr.bf16.mxu0 0
        %3661 = vmatpush1.bf16.msra.mxu0 0
        %3662 = vmatprep.subr.bf16.mxu0 0
        %3663 = vmatpush1.bf16.msra.mxu0 0
        %3664 = vmatprep.subr.bf16.mxu0 0
        %3665 = vmatpush1.bf16.msra.mxu0 0
        %3666 = vmatprep.mubr.bf16.mxu0 0
        %3667 = vmatmul.mubr.bf16.gmra.mrb[0].mxu0 %v3554
        %v3668 = vpop.f32.mrb[0].mxu0
        %v3669 = vadd.f32 0.0, %v3668
        %v3670 = vpop.f32.mrb[0].mxu0
        %v3671 = vpop.f32.mrb[0].mxu0
        %v3672 = vadd.f32 0.0, %v3671
        %v3673 = vpop.f32.mrb[0].mxu0
        %3674 = vmatprep.mubr.bf16.mxu0 0
        %3675 = vmatmul.mubr.bf16.gmra.mrb[0].mxu0 %v3555
        %v3676 = vpop.f32.mrb[0].mxu0
        %v3677 = vadd.f32 0.0, %v3676
        %v3678 = vpop.f32.mrb[0].mxu0
        %v3679 = vpop.f32.mrb[0].mxu0
        %v3680 = vadd.f32 0.0, %v3679
        %v3681 = vpop.f32.mrb[0].mxu0
        %3682 = vmatprep.mubr.bf16.mxu0 0
        %3683 = vmatmul.mubr.bf16.gmra.mrb[0].mxu0 %v3556
        %v3684 = vpop.f32.mrb[0].mxu0
        %v3685 = vadd.f32 0.0, %v3684
        %v3686 = vpop.f32.mrb[0].mxu0
        %v3687 = vpop.f32.mrb[0].mxu0
        %v3688 = vadd.f32 0.0, %v3687
        %v3689 = vpop.f32.mrb[0].mxu0
        %3690 = vmatprep.mubr.bf16.mxu0 0
        %3691 = vmatmul.mubr.bf16.gmra.mrb[0].mxu0 %v3557
        %v3692 = vpop.f32.mrb[0].mxu0
        %v3693 = vadd.f32 0.0, %v3692
        %v3694 = vpop.f32.mrb[0].mxu0
        %v3695 = vpop.f32.mrb[0].mxu0
        %v3696 = vadd.f32 0.0, %v3695
        %v3697 = vpop.f32.mrb[0].mxu0
        %3698 = vmatprep.mubr.bf16.mxu0 0
        %3699 = vmatmul.mubr.bf16.gmra.mrb[0].mxu0 %v3558
        %v3700 = vpop.f32.mrb[0].mxu0
        %v3701 = vadd.f32 0.0, %v3700
        %v3702 = vpop.f32.mrb[0].mxu0
        %v3703 = vpop.f32.mrb[0].mxu0
        %v3704 = vadd.f32 0.0, %v3703
        %v3705 = vpop.f32.mrb[0].mxu0
        %3706 = vmatprep.mubr.bf16.mxu0 0
        %3707 = vmatmul.mubr.bf16.gmra.mrb[0].mxu0 %v3559
        %v3708 = vpop.f32.mrb[0].mxu0
        %v3709 = vadd.f32 0.0, %v3708
        %v3710 = vpop.f32.mrb[0].mxu0
        %v3711 = vpop.f32.mrb[0].mxu0
        %v3712 = vadd.f32 0.0, %v3711
        %v3713 = vpop.f32.mrb[0].mxu0
        %3714 = vmatprep.mubr.bf16.mxu0 0
        %3715 = vmatmul.mubr.bf16.gmra.mrb[0].mxu0 %v3560
        %v3716 = vpop.f32.mrb[0].mxu0
        %v3717 = vadd.f32 0.0, %v3716
        %v3718 = vpop.f32.mrb[0].mxu0
        %v3719 = vpop.f32.mrb[0].mxu0
        %v3720 = vadd.f32 0.0, %v3719
        %v3721 = vpop.f32.mrb[0].mxu0
        %3722 = vmatprep.mubr.bf16.mxu0 0
        %3723 = vmatmul.mubr.bf16.gmra.mrb[0].mxu0 %v3561
        %v3724 = vpop.f32.mrb[0].mxu0
        %v3725 = vadd.f32 0.0, %v3724
        %v3726 = vpop.f32.mrb[0].mxu0
        %v3727 = vpop.f32.mrb[0].mxu0
        %v3728 = vadd.f32 0.0, %v3727
        %v3729 = vpop.f32.mrb[0].mxu0
        %3730 = vmatprep.mubr.bf16.mxu0 0
        %3731 = vmatmul.mubr.bf16.gmra.mrb[0].mxu0 %v3562
        %v3732 = vpop.f32.mrb[0].mxu0
        %v3733 = vadd.f32 0.0, %v3732
        %v3734 = vpop.f32.mrb[0].mxu0
        %v3735 = vpop.f32.mrb[0].mxu0
        %v3736 = vadd.f32 0.0, %v3735
        %v3737 = vpop.f32.mrb[0].mxu0
        %3738 = vmatprep.mubr.bf16.mxu0 0
        %3739 = vmatmul.mubr.bf16.gmra.mrb[0].mxu0 %v3563
        %v3740 = vpop.f32.mrb[0].mxu0
        %v3741 = vadd.f32 0.0, %v3740
        %v3742 = vpop.f32.mrb[0].mxu0
        %v3743 = vpop.f32.mrb[0].mxu0
        %v3744 = vadd.f32 0.0, %v3743
        %v3745 = vpop.f32.mrb[0].mxu0
        %3746 = vmatprep.mubr.bf16.mxu0 0
        %3747 = vmatmul.mubr.bf16.gmra.mrb[0].mxu0 %v3564
        %v3748 = vpop.f32.mrb[0].mxu0
        %v3749 = vadd.f32 0.0, %v3748
        %v3750 = vpop.f32.mrb[0].mxu0
        %v3751 = vpop.f32.mrb[0].mxu0
        %v3752 = vadd.f32 0.0, %v3751
        %v3753 = vpop.f32.mrb[0].mxu0
        %3754 = vmatprep.mubr.bf16.mxu0 0
        %3755 = vmatmul.mubr.bf16.gmra.mrb[0].mxu0 %v3565
        %v3756 = vpop.f32.mrb[0].mxu0
        %v3757 = vadd.f32 0.0, %v3756
        %v3758 = vpop.f32.mrb[0].mxu0
        %v3759 = vpop.f32.mrb[0].mxu0
        %v3760 = vadd.f32 0.0, %v3759
        %v3761 = vpop.f32.mrb[0].mxu0
        %3762 = vmatprep.mubr.bf16.mxu0 0
        %3763 = vmatmul.mubr.bf16.gmra.mrb[0].mxu0 %v3566
        %v3764 = vpop.f32.mrb[0].mxu0
        %v3765 = vadd.f32 0.0, %v3764
        %v3766 = vpop.f32.mrb[0].mxu0
        %v3767 = vpop.f32.mrb[0].mxu0
        %v3768 = vadd.f32 0.0, %v3767
        %v3769 = vpop.f32.mrb[0].mxu0
        %3770 = vmatprep.mubr.bf16.mxu0 0
        %3771 = vmatmul.mubr.bf16.gmra.mrb[0].mxu0 %v3567
        %v3772 = vpop.f32.mrb[0].mxu0
        %v3773 = vadd.f32 0.0, %v3772
        %v3774 = vpop.f32.mrb[0].mxu0
        %v3775 = vpop.f32.mrb[0].mxu0
        %v3776 = vadd.f32 0.0, %v3775
        %v3777 = vpop.f32.mrb[0].mxu0
        %3778 = vmatprep.mubr.bf16.mxu0 0
        %3779 = vmatmul.mubr.bf16.gmra.mrb[0].mxu0 %v3568
        %v3780 = vpop.f32.mrb[0].mxu0
        %v3781 = vadd.f32 0.0, %v3780
        %v3782 = vpop.f32.mrb[0].mxu0
        %v3783 = vpop.f32.mrb[0].mxu0
        %v3784 = vadd.f32 0.0, %v3783
        %v3785 = vpop.f32.mrb[0].mxu0
        %3786 = vmatprep.mubr.bf16.mxu0 0
        %3787 = vmatmul.mubr.bf16.gmra.mrb[0].mxu0 %v3569
        %v3788 = vpop.f32.mrb[0].mxu0
        %v3789 = vadd.f32 0.0, %v3788
        %v3790 = vpop.f32.mrb[0].mxu0
        %v3791 = vpop.f32.mrb[0].mxu0
        %v3792 = vadd.f32 0.0, %v3791
        %v3793 = vpop.f32.mrb[0].mxu0
        %3794 = vdwg.mxu0
        %v3795 = vld [vmem:[#allocation2] sm:$0xff]
        %v3796 = vld [vmem:[#allocation2 + $0x8] sm:$0xff]
        %v3797 = vld [vmem:[#allocation2 + $0x10] sm:$0xff]
        %v3798 = vld [vmem:[#allocation2 + $0x18] sm:$0xff]
        %v3799 = vld [vmem:[#allocation2 + $0x20] sm:$0xff]
        %v3800 = vld [vmem:[#allocation2 + $0x28] sm:$0xff]
        %v3801 = vld [vmem:[#allocation2 + $0x30] sm:$0xff]
        %v3802 = vld [vmem:[#allocation2 + $0x38] sm:$0xff]
        %v3803 = vld [vmem:[#allocation2 + $0x40] sm:$0xff]
        %v3804 = vld [vmem:[#allocation2 + $0x48] sm:$0xff]
        %v3805 = vld [vmem:[#allocation2 + $0x50] sm:$0xff]
        %v3806 = vld [vmem:[#allocation2 + $0x58] sm:$0xff]
        %v3807 = vld [vmem:[#allocation2 + $0x60] sm:$0xff]
        %v3808 = vld [vmem:[#allocation2 + $0x68] sm:$0xff]
        %v3809 = vld [vmem:[#allocation2 + $0x70] sm:$0xff]
        %v3810 = vld [vmem:[#allocation2 + $0x78] sm:$0xff]
        %v3811 = vld [vmem:[#allocation2 + $0x80] sm:$0xff]
        %v3812 = vld [vmem:[#allocation2 + $0x88] sm:$0xff]
        %v3813 = vld [vmem:[#allocation2 + $0x90] sm:$0xff]
        %v3814 = vld [vmem:[#allocation2 + $0x98] sm:$0xff]
        %v3815 = vld [vmem:[#allocation2 + $0xa0] sm:$0xff]
        %v3816 = vld [vmem:[#allocation2 + $0xa8] sm:$0xff]
        %v3817 = vld [vmem:[#allocation2 + $0xb0] sm:$0xff]
        %v3818 = vld [vmem:[#allocation2 + $0xb8] sm:$0xff]
        %v3819 = vld [vmem:[#allocation2 + $0xc0] sm:$0xff]
        %v3820 = vld [vmem:[#allocation2 + $0xc8] sm:$0xff]
        %v3821 = vld [vmem:[#allocation2 + $0xd0] sm:$0xff]
        %v3822 = vld [vmem:[#allocation2 + $0xd8] sm:$0xff]
        %v3823 = vld [vmem:[#allocation2 + $0xe0] sm:$0xff]
        %v3824 = vld [vmem:[#allocation2 + $0xe8] sm:$0xff]
        %v3825 = vld [vmem:[#allocation2 + $0xf0] sm:$0xff]
        %v3826 = vld [vmem:[#allocation2 + $0xf8] sm:$0xff]
        %v3827 = vadd.f32 %v3795, %v3669
        %v3828 = vadd.f32 %v3796, %v3672
        %v3829 = vadd.f32 %v3797, %v3677
        %v3830 = vadd.f32 %v3798, %v3680
        %v3831 = vadd.f32 %v3799, %v3685
        %v3832 = vadd.f32 %v3800, %v3688
        %v3833 = vadd.f32 %v3801, %v3693
        %v3834 = vadd.f32 %v3802, %v3696
        %v3835 = vadd.f32 %v3803, %v3701
        %v3836 = vadd.f32 %v3804, %v3704
        %v3837 = vadd.f32 %v3805, %v3709
        %v3838 = vadd.f32 %v3806, %v3712
        %v3839 = vadd.f32 %v3807, %v3717
        %v3840 = vadd.f32 %v3808, %v3720
        %v3841 = vadd.f32 %v3809, %v3725
        %v3842 = vadd.f32 %v3810, %v3728
        %v3843 = vadd.f32 %v3811, %v3733
        %v3844 = vadd.f32 %v3812, %v3736
        %v3845 = vadd.f32 %v3813, %v3741
        %v3846 = vadd.f32 %v3814, %v3744
        %v3847 = vadd.f32 %v3815, %v3749
        %v3848 = vadd.f32 %v3816, %v3752
        %v3849 = vadd.f32 %v3817, %v3757
        %v3850 = vadd.f32 %v3818, %v3760
        %v3851 = vadd.f32 %v3819, %v3765
        %v3852 = vadd.f32 %v3820, %v3768
        %v3853 = vadd.f32 %v3821, %v3773
        %v3854 = vadd.f32 %v3822, %v3776
        %v3855 = vadd.f32 %v3823, %v3781
        %v3856 = vadd.f32 %v3824, %v3784
        %v3857 = vadd.f32 %v3825, %v3789
        %v3858 = vadd.f32 %v3826, %v3792
        %3859 = vst [vmem:[#allocation2] sm:$0xff] %v3827
        %3860 = vst [vmem:[#allocation2 + $0x8] sm:$0xff] %v3828
        %3861 = vst [vmem:[#allocation2 + $0x10] sm:$0xff] %v3829
        %3862 = vst [vmem:[#allocation2 + $0x18] sm:$0xff] %v3830
        %3863 = vst [vmem:[#allocation2 + $0x20] sm:$0xff] %v3831
        %3864 = vst [vmem:[#allocation2 + $0x28] sm:$0xff] %v3832
        %3865 = vst [vmem:[#allocation2 + $0x30] sm:$0xff] %v3833
        %3866 = vst [vmem:[#allocation2 + $0x38] sm:$0xff] %v3834
        %3867 = vst [vmem:[#allocation2 + $0x40] sm:$0xff] %v3835
        %3868 = vst [vmem:[#allocation2 + $0x48] sm:$0xff] %v3836
        %3869 = vst [vmem:[#allocation2 + $0x50] sm:$0xff] %v3837
        %3870 = vst [vmem:[#allocation2 + $0x58] sm:$0xff] %v3838
        %3871 = vst [vmem:[#allocation2 + $0x60] sm:$0xff] %v3839
        %3872 = vst [vmem:[#allocation2 + $0x68] sm:$0xff] %v3840
        %3873 = vst [vmem:[#allocation2 + $0x70] sm:$0xff] %v3841
        %3874 = vst [vmem:[#allocation2 + $0x78] sm:$0xff] %v3842
        %3875 = vst [vmem:[#allocation2 + $0x80] sm:$0xff] %v3843
        %3876 = vst [vmem:[#allocation2 + $0x88] sm:$0xff] %v3844
        %3877 = vst [vmem:[#allocation2 + $0x90] sm:$0xff] %v3845
        %3878 = vst [vmem:[#allocation2 + $0x98] sm:$0xff] %v3846
        %3879 = vst [vmem:[#allocation2 + $0xa0] sm:$0xff] %v3847
        %3880 = vst [vmem:[#allocation2 + $0xa8] sm:$0xff] %v3848
        %3881 = vst [vmem:[#allocation2 + $0xb0] sm:$0xff] %v3849
        %3882 = vst [vmem:[#allocation2 + $0xb8] sm:$0xff] %v3850
        %3883 = vst [vmem:[#allocation2 + $0xc0] sm:$0xff] %v3851
        %3884 = vst [vmem:[#allocation2 + $0xc8] sm:$0xff] %v3852
        %3885 = vst [vmem:[#allocation2 + $0xd0] sm:$0xff] %v3853
        %3886 = vst [vmem:[#allocation2 + $0xd8] sm:$0xff] %v3854
        %3887 = vst [vmem:[#allocation2 + $0xe0] sm:$0xff] %v3855
        %3888 = vst [vmem:[#allocation2 + $0xe8] sm:$0xff] %v3856
        %3889 = vst [vmem:[#allocation2 + $0xf0] sm:$0xff] %v3857
        %3890 = vst [vmem:[#allocation2 + $0xf8] sm:$0xff] %v3858
        %s3891 = scalar_lea.vmem %s223, 24
        %v3892 = vld [vmem:[%s3891] sm:$0xf]
        %v3893 = vld [vmem:[%s3891 + $0x4] sm:$0xf]
        %v3894 = vld [vmem:[%s3891 + $0xc] sm:$0xf]
        %v3895 = vld [vmem:[%s3891 + $0x10] sm:$0xf]
        %v3896 = vld [vmem:[%s3891 + $0x18] sm:$0xf]
        %v3897 = vld [vmem:[%s3891 + $0x1c] sm:$0xf]
        %v3898 = vld [vmem:[%s3891 + $0x24] sm:$0xf]
        %v3899 = vld [vmem:[%s3891 + $0x28] sm:$0xf]
        %v3900 = vld [vmem:[%s3891 + $0x30] sm:$0xf]
        %v3901 = vld [vmem:[%s3891 + $0x34] sm:$0xf]
        %v3902 = vld [vmem:[%s3891 + $0x3c] sm:$0xf]
        %v3903 = vld [vmem:[%s3891 + $0x40] sm:$0xf]
        %v3904 = vld [vmem:[%s3891 + $0x48] sm:$0xf]
        %v3905 = vld [vmem:[%s3891 + $0x4c] sm:$0xf]
        %v3906 = vld [vmem:[%s3891 + $0x54] sm:$0xf]
        %v3907 = vld [vmem:[%s3891 + $0x58] sm:$0xf]
        %v3908 = vld [vmem:[%s3891 + $0x60] sm:$0xf]
        %v3909 = vld [vmem:[%s3891 + $0x64] sm:$0xf]
        %v3910 = vld [vmem:[%s3891 + $0x6c] sm:$0xf]
        %v3911 = vld [vmem:[%s3891 + $0x70] sm:$0xf]
        %v3912 = vld [vmem:[%s3891 + $0x78] sm:$0xf]
        %v3913 = vld [vmem:[%s3891 + $0x7c] sm:$0xf]
        %v3914 = vld [vmem:[%s3891 + $0x84] sm:$0xf]
        %v3915 = vld [vmem:[%s3891 + $0x88] sm:$0xf]
        %v3916 = vld [vmem:[%s3891 + $0x90] sm:$0xf]
        %v3917 = vld [vmem:[%s3891 + $0x94] sm:$0xf]
        %v3918 = vld [vmem:[%s3891 + $0x9c] sm:$0xf]
        %v3919 = vld [vmem:[%s3891 + $0xa0] sm:$0xf]
        %v3920 = vld [vmem:[%s3891 + $0xa8] sm:$0xf]
        %v3921 = vld [vmem:[%s3891 + $0xac] sm:$0xf]
        %v3922 = vld [vmem:[%s3891 + $0xb4] sm:$0xf]
        %v3923 = vld [vmem:[%s3891 + $0xb8] sm:$0xf]
        %s3924 = scalar_lea.vmem %s1, 384
        %v3925 = vld [vmem:[%s3924] sm:$0xf]
        %v3926 = vld [vmem:[%s3924 + $0x4] sm:$0xf]
        %v3927 = vld [vmem:[%s3924 + $0x8] sm:$0xf]
        %v3928 = vld [vmem:[%s3924 + $0xc] sm:$0xf]
        %v3929 = vld [vmem:[%s3924 + $0x10] sm:$0xf]
        %v3930 = vld [vmem:[%s3924 + $0x14] sm:$0xf]
        %v3931 = vld [vmem:[%s3924 + $0x18] sm:$0xf]
        %v3932 = vld [vmem:[%s3924 + $0x1c] sm:$0xf]
        %v3933 = vld [vmem:[%s3924 + $0x20] sm:$0xf]
        %v3934 = vld [vmem:[%s3924 + $0x24] sm:$0xf]
        %v3935 = vld [vmem:[%s3924 + $0x28] sm:$0xf]
        %v3936 = vld [vmem:[%s3924 + $0x2c] sm:$0xf]
        %v3937 = vld [vmem:[%s3924 + $0x30] sm:$0xf]
        %v3938 = vld [vmem:[%s3924 + $0x34] sm:$0xf]
        %v3939 = vld [vmem:[%s3924 + $0x38] sm:$0xf]
        %v3940 = vld [vmem:[%s3924 + $0x3c] sm:$0xf]
        %v3973 = vunpack.c.l.b16 %v3892
        %v3974 = vunpack.c.l.b16 %v3893
        %v3975 = vunpack.c.l.b16 %v3894
        %v3976 = vunpack.c.l.b16 %v3895
        %v3977 = vunpack.c.l.b16 %v3896
        %v3978 = vunpack.c.l.b16 %v3897
        %v3979 = vunpack.c.l.b16 %v3898
        %v3980 = vunpack.c.l.b16 %v3899
        %v3981 = vunpack.c.l.b16 %v3900
        %v3982 = vunpack.c.l.b16 %v3901
        %v3983 = vunpack.c.l.b16 %v3902
        %v3984 = vunpack.c.l.b16 %v3903
        %v3985 = vunpack.c.l.b16 %v3904
        %v3986 = vunpack.c.l.b16 %v3905
        %v3987 = vunpack.c.l.b16 %v3906
        %v3988 = vunpack.c.l.b16 %v3907
        %v3989 = vunpack.c.l.b16 %v3908
        %v3990 = vunpack.c.l.b16 %v3909
        %v3991 = vunpack.c.l.b16 %v3910
        %v3992 = vunpack.c.l.b16 %v3911
        %v3993 = vunpack.c.l.b16 %v3912
        %v3994 = vunpack.c.l.b16 %v3913
        %v3995 = vunpack.c.l.b16 %v3914
        %v3996 = vunpack.c.l.b16 %v3915
        %v3997 = vunpack.c.l.b16 %v3916
        %v3998 = vunpack.c.l.b16 %v3917
        %v3999 = vunpack.c.l.b16 %v3918
        %v4000 = vunpack.c.l.b16 %v3919
        %v4001 = vunpack.c.l.b16 %v3920
        %v4002 = vunpack.c.l.b16 %v3921
        %v4003 = vunpack.c.l.b16 %v3922
        %v4004 = vunpack.c.l.b16 %v3923
        %v4005 = vpack.c.b16 %v3974, %v3973
        %v4006 = vpack.c.b16 %v3976, %v3975
        %v4007 = vpack.c.b16 %v3978, %v3977
        %v4008 = vpack.c.b16 %v3980, %v3979
        %v4009 = vpack.c.b16 %v3982, %v3981
        %v4010 = vpack.c.b16 %v3984, %v3983
        %v4011 = vpack.c.b16 %v3986, %v3985
        %v4012 = vpack.c.b16 %v3988, %v3987
        %v4013 = vpack.c.b16 %v3990, %v3989
        %v4014 = vpack.c.b16 %v3992, %v3991
        %v4015 = vpack.c.b16 %v3994, %v3993
        %v4016 = vpack.c.b16 %v3996, %v3995
        %v4017 = vpack.c.b16 %v3998, %v3997
        %v4018 = vpack.c.b16 %v4000, %v3999
        %v4019 = vpack.c.b16 %v4002, %v4001
        %v4020 = vpack.c.b16 %v4004, %v4003
        %v4053 = vunpack.c.l.b16 %v3925
        %v4054 = vunpack.c.l.b16 %v3926
        %v4055 = vunpack.c.l.b16 %v3927
        %v4056 = vunpack.c.l.b16 %v3928
        %v4057 = vunpack.c.l.b16 %v3929
        %v4058 = vunpack.c.l.b16 %v3930
        %v4059 = vunpack.c.l.b16 %v3931
        %v4060 = vunpack.c.l.b16 %v3932
        %v4061 = vunpack.c.l.b16 %v3933
        %v4062 = vunpack.c.l.b16 %v3934
        %v4063 = vunpack.c.l.b16 %v3935
        %v4064 = vunpack.c.l.b16 %v3936
        %v4065 = vunpack.c.l.b16 %v3937
        %v4066 = vunpack.c.l.b16 %v3938
        %v4067 = vunpack.c.l.b16 %v3939
        %v4068 = vunpack.c.l.b16 %v3940
        %v4069 = vpack.c.b16 %v4054, %v4053
        %v4070 = vpack.c.b16 %v4056, %v4055
        %v4071 = vpack.c.b16 %v4058, %v4057
        %v4072 = vpack.c.b16 %v4060, %v4059
        %v4073 = vpack.c.b16 %v4062, %v4061
        %v4074 = vpack.c.b16 %v4064, %v4063
        %v4075 = vpack.c.b16 %v4066, %v4065
        %v4076 = vpack.c.b16 %v4068, %v4067
        %4085 = vmatprep.subr.bf16.mxu0 0
        %4086 = vmatpush1.bf16.msra.mxu0 %v4069
        %4087 = vmatprep.subr.bf16.mxu0 0
        %4088 = vmatpush1.bf16.msra.mxu0 %v4070
        %4089 = vmatprep.subr.bf16.mxu0 0
        %4090 = vmatpush1.bf16.msra.mxu0 %v4071
        %4091 = vmatprep.subr.bf16.mxu0 0
        %4092 = vmatpush1.bf16.msra.mxu0 %v4072
        %4093 = vmatprep.subr.bf16.mxu0 0
        %4094 = vmatpush1.bf16.msra.mxu0 %v4073
        %4095 = vmatprep.subr.bf16.mxu0 0
        %4096 = vmatpush1.bf16.msra.mxu0 %v4074
        %4097 = vmatprep.subr.bf16.mxu0 0
        %4098 = vmatpush1.bf16.msra.mxu0 %v4075
        %4099 = vmatprep.subr.bf16.mxu0 0
        %4100 = vmatpush1.bf16.msra.mxu0 %v4076
        %4101 = vmatprep.subr.bf16.mxu0 0
        %4102 = vmatpush1.bf16.msra.mxu0 0
        %4103 = vmatprep.subr.bf16.mxu0 0
        %4104 = vmatpush1.bf16.msra.mxu0 0
        %4105 = vmatprep.subr.bf16.mxu0 0
        %4106 = vmatpush1.bf16.msra.mxu0 0
        %4107 = vmatprep.subr.bf16.mxu0 0
        %4108 = vmatpush1.bf16.msra.mxu0 0
        %4109 = vmatprep.subr.bf16.mxu0 0
        %4110 = vmatpush1.bf16.msra.mxu0 0
        %4111 = vmatprep.subr.bf16.mxu0 0
        %4112 = vmatpush1.bf16.msra.mxu0 0
        %4113 = vmatprep.subr.bf16.mxu0 0
        %4114 = vmatpush1.bf16.msra.mxu0 0
        %4115 = vmatprep.subr.bf16.mxu0 0
        %4116 = vmatpush1.bf16.msra.mxu0 0
        %4117 = vmatprep.mubr.bf16.mxu0 0
        %4118 = vmatmul.mubr.bf16.gmra.mrb[0].mxu0 %v4005
        %v4119 = vpop.f32.mrb[0].mxu0
        %v4120 = vadd.f32 0.0, %v4119
        %v4121 = vpop.f32.mrb[0].mxu0
        %v4122 = vpop.f32.mrb[0].mxu0
        %v4123 = vadd.f32 0.0, %v4122
        %v4124 = vpop.f32.mrb[0].mxu0
        %4125 = vmatprep.mubr.bf16.mxu0 0
        %4126 = vmatmul.mubr.bf16.gmra.mrb[0].mxu0 %v4006
        %v4127 = vpop.f32.mrb[0].mxu0
        %v4128 = vadd.f32 0.0, %v4127
        %v4129 = vpop.f32.mrb[0].mxu0
        %v4130 = vpop.f32.mrb[0].mxu0
        %v4131 = vadd.f32 0.0, %v4130
        %v4132 = vpop.f32.mrb[0].mxu0
        %4133 = vmatprep.mubr.bf16.mxu0 0
        %4134 = vmatmul.mubr.bf16.gmra.mrb[0].mxu0 %v4007
        %v4135 = vpop.f32.mrb[0].mxu0
        %v4136 = vadd.f32 0.0, %v4135
        %v4137 = vpop.f32.mrb[0].mxu0
        %v4138 = vpop.f32.mrb[0].mxu0
        %v4139 = vadd.f32 0.0, %v4138
        %v4140 = vpop.f32.mrb[0].mxu0
        %4141 = vmatprep.mubr.bf16.mxu0 0
        %4142 = vmatmul.mubr.bf16.gmra.mrb[0].mxu0 %v4008
        %v4143 = vpop.f32.mrb[0].mxu0
        %v4144 = vadd.f32 0.0, %v4143
        %v4145 = vpop.f32.mrb[0].mxu0
        %v4146 = vpop.f32.mrb[0].mxu0
        %v4147 = vadd.f32 0.0, %v4146
        %v4148 = vpop.f32.mrb[0].mxu0
        %4149 = vmatprep.mubr.bf16.mxu0 0
        %4150 = vmatmul.mubr.bf16.gmra.mrb[0].mxu0 %v4009
        %v4151 = vpop.f32.mrb[0].mxu0
        %v4152 = vadd.f32 0.0, %v4151
        %v4153 = vpop.f32.mrb[0].mxu0
        %v4154 = vpop.f32.mrb[0].mxu0
        %v4155 = vadd.f32 0.0, %v4154
        %v4156 = vpop.f32.mrb[0].mxu0
        %4157 = vmatprep.mubr.bf16.mxu0 0
        %4158 = vmatmul.mubr.bf16.gmra.mrb[0].mxu0 %v4010
        %v4159 = vpop.f32.mrb[0].mxu0
        %v4160 = vadd.f32 0.0, %v4159
        %v4161 = vpop.f32.mrb[0].mxu0
        %v4162 = vpop.f32.mrb[0].mxu0
        %v4163 = vadd.f32 0.0, %v4162
        %v4164 = vpop.f32.mrb[0].mxu0
        %4165 = vmatprep.mubr.bf16.mxu0 0
        %4166 = vmatmul.mubr.bf16.gmra.mrb[0].mxu0 %v4011
        %v4167 = vpop.f32.mrb[0].mxu0
        %v4168 = vadd.f32 0.0, %v4167
        %v4169 = vpop.f32.mrb[0].mxu0
        %v4170 = vpop.f32.mrb[0].mxu0
        %v4171 = vadd.f32 0.0, %v4170
        %v4172 = vpop.f32.mrb[0].mxu0
        %4173 = vmatprep.mubr.bf16.mxu0 0
        %4174 = vmatmul.mubr.bf16.gmra.mrb[0].mxu0 %v4012
        %v4175 = vpop.f32.mrb[0].mxu0
        %v4176 = vadd.f32 0.0, %v4175
        %v4177 = vpop.f32.mrb[0].mxu0
        %v4178 = vpop.f32.mrb[0].mxu0
        %v4179 = vadd.f32 0.0, %v4178
        %v4180 = vpop.f32.mrb[0].mxu0
        %4181 = vmatprep.mubr.bf16.mxu0 0
        %4182 = vmatmul.mubr.bf16.gmra.mrb[0].mxu0 %v4013
        %v4183 = vpop.f32.mrb[0].mxu0
        %v4184 = vadd.f32 0.0, %v4183
        %v4185 = vpop.f32.mrb[0].mxu0
        %v4186 = vpop.f32.mrb[0].mxu0
        %v4187 = vadd.f32 0.0, %v4186
        %v4188 = vpop.f32.mrb[0].mxu0
        %4189 = vmatprep.mubr.bf16.mxu0 0
        %4190 = vmatmul.mubr.bf16.gmra.mrb[0].mxu0 %v4014
        %v4191 = vpop.f32.mrb[0].mxu0
        %v4192 = vadd.f32 0.0, %v4191
        %v4193 = vpop.f32.mrb[0].mxu0
        %v4194 = vpop.f32.mrb[0].mxu0
        %v4195 = vadd.f32 0.0, %v4194
        %v4196 = vpop.f32.mrb[0].mxu0
        %4197 = vmatprep.mubr.bf16.mxu0 0
        %4198 = vmatmul.mubr.bf16.gmra.mrb[0].mxu0 %v4015
        %v4199 = vpop.f32.mrb[0].mxu0
        %v4200 = vadd.f32 0.0, %v4199
        %v4201 = vpop.f32.mrb[0].mxu0
        %v4202 = vpop.f32.mrb[0].mxu0
        %v4203 = vadd.f32 0.0, %v4202
        %v4204 = vpop.f32.mrb[0].mxu0
        %4205 = vmatprep.mubr.bf16.mxu0 0
        %4206 = vmatmul.mubr.bf16.gmra.mrb[0].mxu0 %v4016
        %v4207 = vpop.f32.mrb[0].mxu0
        %v4208 = vadd.f32 0.0, %v4207
        %v4209 = vpop.f32.mrb[0].mxu0
        %v4210 = vpop.f32.mrb[0].mxu0
        %v4211 = vadd.f32 0.0, %v4210
        %v4212 = vpop.f32.mrb[0].mxu0
        %4213 = vmatprep.mubr.bf16.mxu0 0
        %4214 = vmatmul.mubr.bf16.gmra.mrb[0].mxu0 %v4017
        %v4215 = vpop.f32.mrb[0].mxu0
        %v4216 = vadd.f32 0.0, %v4215
        %v4217 = vpop.f32.mrb[0].mxu0
        %v4218 = vpop.f32.mrb[0].mxu0
        %v4219 = vadd.f32 0.0, %v4218
        %v4220 = vpop.f32.mrb[0].mxu0
        %4221 = vmatprep.mubr.bf16.mxu0 0
        %4222 = vmatmul.mubr.bf16.gmra.mrb[0].mxu0 %v4018
        %v4223 = vpop.f32.mrb[0].mxu0
        %v4224 = vadd.f32 0.0, %v4223
        %v4225 = vpop.f32.mrb[0].mxu0
        %v4226 = vpop.f32.mrb[0].mxu0
        %v4227 = vadd.f32 0.0, %v4226
        %v4228 = vpop.f32.mrb[0].mxu0
        %4229 = vmatprep.mubr.bf16.mxu0 0
        %4230 = vmatmul.mubr.bf16.gmra.mrb[0].mxu0 %v4019
        %v4231 = vpop.f32.mrb[0].mxu0
        %v4232 = vadd.f32 0.0, %v4231
        %v4233 = vpop.f32.mrb[0].mxu0
        %v4234 = vpop.f32.mrb[0].mxu0
        %v4235 = vadd.f32 0.0, %v4234
        %v4236 = vpop.f32.mrb[0].mxu0
        %4237 = vmatprep.mubr.bf16.mxu0 0
        %4238 = vmatmul.mubr.bf16.gmra.mrb[0].mxu0 %v4020
        %v4239 = vpop.f32.mrb[0].mxu0
        %v4240 = vadd.f32 0.0, %v4239
        %v4241 = vpop.f32.mrb[0].mxu0
        %v4242 = vpop.f32.mrb[0].mxu0
        %v4243 = vadd.f32 0.0, %v4242
        %v4244 = vpop.f32.mrb[0].mxu0
        %4245 = vdwg.mxu0
        %v4246 = vld [vmem:[#allocation2] sm:$0xff]
        %v4247 = vld [vmem:[#allocation2 + $0x8] sm:$0xff]
        %v4248 = vld [vmem:[#allocation2 + $0x10] sm:$0xff]
        %v4249 = vld [vmem:[#allocation2 + $0x18] sm:$0xff]
        %v4250 = vld [vmem:[#allocation2 + $0x20] sm:$0xff]
        %v4251 = vld [vmem:[#allocation2 + $0x28] sm:$0xff]
        %v4252 = vld [vmem:[#allocation2 + $0x30] sm:$0xff]
        %v4253 = vld [vmem:[#allocation2 + $0x38] sm:$0xff]
        %v4254 = vld [vmem:[#allocation2 + $0x40] sm:$0xff]
        %v4255 = vld [vmem:[#allocation2 + $0x48] sm:$0xff]
        %v4256 = vld [vmem:[#allocation2 + $0x50] sm:$0xff]
        %v4257 = vld [vmem:[#allocation2 + $0x58] sm:$0xff]
        %v4258 = vld [vmem:[#allocation2 + $0x60] sm:$0xff]
        %v4259 = vld [vmem:[#allocation2 + $0x68] sm:$0xff]
        %v4260 = vld [vmem:[#allocation2 + $0x70] sm:$0xff]
        %v4261 = vld [vmem:[#allocation2 + $0x78] sm:$0xff]
        %v4262 = vld [vmem:[#allocation2 + $0x80] sm:$0xff]
        %v4263 = vld [vmem:[#allocation2 + $0x88] sm:$0xff]
        %v4264 = vld [vmem:[#allocation2 + $0x90] sm:$0xff]
        %v4265 = vld [vmem:[#allocation2 + $0x98] sm:$0xff]
        %v4266 = vld [vmem:[#allocation2 + $0xa0] sm:$0xff]
        %v4267 = vld [vmem:[#allocation2 + $0xa8] sm:$0xff]
        %v4268 = vld [vmem:[#allocation2 + $0xb0] sm:$0xff]
        %v4269 = vld [vmem:[#allocation2 + $0xb8] sm:$0xff]
        %v4270 = vld [vmem:[#allocation2 + $0xc0] sm:$0xff]
        %v4271 = vld [vmem:[#allocation2 + $0xc8] sm:$0xff]
        %v4272 = vld [vmem:[#allocation2 + $0xd0] sm:$0xff]
        %v4273 = vld [vmem:[#allocation2 + $0xd8] sm:$0xff]
        %v4274 = vld [vmem:[#allocation2 + $0xe0] sm:$0xff]
        %v4275 = vld [vmem:[#allocation2 + $0xe8] sm:$0xff]
        %v4276 = vld [vmem:[#allocation2 + $0xf0] sm:$0xff]
        %v4277 = vld [vmem:[#allocation2 + $0xf8] sm:$0xff]
        %v4278 = vadd.f32 %v4246, %v4120
        %v4279 = vadd.f32 %v4247, %v4123
        %v4280 = vadd.f32 %v4248, %v4128
        %v4281 = vadd.f32 %v4249, %v4131
        %v4282 = vadd.f32 %v4250, %v4136
        %v4283 = vadd.f32 %v4251, %v4139
        %v4284 = vadd.f32 %v4252, %v4144
        %v4285 = vadd.f32 %v4253, %v4147
        %v4286 = vadd.f32 %v4254, %v4152
        %v4287 = vadd.f32 %v4255, %v4155
        %v4288 = vadd.f32 %v4256, %v4160
        %v4289 = vadd.f32 %v4257, %v4163
        %v4290 = vadd.f32 %v4258, %v4168
        %v4291 = vadd.f32 %v4259, %v4171
        %v4292 = vadd.f32 %v4260, %v4176
        %v4293 = vadd.f32 %v4261, %v4179
        %v4294 = vadd.f32 %v4262, %v4184
        %v4295 = vadd.f32 %v4263, %v4187
        %v4296 = vadd.f32 %v4264, %v4192
        %v4297 = vadd.f32 %v4265, %v4195
        %v4298 = vadd.f32 %v4266, %v4200
        %v4299 = vadd.f32 %v4267, %v4203
        %v4300 = vadd.f32 %v4268, %v4208
        %v4301 = vadd.f32 %v4269, %v4211
        %v4302 = vadd.f32 %v4270, %v4216
        %v4303 = vadd.f32 %v4271, %v4219
        %v4304 = vadd.f32 %v4272, %v4224
        %v4305 = vadd.f32 %v4273, %v4227
        %v4306 = vadd.f32 %v4274, %v4232
        %v4307 = vadd.f32 %v4275, %v4235
        %v4308 = vadd.f32 %v4276, %v4240
        %v4309 = vadd.f32 %v4277, %v4243
        %4310 = vst [vmem:[#allocation2] sm:$0xff] %v4278
        %4311 = vst [vmem:[#allocation2 + $0x8] sm:$0xff] %v4279
        %4312 = vst [vmem:[#allocation2 + $0x10] sm:$0xff] %v4280
        %4313 = vst [vmem:[#allocation2 + $0x18] sm:$0xff] %v4281
        %4314 = vst [vmem:[#allocation2 + $0x20] sm:$0xff] %v4282
        %4315 = vst [vmem:[#allocation2 + $0x28] sm:$0xff] %v4283
        %4316 = vst [vmem:[#allocation2 + $0x30] sm:$0xff] %v4284
        %4317 = vst [vmem:[#allocation2 + $0x38] sm:$0xff] %v4285
        %4318 = vst [vmem:[#allocation2 + $0x40] sm:$0xff] %v4286
        %4319 = vst [vmem:[#allocation2 + $0x48] sm:$0xff] %v4287
        %4320 = vst [vmem:[#allocation2 + $0x50] sm:$0xff] %v4288
        %4321 = vst [vmem:[#allocation2 + $0x58] sm:$0xff] %v4289
        %4322 = vst [vmem:[#allocation2 + $0x60] sm:$0xff] %v4290
        %4323 = vst [vmem:[#allocation2 + $0x68] sm:$0xff] %v4291
        %4324 = vst [vmem:[#allocation2 + $0x70] sm:$0xff] %v4292
        %4325 = vst [vmem:[#allocation2 + $0x78] sm:$0xff] %v4293
        %4326 = vst [vmem:[#allocation2 + $0x80] sm:$0xff] %v4294
        %4327 = vst [vmem:[#allocation2 + $0x88] sm:$0xff] %v4295
        %4328 = vst [vmem:[#allocation2 + $0x90] sm:$0xff] %v4296
        %4329 = vst [vmem:[#allocation2 + $0x98] sm:$0xff] %v4297
        %4330 = vst [vmem:[#allocation2 + $0xa0] sm:$0xff] %v4298
        %4331 = vst [vmem:[#allocation2 + $0xa8] sm:$0xff] %v4299
        %4332 = vst [vmem:[#allocation2 + $0xb0] sm:$0xff] %v4300
        %4333 = vst [vmem:[#allocation2 + $0xb8] sm:$0xff] %v4301
        %4334 = vst [vmem:[#allocation2 + $0xc0] sm:$0xff] %v4302
        %4335 = vst [vmem:[#allocation2 + $0xc8] sm:$0xff] %v4303
        %4336 = vst [vmem:[#allocation2 + $0xd0] sm:$0xff] %v4304
        %4337 = vst [vmem:[#allocation2 + $0xd8] sm:$0xff] %v4305
        %4338 = vst [vmem:[#allocation2 + $0xe0] sm:$0xff] %v4306
        %4339 = vst [vmem:[#allocation2 + $0xe8] sm:$0xff] %v4307
        %4340 = vst [vmem:[#allocation2 + $0xf0] sm:$0xff] %v4308
        %4341 = vst [vmem:[#allocation2 + $0xf8] sm:$0xff] %v4309
        %v4342 = vld [vmem:[%s3891] sm:$0xf]
        %v4343 = vld [vmem:[%s3891 + $0x4] sm:$0xf]
        %v4344 = vld [vmem:[%s3891 + $0x8] sm:$0x1]
        %v4345 = vld [vmem:[%s3891 + $0xc] sm:$0xf]
        %v4346 = vld [vmem:[%s3891 + $0x10] sm:$0xf]
        %v4347 = vld [vmem:[%s3891 + $0x14] sm:$0x1]
        %v4348 = vld [vmem:[%s3891 + $0x18] sm:$0xf]
        %v4349 = vld [vmem:[%s3891 + $0x1c] sm:$0xf]
        %v4350 = vld [vmem:[%s3891 + $0x20] sm:$0x1]
        %v4351 = vld [vmem:[%s3891 + $0x24] sm:$0xf]
        %v4352 = vld [vmem:[%s3891 + $0x28] sm:$0xf]
        %v4353 = vld [vmem:[%s3891 + $0x2c] sm:$0x1]
        %v4354 = vld [vmem:[%s3891 + $0x30] sm:$0xf]
        %v4355 = vld [vmem:[%s3891 + $0x34] sm:$0xf]
        %v4356 = vld [vmem:[%s3891 + $0x38] sm:$0x1]
        %v4357 = vld [vmem:[%s3891 + $0x3c] sm:$0xf]
        %v4358 = vld [vmem:[%s3891 + $0x40] sm:$0xf]
        %v4359 = vld [vmem:[%s3891 + $0x44] sm:$0x1]
        %v4360 = vld [vmem:[%s3891 + $0x48] sm:$0xf]
        %v4361 = vld [vmem:[%s3891 + $0x4c] sm:$0xf]
        %v4362 = vld [vmem:[%s3891 + $0x50] sm:$0x1]
        %v4363 = vld [vmem:[%s3891 + $0x54] sm:$0xf]
        %v4364 = vld [vmem:[%s3891 + $0x58] sm:$0xf]
        %v4365 = vld [vmem:[%s3891 + $0x5c] sm:$0x1]
        %v4366 = vld [vmem:[%s3891 + $0x60] sm:$0xf]
        %v4367 = vld [vmem:[%s3891 + $0x64] sm:$0xf]
        %v4368 = vld [vmem:[%s3891 + $0x68] sm:$0x1]
        %v4369 = vld [vmem:[%s3891 + $0x6c] sm:$0xf]
        %v4370 = vld [vmem:[%s3891 + $0x70] sm:$0xf]
        %v4371 = vld [vmem:[%s3891 + $0x74] sm:$0x1]
        %v4372 = vld [vmem:[%s3891 + $0x78] sm:$0xf]
        %v4373 = vld [vmem:[%s3891 + $0x7c] sm:$0xf]
        %v4374 = vld [vmem:[%s3891 + $0x80] sm:$0x1]
        %v4375 = vld [vmem:[%s3891 + $0x84] sm:$0xf]
        %v4376 = vld [vmem:[%s3891 + $0x88] sm:$0xf]
        %v4377 = vld [vmem:[%s3891 + $0x8c] sm:$0x1]
        %v4378 = vld [vmem:[%s3891 + $0x90] sm:$0xf]
        %v4379 = vld [vmem:[%s3891 + $0x94] sm:$0xf]
        %v4380 = vld [vmem:[%s3891 + $0x98] sm:$0x1]
        %v4381 = vld [vmem:[%s3891 + $0x9c] sm:$0xf]
        %v4382 = vld [vmem:[%s3891 + $0xa0] sm:$0xf]
        %v4383 = vld [vmem:[%s3891 + $0xa4] sm:$0x1]
        %v4384 = vld [vmem:[%s3891 + $0xa8] sm:$0xf]
        %v4385 = vld [vmem:[%s3891 + $0xac] sm:$0xf]
        %v4386 = vld [vmem:[%s3891 + $0xb0] sm:$0x1]
        %v4387 = vld [vmem:[%s3891 + $0xb4] sm:$0xf]
        %v4388 = vld [vmem:[%s3891 + $0xb8] sm:$0xf]
        %v4389 = vld [vmem:[%s3891 + $0xbc] sm:$0x1]
        %v4391 = vshrl.u32 %v4342, 16
        %v4393 = vrot.slane %v4391, 4
        %v4394 = vshll.u32 %v4342, 16
        %v4396 = vrot.slane %v4394, 5
        %v4397 = vor.u32 %v4393, %v4396
        %v4398 = vrot.slane %v4397, 4
        %v4400 = vshll.u32 %v4343, 16
        %v4402 = vrot.slane %v4400, 5
        %v4403 = vsel %vm660, %v4398, %v4402
        %v4404 = vshrl.u32 %v4343, 16
        %v4406 = vrot.slane %v4404, 4
        %v4407 = vor.u32 %v4406, %v4402
        %v4408 = vrot.slane %v4407, 4
        %v4410 = vshll.u32 %v4344, 16
        %v4412 = vrot.slane %v4410, 5
        %v4413 = vsel %vm660, %v4408, %v4412
        %v4415 = vshrl.u32 %v4345, 16
        %v4417 = vrot.slane %v4415, 4
        %v4418 = vshll.u32 %v4345, 16
        %v4420 = vrot.slane %v4418, 5
        %v4421 = vor.u32 %v4417, %v4420
        %v4422 = vrot.slane %v4421, 4
        %v4424 = vshll.u32 %v4346, 16
        %v4426 = vrot.slane %v4424, 5
        %v4427 = vsel %vm660, %v4422, %v4426
        %v4428 = vshrl.u32 %v4346, 16
        %v4430 = vrot.slane %v4428, 4
        %v4431 = vor.u32 %v4430, %v4426
        %v4432 = vrot.slane %v4431, 4
        %v4434 = vshll.u32 %v4347, 16
        %v4436 = vrot.slane %v4434, 5
        %v4437 = vsel %vm660, %v4432, %v4436
        %v4439 = vshrl.u32 %v4348, 16
        %v4441 = vrot.slane %v4439, 4
        %v4442 = vshll.u32 %v4348, 16
        %v4444 = vrot.slane %v4442, 5
        %v4445 = vor.u32 %v4441, %v4444
        %v4446 = vrot.slane %v4445, 4
        %v4448 = vshll.u32 %v4349, 16
        %v4450 = vrot.slane %v4448, 5
        %v4451 = vsel %vm660, %v4446, %v4450
        %v4452 = vshrl.u32 %v4349, 16
        %v4454 = vrot.slane %v4452, 4
        %v4455 = vor.u32 %v4454, %v4450
        %v4456 = vrot.slane %v4455, 4
        %v4458 = vshll.u32 %v4350, 16
        %v4460 = vrot.slane %v4458, 5
        %v4461 = vsel %vm660, %v4456, %v4460
        %v4463 = vshrl.u32 %v4351, 16
        %v4465 = vrot.slane %v4463, 4
        %v4466 = vshll.u32 %v4351, 16
        %v4468 = vrot.slane %v4466, 5
        %v4469 = vor.u32 %v4465, %v4468
        %v4470 = vrot.slane %v4469, 4
        %v4472 = vshll.u32 %v4352, 16
        %v4474 = vrot.slane %v4472, 5
        %v4475 = vsel %vm660, %v4470, %v4474
        %v4476 = vshrl.u32 %v4352, 16
        %v4478 = vrot.slane %v4476, 4
        %v4479 = vor.u32 %v4478, %v4474
        %v4480 = vrot.slane %v4479, 4
        %v4482 = vshll.u32 %v4353, 16
        %v4484 = vrot.slane %v4482, 5
        %v4485 = vsel %vm660, %v4480, %v4484
        %v4487 = vshrl.u32 %v4354, 16
        %v4489 = vrot.slane %v4487, 4
        %v4490 = vshll.u32 %v4354, 16
        %v4492 = vrot.slane %v4490, 5
        %v4493 = vor.u32 %v4489, %v4492
        %v4494 = vrot.slane %v4493, 4
        %v4496 = vshll.u32 %v4355, 16
        %v4498 = vrot.slane %v4496, 5
        %v4499 = vsel %vm660, %v4494, %v4498
        %v4500 = vshrl.u32 %v4355, 16
        %v4502 = vrot.slane %v4500, 4
        %v4503 = vor.u32 %v4502, %v4498
        %v4504 = vrot.slane %v4503, 4
        %v4506 = vshll.u32 %v4356, 16
        %v4508 = vrot.slane %v4506, 5
        %v4509 = vsel %vm660, %v4504, %v4508
        %v4511 = vshrl.u32 %v4357, 16
        %v4513 = vrot.slane %v4511, 4
        %v4514 = vshll.u32 %v4357, 16
        %v4516 = vrot.slane %v4514, 5
        %v4517 = vor.u32 %v4513, %v4516
        %v4518 = vrot.slane %v4517, 4
        %v4520 = vshll.u32 %v4358, 16
        %v4522 = vrot.slane %v4520, 5
        %v4523 = vsel %vm660, %v4518, %v4522
        %v4524 = vshrl.u32 %v4358, 16
        %v4526 = vrot.slane %v4524, 4
        %v4527 = vor.u32 %v4526, %v4522
        %v4528 = vrot.slane %v4527, 4
        %v4530 = vshll.u32 %v4359, 16
        %v4532 = vrot.slane %v4530, 5
        %v4533 = vsel %vm660, %v4528, %v4532
        %v4535 = vshrl.u32 %v4360, 16
        %v4537 = vrot.slane %v4535, 4
        %v4538 = vshll.u32 %v4360, 16
        %v4540 = vrot.slane %v4538, 5
        %v4541 = vor.u32 %v4537, %v4540
        %v4542 = vrot.slane %v4541, 4
        %v4544 = vshll.u32 %v4361, 16
        %v4546 = vrot.slane %v4544, 5
        %v4547 = vsel %vm660, %v4542, %v4546
        %v4548 = vshrl.u32 %v4361, 16
        %v4550 = vrot.slane %v4548, 4
        %v4551 = vor.u32 %v4550, %v4546
        %v4552 = vrot.slane %v4551, 4
        %v4554 = vshll.u32 %v4362, 16
        %v4556 = vrot.slane %v4554, 5
        %v4557 = vsel %vm660, %v4552, %v4556
        %v4559 = vshrl.u32 %v4363, 16
        %v4561 = vrot.slane %v4559, 4
        %v4562 = vshll.u32 %v4363, 16
        %v4564 = vrot.slane %v4562, 5
        %v4565 = vor.u32 %v4561, %v4564
        %v4566 = vrot.slane %v4565, 4
        %v4568 = vshll.u32 %v4364, 16
        %v4570 = vrot.slane %v4568, 5
        %v4571 = vsel %vm660, %v4566, %v4570
        %v4572 = vshrl.u32 %v4364, 16
        %v4574 = vrot.slane %v4572, 4
        %v4575 = vor.u32 %v4574, %v4570
        %v4576 = vrot.slane %v4575, 4
        %v4578 = vshll.u32 %v4365, 16
        %v4580 = vrot.slane %v4578, 5
        %v4581 = vsel %vm660, %v4576, %v4580
        %v4583 = vshrl.u32 %v4366, 16
        %v4585 = vrot.slane %v4583, 4
        %v4586 = vshll.u32 %v4366, 16
        %v4588 = vrot.slane %v4586, 5
        %v4589 = vor.u32 %v4585, %v4588
        %v4590 = vrot.slane %v4589, 4
        %v4592 = vshll.u32 %v4367, 16
        %v4594 = vrot.slane %v4592, 5
        %v4595 = vsel %vm660, %v4590, %v4594
        %v4596 = vshrl.u32 %v4367, 16
        %v4598 = vrot.slane %v4596, 4
        %v4599 = vor.u32 %v4598, %v4594
        %v4600 = vrot.slane %v4599, 4
        %v4602 = vshll.u32 %v4368, 16
        %v4604 = vrot.slane %v4602, 5
        %v4605 = vsel %vm660, %v4600, %v4604
        %v4607 = vshrl.u32 %v4369, 16
        %v4609 = vrot.slane %v4607, 4
        %v4610 = vshll.u32 %v4369, 16
        %v4612 = vrot.slane %v4610, 5
        %v4613 = vor.u32 %v4609, %v4612
        %v4614 = vrot.slane %v4613, 4
        %v4616 = vshll.u32 %v4370, 16
        %v4618 = vrot.slane %v4616, 5
        %v4619 = vsel %vm660, %v4614, %v4618
        %v4620 = vshrl.u32 %v4370, 16
        %v4622 = vrot.slane %v4620, 4
        %v4623 = vor.u32 %v4622, %v4618
        %v4624 = vrot.slane %v4623, 4
        %v4626 = vshll.u32 %v4371, 16
        %v4628 = vrot.slane %v4626, 5
        %v4629 = vsel %vm660, %v4624, %v4628
        %v4631 = vshrl.u32 %v4372, 16
        %v4633 = vrot.slane %v4631, 4
        %v4634 = vshll.u32 %v4372, 16
        %v4636 = vrot.slane %v4634, 5
        %v4637 = vor.u32 %v4633, %v4636
        %v4638 = vrot.slane %v4637, 4
        %v4640 = vshll.u32 %v4373, 16
        %v4642 = vrot.slane %v4640, 5
        %v4643 = vsel %vm660, %v4638, %v4642
        %v4644 = vshrl.u32 %v4373, 16
        %v4646 = vrot.slane %v4644, 4
        %v4647 = vor.u32 %v4646, %v4642
        %v4648 = vrot.slane %v4647, 4
        %v4650 = vshll.u32 %v4374, 16
        %v4652 = vrot.slane %v4650, 5
        %v4653 = vsel %vm660, %v4648, %v4652
        %v4655 = vshrl.u32 %v4375, 16
        %v4657 = vrot.slane %v4655, 4
        %v4658 = vshll.u32 %v4375, 16
        %v4660 = vrot.slane %v4658, 5
        %v4661 = vor.u32 %v4657, %v4660
        %v4662 = vrot.slane %v4661, 4
        %v4664 = vshll.u32 %v4376, 16
        %v4666 = vrot.slane %v4664, 5
        %v4667 = vsel %vm660, %v4662, %v4666
        %v4668 = vshrl.u32 %v4376, 16
        %v4670 = vrot.slane %v4668, 4
        %v4671 = vor.u32 %v4670, %v4666
        %v4672 = vrot.slane %v4671, 4
        %v4674 = vshll.u32 %v4377, 16
        %v4676 = vrot.slane %v4674, 5
        %v4677 = vsel %vm660, %v4672, %v4676
        %v4679 = vshrl.u32 %v4378, 16
        %v4681 = vrot.slane %v4679, 4
        %v4682 = vshll.u32 %v4378, 16
        %v4684 = vrot.slane %v4682, 5
        %v4685 = vor.u32 %v4681, %v4684
        %v4686 = vrot.slane %v4685, 4
        %v4688 = vshll.u32 %v4379, 16
        %v4690 = vrot.slane %v4688, 5
        %v4691 = vsel %vm660, %v4686, %v4690
        %v4692 = vshrl.u32 %v4379, 16
        %v4694 = vrot.slane %v4692, 4
        %v4695 = vor.u32 %v4694, %v4690
        %v4696 = vrot.slane %v4695, 4
        %v4698 = vshll.u32 %v4380, 16
        %v4700 = vrot.slane %v4698, 5
        %v4701 = vsel %vm660, %v4696, %v4700
        %v4703 = vshrl.u32 %v4381, 16
        %v4705 = vrot.slane %v4703, 4
        %v4706 = vshll.u32 %v4381, 16
        %v4708 = vrot.slane %v4706, 5
        %v4709 = vor.u32 %v4705, %v4708
        %v4710 = vrot.slane %v4709, 4
        %v4712 = vshll.u32 %v4382, 16
        %v4714 = vrot.slane %v4712, 5
        %v4715 = vsel %vm660, %v4710, %v4714
        %v4716 = vshrl.u32 %v4382, 16
        %v4718 = vrot.slane %v4716, 4
        %v4719 = vor.u32 %v4718, %v4714
        %v4720 = vrot.slane %v4719, 4
        %v4722 = vshll.u32 %v4383, 16
        %v4724 = vrot.slane %v4722, 5
        %v4725 = vsel %vm660, %v4720, %v4724
        %v4727 = vshrl.u32 %v4384, 16
        %v4729 = vrot.slane %v4727, 4
        %v4730 = vshll.u32 %v4384, 16
        %v4732 = vrot.slane %v4730, 5
        %v4733 = vor.u32 %v4729, %v4732
        %v4734 = vrot.slane %v4733, 4
        %v4736 = vshll.u32 %v4385, 16
        %v4738 = vrot.slane %v4736, 5
        %v4739 = vsel %vm660, %v4734, %v4738
        %v4740 = vshrl.u32 %v4385, 16
        %v4742 = vrot.slane %v4740, 4
        %v4743 = vor.u32 %v4742, %v4738
        %v4744 = vrot.slane %v4743, 4
        %v4746 = vshll.u32 %v4386, 16
        %v4748 = vrot.slane %v4746, 5
        %v4749 = vsel %vm660, %v4744, %v4748
        %v4751 = vshrl.u32 %v4387, 16
        %v4753 = vrot.slane %v4751, 4
        %v4754 = vshll.u32 %v4387, 16
        %v4756 = vrot.slane %v4754, 5
        %v4757 = vor.u32 %v4753, %v4756
        %v4758 = vrot.slane %v4757, 4
        %v4760 = vshll.u32 %v4388, 16
        %v4762 = vrot.slane %v4760, 5
        %v4763 = vsel %vm660, %v4758, %v4762
        %v4764 = vshrl.u32 %v4388, 16
        %v4766 = vrot.slane %v4764, 4
        %v4767 = vor.u32 %v4766, %v4762
        %v4768 = vrot.slane %v4767, 4
        %v4770 = vshll.u32 %v4389, 16
        %v4772 = vrot.slane %v4770, 5
        %v4773 = vsel %vm660, %v4768, %v4772
        %s4774 = scalar_lea.vmem %s1, 448
        %v4775 = vld [vmem:[%s4774] sm:$0xf]
        %v4776 = vld [vmem:[%s4774 + $0x4] sm:$0xf]
        %v4777 = vld [vmem:[%s4774 + $0x8] sm:$0xf]
        %v4778 = vld [vmem:[%s4774 + $0xc] sm:$0xf]
        %v4779 = vld [vmem:[%s4774 + $0x10] sm:$0xf]
        %v4780 = vld [vmem:[%s4774 + $0x14] sm:$0xf]
        %v4781 = vld [vmem:[%s4774 + $0x18] sm:$0xf]
        %v4782 = vld [vmem:[%s4774 + $0x1c] sm:$0xf]
        %v4783 = vld [vmem:[%s4774 + $0x20] sm:$0xf]
        %v4784 = vld [vmem:[%s4774 + $0x24] sm:$0xf]
        %v4785 = vld [vmem:[%s4774 + $0x28] sm:$0xf]
        %v4786 = vld [vmem:[%s4774 + $0x2c] sm:$0xf]
        %v4787 = vld [vmem:[%s4774 + $0x30] sm:$0xf]
        %v4788 = vld [vmem:[%s4774 + $0x34] sm:$0xf]
        %v4789 = vld [vmem:[%s4774 + $0x38] sm:$0xf]
        %v4790 = vld [vmem:[%s4774 + $0x3c] sm:$0xf]
        %v4791 = vunpack.c.l.b16 %v4403
        %v4792 = vunpack.c.l.b16 %v4413
        %v4793 = vunpack.c.l.b16 %v4427
        %v4794 = vunpack.c.l.b16 %v4437
        %v4795 = vunpack.c.l.b16 %v4451
        %v4796 = vunpack.c.l.b16 %v4461
        %v4797 = vunpack.c.l.b16 %v4475
        %v4798 = vunpack.c.l.b16 %v4485
        %v4799 = vunpack.c.l.b16 %v4499
        %v4800 = vunpack.c.l.b16 %v4509
        %v4801 = vunpack.c.l.b16 %v4523
        %v4802 = vunpack.c.l.b16 %v4533
        %v4803 = vunpack.c.l.b16 %v4547
        %v4804 = vunpack.c.l.b16 %v4557
        %v4805 = vunpack.c.l.b16 %v4571
        %v4806 = vunpack.c.l.b16 %v4581
        %v4807 = vunpack.c.l.b16 %v4595
        %v4808 = vunpack.c.l.b16 %v4605
        %v4809 = vunpack.c.l.b16 %v4619
        %v4810 = vunpack.c.l.b16 %v4629
        %v4811 = vunpack.c.l.b16 %v4643
        %v4812 = vunpack.c.l.b16 %v4653
        %v4813 = vunpack.c.l.b16 %v4667
        %v4814 = vunpack.c.l.b16 %v4677
        %v4815 = vunpack.c.l.b16 %v4691
        %v4816 = vunpack.c.l.b16 %v4701
        %v4817 = vunpack.c.l.b16 %v4715
        %v4818 = vunpack.c.l.b16 %v4725
        %v4819 = vunpack.c.l.b16 %v4739
        %v4820 = vunpack.c.l.b16 %v4749
        %v4821 = vunpack.c.l.b16 %v4763
        %v4822 = vunpack.c.l.b16 %v4773
        %v4823 = vpack.c.b16 %v4792, %v4791
        %v4824 = vpack.c.b16 %v4794, %v4793
        %v4825 = vpack.c.b16 %v4796, %v4795
        %v4826 = vpack.c.b16 %v4798, %v4797
        %v4827 = vpack.c.b16 %v4800, %v4799
        %v4828 = vpack.c.b16 %v4802, %v4801
        %v4829 = vpack.c.b16 %v4804, %v4803
        %v4830 = vpack.c.b16 %v4806, %v4805
        %v4831 = vpack.c.b16 %v4808, %v4807
        %v4832 = vpack.c.b16 %v4810, %v4809
        %v4833 = vpack.c.b16 %v4812, %v4811
        %v4834 = vpack.c.b16 %v4814, %v4813
        %v4835 = vpack.c.b16 %v4816, %v4815
        %v4836 = vpack.c.b16 %v4818, %v4817
        %v4837 = vpack.c.b16 %v4820, %v4819
        %v4838 = vpack.c.b16 %v4822, %v4821
        %v4871 = vunpack.c.l.b16 %v4775
        %v4872 = vunpack.c.l.b16 %v4776
        %v4873 = vunpack.c.l.b16 %v4777
        %v4874 = vunpack.c.l.b16 %v4778
        %v4875 = vunpack.c.l.b16 %v4779
        %v4876 = vunpack.c.l.b16 %v4780
        %v4877 = vunpack.c.l.b16 %v4781
        %v4878 = vunpack.c.l.b16 %v4782
        %v4879 = vunpack.c.l.b16 %v4783
        %v4880 = vunpack.c.l.b16 %v4784
        %v4881 = vunpack.c.l.b16 %v4785
        %v4882 = vunpack.c.l.b16 %v4786
        %v4883 = vunpack.c.l.b16 %v4787
        %v4884 = vunpack.c.l.b16 %v4788
        %v4885 = vunpack.c.l.b16 %v4789
        %v4886 = vunpack.c.l.b16 %v4790
        %v4887 = vpack.c.b16 %v4872, %v4871
        %v4888 = vpack.c.b16 %v4874, %v4873
        %v4889 = vpack.c.b16 %v4876, %v4875
        %v4890 = vpack.c.b16 %v4878, %v4877
        %v4891 = vpack.c.b16 %v4880, %v4879
        %v4892 = vpack.c.b16 %v4882, %v4881
        %v4893 = vpack.c.b16 %v4884, %v4883
        %v4894 = vpack.c.b16 %v4886, %v4885
        %4903 = vmatprep.subr.bf16.mxu0 0
        %4904 = vmatpush1.bf16.msra.mxu0 %v4887
        %4905 = vmatprep.subr.bf16.mxu0 0
        %4906 = vmatpush1.bf16.msra.mxu0 %v4888
        %4907 = vmatprep.subr.bf16.mxu0 0
        %4908 = vmatpush1.bf16.msra.mxu0 %v4889
        %4909 = vmatprep.subr.bf16.mxu0 0
        %4910 = vmatpush1.bf16.msra.mxu0 %v4890
        %4911 = vmatprep.subr.bf16.mxu0 0
        %4912 = vmatpush1.bf16.msra.mxu0 %v4891
        %4913 = vmatprep.subr.bf16.mxu0 0
        %4914 = vmatpush1.bf16.msra.mxu0 %v4892
        %4915 = vmatprep.subr.bf16.mxu0 0
        %4916 = vmatpush1.bf16.msra.mxu0 %v4893
        %4917 = vmatprep.subr.bf16.mxu0 0
        %4918 = vmatpush1.bf16.msra.mxu0 %v4894
        %4919 = vmatprep.subr.bf16.mxu0 0
        %4920 = vmatpush1.bf16.msra.mxu0 0
        %4921 = vmatprep.subr.bf16.mxu0 0
        %4922 = vmatpush1.bf16.msra.mxu0 0
        %4923 = vmatprep.subr.bf16.mxu0 0
        %4924 = vmatpush1.bf16.msra.mxu0 0
        %4925 = vmatprep.subr.bf16.mxu0 0
        %4926 = vmatpush1.bf16.msra.mxu0 0
        %4927 = vmatprep.subr.bf16.mxu0 0
        %4928 = vmatpush1.bf16.msra.mxu0 0
        %4929 = vmatprep.subr.bf16.mxu0 0
        %4930 = vmatpush1.bf16.msra.mxu0 0
        %4931 = vmatprep.subr.bf16.mxu0 0
        %4932 = vmatpush1.bf16.msra.mxu0 0
        %4933 = vmatprep.subr.bf16.mxu0 0
        %4934 = vmatpush1.bf16.msra.mxu0 0
        %4935 = vmatprep.mubr.bf16.mxu0 0
        %4936 = vmatmul.mubr.bf16.gmra.mrb[0].mxu0 %v4823
        %v4937 = vpop.f32.mrb[0].mxu0
        %v4938 = vadd.f32 0.0, %v4937
        %v4939 = vpop.f32.mrb[0].mxu0
        %v4940 = vpop.f32.mrb[0].mxu0
        %v4941 = vadd.f32 0.0, %v4940
        %v4942 = vpop.f32.mrb[0].mxu0
        %4943 = vmatprep.mubr.bf16.mxu0 0
        %4944 = vmatmul.mubr.bf16.gmra.mrb[0].mxu0 %v4824
        %v4945 = vpop.f32.mrb[0].mxu0
        %v4946 = vadd.f32 0.0, %v4945
        %v4947 = vpop.f32.mrb[0].mxu0
        %v4948 = vpop.f32.mrb[0].mxu0
        %v4949 = vadd.f32 0.0, %v4948
        %v4950 = vpop.f32.mrb[0].mxu0
        %4951 = vmatprep.mubr.bf16.mxu0 0
        %4952 = vmatmul.mubr.bf16.gmra.mrb[0].mxu0 %v4825
        %v4953 = vpop.f32.mrb[0].mxu0
        %v4954 = vadd.f32 0.0, %v4953
        %v4955 = vpop.f32.mrb[0].mxu0
        %v4956 = vpop.f32.mrb[0].mxu0
        %v4957 = vadd.f32 0.0, %v4956
        %v4958 = vpop.f32.mrb[0].mxu0
        %4959 = vmatprep.mubr.bf16.mxu0 0
        %4960 = vmatmul.mubr.bf16.gmra.mrb[0].mxu0 %v4826
        %v4961 = vpop.f32.mrb[0].mxu0
        %v4962 = vadd.f32 0.0, %v4961
        %v4963 = vpop.f32.mrb[0].mxu0
        %v4964 = vpop.f32.mrb[0].mxu0
        %v4965 = vadd.f32 0.0, %v4964
        %v4966 = vpop.f32.mrb[0].mxu0
        %4967 = vmatprep.mubr.bf16.mxu0 0
        %4968 = vmatmul.mubr.bf16.gmra.mrb[0].mxu0 %v4827
        %v4969 = vpop.f32.mrb[0].mxu0
        %v4970 = vadd.f32 0.0, %v4969
        %v4971 = vpop.f32.mrb[0].mxu0
        %v4972 = vpop.f32.mrb[0].mxu0
        %v4973 = vadd.f32 0.0, %v4972
        %v4974 = vpop.f32.mrb[0].mxu0
        %4975 = vmatprep.mubr.bf16.mxu0 0
        %4976 = vmatmul.mubr.bf16.gmra.mrb[0].mxu0 %v4828
        %v4977 = vpop.f32.mrb[0].mxu0
        %v4978 = vadd.f32 0.0, %v4977
        %v4979 = vpop.f32.mrb[0].mxu0
        %v4980 = vpop.f32.mrb[0].mxu0
        %v4981 = vadd.f32 0.0, %v4980
        %v4982 = vpop.f32.mrb[0].mxu0
        %4983 = vmatprep.mubr.bf16.mxu0 0
        %4984 = vmatmul.mubr.bf16.gmra.mrb[0].mxu0 %v4829
        %v4985 = vpop.f32.mrb[0].mxu0
        %v4986 = vadd.f32 0.0, %v4985
        %v4987 = vpop.f32.mrb[0].mxu0
        %v4988 = vpop.f32.mrb[0].mxu0
        %v4989 = vadd.f32 0.0, %v4988
        %v4990 = vpop.f32.mrb[0].mxu0
        %4991 = vmatprep.mubr.bf16.mxu0 0
        %4992 = vmatmul.mubr.bf16.gmra.mrb[0].mxu0 %v4830
        %v4993 = vpop.f32.mrb[0].mxu0
        %v4994 = vadd.f32 0.0, %v4993
        %v4995 = vpop.f32.mrb[0].mxu0
        %v4996 = vpop.f32.mrb[0].mxu0
        %v4997 = vadd.f32 0.0, %v4996
        %v4998 = vpop.f32.mrb[0].mxu0
        %4999 = vmatprep.mubr.bf16.mxu0 0
        %5000 = vmatmul.mubr.bf16.gmra.mrb[0].mxu0 %v4831
        %v5001 = vpop.f32.mrb[0].mxu0
        %v5002 = vadd.f32 0.0, %v5001
        %v5003 = vpop.f32.mrb[0].mxu0
        %v5004 = vpop.f32.mrb[0].mxu0
        %v5005 = vadd.f32 0.0, %v5004
        %v5006 = vpop.f32.mrb[0].mxu0
        %5007 = vmatprep.mubr.bf16.mxu0 0
        %5008 = vmatmul.mubr.bf16.gmra.mrb[0].mxu0 %v4832
        %v5009 = vpop.f32.mrb[0].mxu0
        %v5010 = vadd.f32 0.0, %v5009
        %v5011 = vpop.f32.mrb[0].mxu0
        %v5012 = vpop.f32.mrb[0].mxu0
        %v5013 = vadd.f32 0.0, %v5012
        %v5014 = vpop.f32.mrb[0].mxu0
        %5015 = vmatprep.mubr.bf16.mxu0 0
        %5016 = vmatmul.mubr.bf16.gmra.mrb[0].mxu0 %v4833
        %v5017 = vpop.f32.mrb[0].mxu0
        %v5018 = vadd.f32 0.0, %v5017
        %v5019 = vpop.f32.mrb[0].mxu0
        %v5020 = vpop.f32.mrb[0].mxu0
        %v5021 = vadd.f32 0.0, %v5020
        %v5022 = vpop.f32.mrb[0].mxu0
        %5023 = vmatprep.mubr.bf16.mxu0 0
        %5024 = vmatmul.mubr.bf16.gmra.mrb[0].mxu0 %v4834
        %v5025 = vpop.f32.mrb[0].mxu0
        %v5026 = vadd.f32 0.0, %v5025
        %v5027 = vpop.f32.mrb[0].mxu0
        %v5028 = vpop.f32.mrb[0].mxu0
        %v5029 = vadd.f32 0.0, %v5028
        %v5030 = vpop.f32.mrb[0].mxu0
        %5031 = vmatprep.mubr.bf16.mxu0 0
        %5032 = vmatmul.mubr.bf16.gmra.mrb[0].mxu0 %v4835
        %v5033 = vpop.f32.mrb[0].mxu0
        %v5034 = vadd.f32 0.0, %v5033
        %v5035 = vpop.f32.mrb[0].mxu0
        %v5036 = vpop.f32.mrb[0].mxu0
        %v5037 = vadd.f32 0.0, %v5036
        %v5038 = vpop.f32.mrb[0].mxu0
        %5039 = vmatprep.mubr.bf16.mxu0 0
        %5040 = vmatmul.mubr.bf16.gmra.mrb[0].mxu0 %v4836
        %v5041 = vpop.f32.mrb[0].mxu0
        %v5042 = vadd.f32 0.0, %v5041
        %v5043 = vpop.f32.mrb[0].mxu0
        %v5044 = vpop.f32.mrb[0].mxu0
        %v5045 = vadd.f32 0.0, %v5044
        %v5046 = vpop.f32.mrb[0].mxu0
        %5047 = vmatprep.mubr.bf16.mxu0 0
        %5048 = vmatmul.mubr.bf16.gmra.mrb[0].mxu0 %v4837
        %v5049 = vpop.f32.mrb[0].mxu0
        %v5050 = vadd.f32 0.0, %v5049
        %v5051 = vpop.f32.mrb[0].mxu0
        %v5052 = vpop.f32.mrb[0].mxu0
        %v5053 = vadd.f32 0.0, %v5052
        %v5054 = vpop.f32.mrb[0].mxu0
        %5055 = vmatprep.mubr.bf16.mxu0 0
        %5056 = vmatmul.mubr.bf16.gmra.mrb[0].mxu0 %v4838
        %v5057 = vpop.f32.mrb[0].mxu0
        %v5058 = vadd.f32 0.0, %v5057
        %v5059 = vpop.f32.mrb[0].mxu0
        %v5060 = vpop.f32.mrb[0].mxu0
        %v5061 = vadd.f32 0.0, %v5060
        %v5062 = vpop.f32.mrb[0].mxu0
        %5063 = vdwg.mxu0
        %v5064 = vld [vmem:[#allocation2] sm:$0xff]
        %v5065 = vld [vmem:[#allocation2 + $0x8] sm:$0xff]
        %v5066 = vld [vmem:[#allocation2 + $0x10] sm:$0xff]
        %v5067 = vld [vmem:[#allocation2 + $0x18] sm:$0xff]
        %v5068 = vld [vmem:[#allocation2 + $0x20] sm:$0xff]
        %v5069 = vld [vmem:[#allocation2 + $0x28] sm:$0xff]
        %v5070 = vld [vmem:[#allocation2 + $0x30] sm:$0xff]
        %v5071 = vld [vmem:[#allocation2 + $0x38] sm:$0xff]
        %v5072 = vld [vmem:[#allocation2 + $0x40] sm:$0xff]
        %v5073 = vld [vmem:[#allocation2 + $0x48] sm:$0xff]
        %v5074 = vld [vmem:[#allocation2 + $0x50] sm:$0xff]
        %v5075 = vld [vmem:[#allocation2 + $0x58] sm:$0xff]
        %v5076 = vld [vmem:[#allocation2 + $0x60] sm:$0xff]
        %v5077 = vld [vmem:[#allocation2 + $0x68] sm:$0xff]
        %v5078 = vld [vmem:[#allocation2 + $0x70] sm:$0xff]
        %v5079 = vld [vmem:[#allocation2 + $0x78] sm:$0xff]
        %v5080 = vld [vmem:[#allocation2 + $0x80] sm:$0xff]
        %v5081 = vld [vmem:[#allocation2 + $0x88] sm:$0xff]
        %v5082 = vld [vmem:[#allocation2 + $0x90] sm:$0xff]
        %v5083 = vld [vmem:[#allocation2 + $0x98] sm:$0xff]
        %v5084 = vld [vmem:[#allocation2 + $0xa0] sm:$0xff]
        %v5085 = vld [vmem:[#allocation2 + $0xa8] sm:$0xff]
        %v5086 = vld [vmem:[#allocation2 + $0xb0] sm:$0xff]
        %v5087 = vld [vmem:[#allocation2 + $0xb8] sm:$0xff]
        %v5088 = vld [vmem:[#allocation2 + $0xc0] sm:$0xff]
        %v5089 = vld [vmem:[#allocation2 + $0xc8] sm:$0xff]
        %v5090 = vld [vmem:[#allocation2 + $0xd0] sm:$0xff]
        %v5091 = vld [vmem:[#allocation2 + $0xd8] sm:$0xff]
        %v5092 = vld [vmem:[#allocation2 + $0xe0] sm:$0xff]
        %v5093 = vld [vmem:[#allocation2 + $0xe8] sm:$0xff]
        %v5094 = vld [vmem:[#allocation2 + $0xf0] sm:$0xff]
        %v5095 = vld [vmem:[#allocation2 + $0xf8] sm:$0xff]
        %v5096 = vadd.f32 %v5064, %v4938
        %v5097 = vadd.f32 %v5065, %v4941
        %v5098 = vadd.f32 %v5066, %v4946
        %v5099 = vadd.f32 %v5067, %v4949
        %v5100 = vadd.f32 %v5068, %v4954
        %v5101 = vadd.f32 %v5069, %v4957
        %v5102 = vadd.f32 %v5070, %v4962
        %v5103 = vadd.f32 %v5071, %v4965
        %v5104 = vadd.f32 %v5072, %v4970
        %v5105 = vadd.f32 %v5073, %v4973
        %v5106 = vadd.f32 %v5074, %v4978
        %v5107 = vadd.f32 %v5075, %v4981
        %v5108 = vadd.f32 %v5076, %v4986
        %v5109 = vadd.f32 %v5077, %v4989
        %v5110 = vadd.f32 %v5078, %v4994
        %v5111 = vadd.f32 %v5079, %v4997
        %v5112 = vadd.f32 %v5080, %v5002
        %v5113 = vadd.f32 %v5081, %v5005
        %v5114 = vadd.f32 %v5082, %v5010
        %v5115 = vadd.f32 %v5083, %v5013
        %v5116 = vadd.f32 %v5084, %v5018
        %v5117 = vadd.f32 %v5085, %v5021
        %v5118 = vadd.f32 %v5086, %v5026
        %v5119 = vadd.f32 %v5087, %v5029
        %v5120 = vadd.f32 %v5088, %v5034
        %v5121 = vadd.f32 %v5089, %v5037
        %v5122 = vadd.f32 %v5090, %v5042
        %v5123 = vadd.f32 %v5091, %v5045
        %v5124 = vadd.f32 %v5092, %v5050
        %v5125 = vadd.f32 %v5093, %v5053
        %v5126 = vadd.f32 %v5094, %v5058
        %v5127 = vadd.f32 %v5095, %v5061
        %5128 = vst [vmem:[#allocation2] sm:$0xff] %v5096
        %5129 = vst [vmem:[#allocation2 + $0x8] sm:$0xff] %v5097
        %5130 = vst [vmem:[#allocation2 + $0x10] sm:$0xff] %v5098
        %5131 = vst [vmem:[#allocation2 + $0x18] sm:$0xff] %v5099
        %5132 = vst [vmem:[#allocation2 + $0x20] sm:$0xff] %v5100
        %5133 = vst [vmem:[#allocation2 + $0x28] sm:$0xff] %v5101
        %5134 = vst [vmem:[#allocation2 + $0x30] sm:$0xff] %v5102
        %5135 = vst [vmem:[#allocation2 + $0x38] sm:$0xff] %v5103
        %5136 = vst [vmem:[#allocation2 + $0x40] sm:$0xff] %v5104
        %5137 = vst [vmem:[#allocation2 + $0x48] sm:$0xff] %v5105
        %5138 = vst [vmem:[#allocation2 + $0x50] sm:$0xff] %v5106
        %5139 = vst [vmem:[#allocation2 + $0x58] sm:$0xff] %v5107
        %5140 = vst [vmem:[#allocation2 + $0x60] sm:$0xff] %v5108
        %5141 = vst [vmem:[#allocation2 + $0x68] sm:$0xff] %v5109
        %5142 = vst [vmem:[#allocation2 + $0x70] sm:$0xff] %v5110
        %5143 = vst [vmem:[#allocation2 + $0x78] sm:$0xff] %v5111
        %5144 = vst [vmem:[#allocation2 + $0x80] sm:$0xff] %v5112
        %5145 = vst [vmem:[#allocation2 + $0x88] sm:$0xff] %v5113
        %5146 = vst [vmem:[#allocation2 + $0x90] sm:$0xff] %v5114
        %5147 = vst [vmem:[#allocation2 + $0x98] sm:$0xff] %v5115
        %5148 = vst [vmem:[#allocation2 + $0xa0] sm:$0xff] %v5116
        %5149 = vst [vmem:[#allocation2 + $0xa8] sm:$0xff] %v5117
        %5150 = vst [vmem:[#allocation2 + $0xb0] sm:$0xff] %v5118
        %5151 = vst [vmem:[#allocation2 + $0xb8] sm:$0xff] %v5119
        %5152 = vst [vmem:[#allocation2 + $0xc0] sm:$0xff] %v5120
        %5153 = vst [vmem:[#allocation2 + $0xc8] sm:$0xff] %v5121
        %5154 = vst [vmem:[#allocation2 + $0xd0] sm:$0xff] %v5122
        %5155 = vst [vmem:[#allocation2 + $0xd8] sm:$0xff] %v5123
        %5156 = vst [vmem:[#allocation2 + $0xe0] sm:$0xff] %v5124
        %5157 = vst [vmem:[#allocation2 + $0xe8] sm:$0xff] %v5125
        %5158 = vst [vmem:[#allocation2 + $0xf0] sm:$0xff] %v5126
        %5159 = vst [vmem:[#allocation2 + $0xf8] sm:$0xff] %v5127
        %v5160 = vld [vmem:[%s3891] sm:$0xe]
        %v5161 = vld [vmem:[%s3891 + $0x4] sm:$0xf]
        %v5162 = vld [vmem:[%s3891 + $0x8] sm:$0x1]
        %v5163 = vld [vmem:[%s3891 + $0xc] sm:$0xe]
        %v5164 = vld [vmem:[%s3891 + $0x10] sm:$0xf]
        %v5165 = vld [vmem:[%s3891 + $0x14] sm:$0x1]
        %v5166 = vld [vmem:[%s3891 + $0x18] sm:$0xe]
        %v5167 = vld [vmem:[%s3891 + $0x1c] sm:$0xf]
        %v5168 = vld [vmem:[%s3891 + $0x20] sm:$0x1]
        %v5169 = vld [vmem:[%s3891 + $0x24] sm:$0xe]
        %v5170 = vld [vmem:[%s3891 + $0x28] sm:$0xf]
        %v5171 = vld [vmem:[%s3891 + $0x2c] sm:$0x1]
        %v5172 = vld [vmem:[%s3891 + $0x30] sm:$0xe]
        %v5173 = vld [vmem:[%s3891 + $0x34] sm:$0xf]
        %v5174 = vld [vmem:[%s3891 + $0x38] sm:$0x1]
        %v5175 = vld [vmem:[%s3891 + $0x3c] sm:$0xe]
        %v5176 = vld [vmem:[%s3891 + $0x40] sm:$0xf]
        %v5177 = vld [vmem:[%s3891 + $0x44] sm:$0x1]
        %v5178 = vld [vmem:[%s3891 + $0x48] sm:$0xe]
        %v5179 = vld [vmem:[%s3891 + $0x4c] sm:$0xf]
        %v5180 = vld [vmem:[%s3891 + $0x50] sm:$0x1]
        %v5181 = vld [vmem:[%s3891 + $0x54] sm:$0xe]
        %v5182 = vld [vmem:[%s3891 + $0x58] sm:$0xf]
        %v5183 = vld [vmem:[%s3891 + $0x5c] sm:$0x1]
        %v5184 = vld [vmem:[%s3891 + $0x60] sm:$0xe]
        %v5185 = vld [vmem:[%s3891 + $0x64] sm:$0xf]
        %v5186 = vld [vmem:[%s3891 + $0x68] sm:$0x1]
        %v5187 = vld [vmem:[%s3891 + $0x6c] sm:$0xe]
        %v5188 = vld [vmem:[%s3891 + $0x70] sm:$0xf]
        %v5189 = vld [vmem:[%s3891 + $0x74] sm:$0x1]
        %v5190 = vld [vmem:[%s3891 + $0x78] sm:$0xe]
        %v5191 = vld [vmem:[%s3891 + $0x7c] sm:$0xf]
        %v5192 = vld [vmem:[%s3891 + $0x80] sm:$0x1]
        %v5193 = vld [vmem:[%s3891 + $0x84] sm:$0xe]
        %v5194 = vld [vmem:[%s3891 + $0x88] sm:$0xf]
        %v5195 = vld [vmem:[%s3891 + $0x8c] sm:$0x1]
        %v5196 = vld [vmem:[%s3891 + $0x90] sm:$0xe]
        %v5197 = vld [vmem:[%s3891 + $0x94] sm:$0xf]
        %v5198 = vld [vmem:[%s3891 + $0x98] sm:$0x1]
        %v5199 = vld [vmem:[%s3891 + $0x9c] sm:$0xe]
        %v5200 = vld [vmem:[%s3891 + $0xa0] sm:$0xf]
        %v5201 = vld [vmem:[%s3891 + $0xa4] sm:$0x1]
        %v5202 = vld [vmem:[%s3891 + $0xa8] sm:$0xe]
        %v5203 = vld [vmem:[%s3891 + $0xac] sm:$0xf]
        %v5204 = vld [vmem:[%s3891 + $0xb0] sm:$0x1]
        %v5205 = vld [vmem:[%s3891 + $0xb4] sm:$0xe]
        %v5206 = vld [vmem:[%s3891 + $0xb8] sm:$0xf]
        %v5207 = vld [vmem:[%s3891 + $0xbc] sm:$0x1]
        %v5256 = vrot.slane %v5160, 5
        %v5257 = vrot.slane %v5256, 4
        %v5258 = vrot.slane %v5161, 5
        %v5259 = vsel %vm1529, %v5257, %v5258
        %v5260 = vrot.slane %v5258, 4
        %v5261 = vrot.slane %v5162, 5
        %v5262 = vsel %vm1529, %v5260, %v5261
        %v5263 = vrot.slane %v5163, 5
        %v5264 = vrot.slane %v5263, 4
        %v5265 = vrot.slane %v5164, 5
        %v5266 = vsel %vm1529, %v5264, %v5265
        %v5267 = vrot.slane %v5265, 4
        %v5268 = vrot.slane %v5165, 5
        %v5269 = vsel %vm1529, %v5267, %v5268
        %v5270 = vrot.slane %v5166, 5
        %v5271 = vrot.slane %v5270, 4
        %v5272 = vrot.slane %v5167, 5
        %v5273 = vsel %vm1529, %v5271, %v5272
        %v5274 = vrot.slane %v5272, 4
        %v5275 = vrot.slane %v5168, 5
        %v5276 = vsel %vm1529, %v5274, %v5275
        %v5277 = vrot.slane %v5169, 5
        %v5278 = vrot.slane %v5277, 4
        %v5279 = vrot.slane %v5170, 5
        %v5280 = vsel %vm1529, %v5278, %v5279
        %v5281 = vrot.slane %v5279, 4
        %v5282 = vrot.slane %v5171, 5
        %v5283 = vsel %vm1529, %v5281, %v5282
        %v5284 = vrot.slane %v5172, 5
        %v5285 = vrot.slane %v5284, 4
        %v5286 = vrot.slane %v5173, 5
        %v5287 = vsel %vm1529, %v5285, %v5286
        %v5288 = vrot.slane %v5286, 4
        %v5289 = vrot.slane %v5174, 5
        %v5290 = vsel %vm1529, %v5288, %v5289
        %v5291 = vrot.slane %v5175, 5
        %v5292 = vrot.slane %v5291, 4
        %v5293 = vrot.slane %v5176, 5
        %v5294 = vsel %vm1529, %v5292, %v5293
        %v5295 = vrot.slane %v5293, 4
        %v5296 = vrot.slane %v5177, 5
        %v5297 = vsel %vm1529, %v5295, %v5296
        %v5298 = vrot.slane %v5178, 5
        %v5299 = vrot.slane %v5298, 4
        %v5300 = vrot.slane %v5179, 5
        %v5301 = vsel %vm1529, %v5299, %v5300
        %v5302 = vrot.slane %v5300, 4
        %v5303 = vrot.slane %v5180, 5
        %v5304 = vsel %vm1529, %v5302, %v5303
        %v5305 = vrot.slane %v5181, 5
        %v5306 = vrot.slane %v5305, 4
        %v5307 = vrot.slane %v5182, 5
        %v5308 = vsel %vm1529, %v5306, %v5307
        %v5309 = vrot.slane %v5307, 4
        %v5310 = vrot.slane %v5183, 5
        %v5311 = vsel %vm1529, %v5309, %v5310
        %v5312 = vrot.slane %v5184, 5
        %v5313 = vrot.slane %v5312, 4
        %v5314 = vrot.slane %v5185, 5
        %v5315 = vsel %vm1529, %v5313, %v5314
        %v5316 = vrot.slane %v5314, 4
        %v5317 = vrot.slane %v5186, 5
        %v5318 = vsel %vm1529, %v5316, %v5317
        %v5319 = vrot.slane %v5187, 5
        %v5320 = vrot.slane %v5319, 4
        %v5321 = vrot.slane %v5188, 5
        %v5322 = vsel %vm1529, %v5320, %v5321
        %v5323 = vrot.slane %v5321, 4
        %v5324 = vrot.slane %v5189, 5
        %v5325 = vsel %vm1529, %v5323, %v5324
        %v5326 = vrot.slane %v5190, 5
        %v5327 = vrot.slane %v5326, 4
        %v5328 = vrot.slane %v5191, 5
        %v5329 = vsel %vm1529, %v5327, %v5328
        %v5330 = vrot.slane %v5328, 4
        %v5331 = vrot.slane %v5192, 5
        %v5332 = vsel %vm1529, %v5330, %v5331
        %v5333 = vrot.slane %v5193, 5
        %v5334 = vrot.slane %v5333, 4
        %v5335 = vrot.slane %v5194, 5
        %v5336 = vsel %vm1529, %v5334, %v5335
        %v5337 = vrot.slane %v5335, 4
        %v5338 = vrot.slane %v5195, 5
        %v5339 = vsel %vm1529, %v5337, %v5338
        %v5340 = vrot.slane %v5196, 5
        %v5341 = vrot.slane %v5340, 4
        %v5342 = vrot.slane %v5197, 5
        %v5343 = vsel %vm1529, %v5341, %v5342
        %v5344 = vrot.slane %v5342, 4
        %v5345 = vrot.slane %v5198, 5
        %v5346 = vsel %vm1529, %v5344, %v5345
        %v5347 = vrot.slane %v5199, 5
        %v5348 = vrot.slane %v5347, 4
        %v5349 = vrot.slane %v5200, 5
        %v5350 = vsel %vm1529, %v5348, %v5349
        %v5351 = vrot.slane %v5349, 4
        %v5352 = vrot.slane %v5201, 5
        %v5353 = vsel %vm1529, %v5351, %v5352
        %v5354 = vrot.slane %v5202, 5
        %v5355 = vrot.slane %v5354, 4
        %v5356 = vrot.slane %v5203, 5
        %v5357 = vsel %vm1529, %v5355, %v5356
        %v5358 = vrot.slane %v5356, 4
        %v5359 = vrot.slane %v5204, 5
        %v5360 = vsel %vm1529, %v5358, %v5359
        %v5361 = vrot.slane %v5205, 5
        %v5362 = vrot.slane %v5361, 4
        %v5363 = vrot.slane %v5206, 5
        %v5364 = vsel %vm1529, %v5362, %v5363
        %v5365 = vrot.slane %v5363, 4
        %v5366 = vrot.slane %v5207, 5
        %v5367 = vsel %vm1529, %v5365, %v5366
        %s5368 = scalar_lea.vmem %s1, 512
        %v5369 = vld [vmem:[%s5368] sm:$0xf]
        %v5370 = vld [vmem:[%s5368 + $0x4] sm:$0xf]
        %v5371 = vld [vmem:[%s5368 + $0x8] sm:$0xf]
        %v5372 = vld [vmem:[%s5368 + $0xc] sm:$0xf]
        %v5373 = vld [vmem:[%s5368 + $0x10] sm:$0xf]
        %v5374 = vld [vmem:[%s5368 + $0x14] sm:$0xf]
        %v5375 = vld [vmem:[%s5368 + $0x18] sm:$0xf]
        %v5376 = vld [vmem:[%s5368 + $0x1c] sm:$0xf]
        %v5377 = vld [vmem:[%s5368 + $0x20] sm:$0xf]
        %v5378 = vld [vmem:[%s5368 + $0x24] sm:$0xf]
        %v5379 = vld [vmem:[%s5368 + $0x28] sm:$0xf]
        %v5380 = vld [vmem:[%s5368 + $0x2c] sm:$0xf]
        %v5381 = vld [vmem:[%s5368 + $0x30] sm:$0xf]
        %v5382 = vld [vmem:[%s5368 + $0x34] sm:$0xf]
        %v5383 = vld [vmem:[%s5368 + $0x38] sm:$0xf]
        %v5384 = vld [vmem:[%s5368 + $0x3c] sm:$0xf]
        %v5385 = vunpack.c.l.b16 %v5259
        %v5386 = vunpack.c.l.b16 %v5262
        %v5387 = vunpack.c.l.b16 %v5266
        %v5388 = vunpack.c.l.b16 %v5269
        %v5389 = vunpack.c.l.b16 %v5273
        %v5390 = vunpack.c.l.b16 %v5276
        %v5391 = vunpack.c.l.b16 %v5280
        %v5392 = vunpack.c.l.b16 %v5283
        %v5393 = vunpack.c.l.b16 %v5287
        %v5394 = vunpack.c.l.b16 %v5290
        %v5395 = vunpack.c.l.b16 %v5294
        %v5396 = vunpack.c.l.b16 %v5297
        %v5397 = vunpack.c.l.b16 %v5301
        %v5398 = vunpack.c.l.b16 %v5304
        %v5399 = vunpack.c.l.b16 %v5308
        %v5400 = vunpack.c.l.b16 %v5311
        %v5401 = vunpack.c.l.b16 %v5315
        %v5402 = vunpack.c.l.b16 %v5318
        %v5403 = vunpack.c.l.b16 %v5322
        %v5404 = vunpack.c.l.b16 %v5325
        %v5405 = vunpack.c.l.b16 %v5329
        %v5406 = vunpack.c.l.b16 %v5332
        %v5407 = vunpack.c.l.b16 %v5336
        %v5408 = vunpack.c.l.b16 %v5339
        %v5409 = vunpack.c.l.b16 %v5343
        %v5410 = vunpack.c.l.b16 %v5346
        %v5411 = vunpack.c.l.b16 %v5350
        %v5412 = vunpack.c.l.b16 %v5353
        %v5413 = vunpack.c.l.b16 %v5357
        %v5414 = vunpack.c.l.b16 %v5360
        %v5415 = vunpack.c.l.b16 %v5364
        %v5416 = vunpack.c.l.b16 %v5367
        %v5417 = vpack.c.b16 %v5386, %v5385
        %v5418 = vpack.c.b16 %v5388, %v5387
        %v5419 = vpack.c.b16 %v5390, %v5389
        %v5420 = vpack.c.b16 %v5392, %v5391
        %v5421 = vpack.c.b16 %v5394, %v5393
        %v5422 = vpack.c.b16 %v5396, %v5395
        %v5423 = vpack.c.b16 %v5398, %v5397
        %v5424 = vpack.c.b16 %v5400, %v5399
        %v5425 = vpack.c.b16 %v5402, %v5401
        %v5426 = vpack.c.b16 %v5404, %v5403
        %v5427 = vpack.c.b16 %v5406, %v5405
        %v5428 = vpack.c.b16 %v5408, %v5407
        %v5429 = vpack.c.b16 %v5410, %v5409
        %v5430 = vpack.c.b16 %v5412, %v5411
        %v5431 = vpack.c.b16 %v5414, %v5413
        %v5432 = vpack.c.b16 %v5416, %v5415
        %v5465 = vunpack.c.l.b16 %v5369
        %v5466 = vunpack.c.l.b16 %v5370
        %v5467 = vunpack.c.l.b16 %v5371
        %v5468 = vunpack.c.l.b16 %v5372
        %v5469 = vunpack.c.l.b16 %v5373
        %v5470 = vunpack.c.l.b16 %v5374
        %v5471 = vunpack.c.l.b16 %v5375
        %v5472 = vunpack.c.l.b16 %v5376
        %v5473 = vunpack.c.l.b16 %v5377
        %v5474 = vunpack.c.l.b16 %v5378
        %v5475 = vunpack.c.l.b16 %v5379
        %v5476 = vunpack.c.l.b16 %v5380
        %v5477 = vunpack.c.l.b16 %v5381
        %v5478 = vunpack.c.l.b16 %v5382
        %v5479 = vunpack.c.l.b16 %v5383
        %v5480 = vunpack.c.l.b16 %v5384
        %v5481 = vpack.c.b16 %v5466, %v5465
        %v5482 = vpack.c.b16 %v5468, %v5467
        %v5483 = vpack.c.b16 %v5470, %v5469
        %v5484 = vpack.c.b16 %v5472, %v5471
        %v5485 = vpack.c.b16 %v5474, %v5473
        %v5486 = vpack.c.b16 %v5476, %v5475
        %v5487 = vpack.c.b16 %v5478, %v5477
        %v5488 = vpack.c.b16 %v5480, %v5479
        %5497 = vmatprep.subr.bf16.mxu0 0
        %5498 = vmatpush1.bf16.msra.mxu0 %v5481
        %5499 = vmatprep.subr.bf16.mxu0 0
        %5500 = vmatpush1.bf16.msra.mxu0 %v5482
        %5501 = vmatprep.subr.bf16.mxu0 0
        %5502 = vmatpush1.bf16.msra.mxu0 %v5483
        %5503 = vmatprep.subr.bf16.mxu0 0
        %5504 = vmatpush1.bf16.msra.mxu0 %v5484
        %5505 = vmatprep.subr.bf16.mxu0 0
        %5506 = vmatpush1.bf16.msra.mxu0 %v5485
        %5507 = vmatprep.subr.bf16.mxu0 0
        %5508 = vmatpush1.bf16.msra.mxu0 %v5486
        %5509 = vmatprep.subr.bf16.mxu0 0
        %5510 = vmatpush1.bf16.msra.mxu0 %v5487
        %5511 = vmatprep.subr.bf16.mxu0 0
        %5512 = vmatpush1.bf16.msra.mxu0 %v5488
        %5513 = vmatprep.subr.bf16.mxu0 0
        %5514 = vmatpush1.bf16.msra.mxu0 0
        %5515 = vmatprep.subr.bf16.mxu0 0
        %5516 = vmatpush1.bf16.msra.mxu0 0
        %5517 = vmatprep.subr.bf16.mxu0 0
        %5518 = vmatpush1.bf16.msra.mxu0 0
        %5519 = vmatprep.subr.bf16.mxu0 0
        %5520 = vmatpush1.bf16.msra.mxu0 0
        %5521 = vmatprep.subr.bf16.mxu0 0
        %5522 = vmatpush1.bf16.msra.mxu0 0
        %5523 = vmatprep.subr.bf16.mxu0 0
        %5524 = vmatpush1.bf16.msra.mxu0 0
        %5525 = vmatprep.subr.bf16.mxu0 0
        %5526 = vmatpush1.bf16.msra.mxu0 0
        %5527 = vmatprep.subr.bf16.mxu0 0
        %5528 = vmatpush1.bf16.msra.mxu0 0
        %5529 = vmatprep.mubr.bf16.mxu0 0
        %5530 = vmatmul.mubr.bf16.gmra.mrb[0].mxu0 %v5417
        %v5531 = vpop.f32.mrb[0].mxu0
        %v5532 = vadd.f32 0.0, %v5531
        %v5533 = vpop.f32.mrb[0].mxu0
        %v5534 = vpop.f32.mrb[0].mxu0
        %v5535 = vadd.f32 0.0, %v5534
        %v5536 = vpop.f32.mrb[0].mxu0
        %5537 = vmatprep.mubr.bf16.mxu0 0
        %5538 = vmatmul.mubr.bf16.gmra.mrb[0].mxu0 %v5418
        %v5539 = vpop.f32.mrb[0].mxu0
        %v5540 = vadd.f32 0.0, %v5539
        %v5541 = vpop.f32.mrb[0].mxu0
        %v5542 = vpop.f32.mrb[0].mxu0
        %v5543 = vadd.f32 0.0, %v5542
        %v5544 = vpop.f32.mrb[0].mxu0
        %5545 = vmatprep.mubr.bf16.mxu0 0
        %5546 = vmatmul.mubr.bf16.gmra.mrb[0].mxu0 %v5419
        %v5547 = vpop.f32.mrb[0].mxu0
        %v5548 = vadd.f32 0.0, %v5547
        %v5549 = vpop.f32.mrb[0].mxu0
        %v5550 = vpop.f32.mrb[0].mxu0
        %v5551 = vadd.f32 0.0, %v5550
        %v5552 = vpop.f32.mrb[0].mxu0
        %5553 = vmatprep.mubr.bf16.mxu0 0
        %5554 = vmatmul.mubr.bf16.gmra.mrb[0].mxu0 %v5420
        %v5555 = vpop.f32.mrb[0].mxu0
        %v5556 = vadd.f32 0.0, %v5555
        %v5557 = vpop.f32.mrb[0].mxu0
        %v5558 = vpop.f32.mrb[0].mxu0
        %v5559 = vadd.f32 0.0, %v5558
        %v5560 = vpop.f32.mrb[0].mxu0
        %5561 = vmatprep.mubr.bf16.mxu0 0
        %5562 = vmatmul.mubr.bf16.gmra.mrb[0].mxu0 %v5421
        %v5563 = vpop.f32.mrb[0].mxu0
        %v5564 = vadd.f32 0.0, %v5563
        %v5565 = vpop.f32.mrb[0].mxu0
        %v5566 = vpop.f32.mrb[0].mxu0
        %v5567 = vadd.f32 0.0, %v5566
        %v5568 = vpop.f32.mrb[0].mxu0
        %5569 = vmatprep.mubr.bf16.mxu0 0
        %5570 = vmatmul.mubr.bf16.gmra.mrb[0].mxu0 %v5422
        %v5571 = vpop.f32.mrb[0].mxu0
        %v5572 = vadd.f32 0.0, %v5571
        %v5573 = vpop.f32.mrb[0].mxu0
        %v5574 = vpop.f32.mrb[0].mxu0
        %v5575 = vadd.f32 0.0, %v5574
        %v5576 = vpop.f32.mrb[0].mxu0
        %5577 = vmatprep.mubr.bf16.mxu0 0
        %5578 = vmatmul.mubr.bf16.gmra.mrb[0].mxu0 %v5423
        %v5579 = vpop.f32.mrb[0].mxu0
        %v5580 = vadd.f32 0.0, %v5579
        %v5581 = vpop.f32.mrb[0].mxu0
        %v5582 = vpop.f32.mrb[0].mxu0
        %v5583 = vadd.f32 0.0, %v5582
        %v5584 = vpop.f32.mrb[0].mxu0
        %5585 = vmatprep.mubr.bf16.mxu0 0
        %5586 = vmatmul.mubr.bf16.gmra.mrb[0].mxu0 %v5424
        %v5587 = vpop.f32.mrb[0].mxu0
        %v5588 = vadd.f32 0.0, %v5587
        %v5589 = vpop.f32.mrb[0].mxu0
        %v5590 = vpop.f32.mrb[0].mxu0
        %v5591 = vadd.f32 0.0, %v5590
        %v5592 = vpop.f32.mrb[0].mxu0
        %5593 = vmatprep.mubr.bf16.mxu0 0
        %5594 = vmatmul.mubr.bf16.gmra.mrb[0].mxu0 %v5425
        %v5595 = vpop.f32.mrb[0].mxu0
        %v5596 = vadd.f32 0.0, %v5595
        %v5597 = vpop.f32.mrb[0].mxu0
        %v5598 = vpop.f32.mrb[0].mxu0
        %v5599 = vadd.f32 0.0, %v5598
        %v5600 = vpop.f32.mrb[0].mxu0
        %5601 = vmatprep.mubr.bf16.mxu0 0
        %5602 = vmatmul.mubr.bf16.gmra.mrb[0].mxu0 %v5426
        %v5603 = vpop.f32.mrb[0].mxu0
        %v5604 = vadd.f32 0.0, %v5603
        %v5605 = vpop.f32.mrb[0].mxu0
        %v5606 = vpop.f32.mrb[0].mxu0
        %v5607 = vadd.f32 0.0, %v5606
        %v5608 = vpop.f32.mrb[0].mxu0
        %5609 = vmatprep.mubr.bf16.mxu0 0
        %5610 = vmatmul.mubr.bf16.gmra.mrb[0].mxu0 %v5427
        %v5611 = vpop.f32.mrb[0].mxu0
        %v5612 = vadd.f32 0.0, %v5611
        %v5613 = vpop.f32.mrb[0].mxu0
        %v5614 = vpop.f32.mrb[0].mxu0
        %v5615 = vadd.f32 0.0, %v5614
        %v5616 = vpop.f32.mrb[0].mxu0
        %5617 = vmatprep.mubr.bf16.mxu0 0
        %5618 = vmatmul.mubr.bf16.gmra.mrb[0].mxu0 %v5428
        %v5619 = vpop.f32.mrb[0].mxu0
        %v5620 = vadd.f32 0.0, %v5619
        %v5621 = vpop.f32.mrb[0].mxu0
        %v5622 = vpop.f32.mrb[0].mxu0
        %v5623 = vadd.f32 0.0, %v5622
        %v5624 = vpop.f32.mrb[0].mxu0
        %5625 = vmatprep.mubr.bf16.mxu0 0
        %5626 = vmatmul.mubr.bf16.gmra.mrb[0].mxu0 %v5429
        %v5627 = vpop.f32.mrb[0].mxu0
        %v5628 = vadd.f32 0.0, %v5627
        %v5629 = vpop.f32.mrb[0].mxu0
        %v5630 = vpop.f32.mrb[0].mxu0
        %v5631 = vadd.f32 0.0, %v5630
        %v5632 = vpop.f32.mrb[0].mxu0
        %5633 = vmatprep.mubr.bf16.mxu0 0
        %5634 = vmatmul.mubr.bf16.gmra.mrb[0].mxu0 %v5430
        %v5635 = vpop.f32.mrb[0].mxu0
        %v5636 = vadd.f32 0.0, %v5635
        %v5637 = vpop.f32.mrb[0].mxu0
        %v5638 = vpop.f32.mrb[0].mxu0
        %v5639 = vadd.f32 0.0, %v5638
        %v5640 = vpop.f32.mrb[0].mxu0
        %5641 = vmatprep.mubr.bf16.mxu0 0
        %5642 = vmatmul.mubr.bf16.gmra.mrb[0].mxu0 %v5431
        %v5643 = vpop.f32.mrb[0].mxu0
        %v5644 = vadd.f32 0.0, %v5643
        %v5645 = vpop.f32.mrb[0].mxu0
        %v5646 = vpop.f32.mrb[0].mxu0
        %v5647 = vadd.f32 0.0, %v5646
        %v5648 = vpop.f32.mrb[0].mxu0
        %5649 = vmatprep.mubr.bf16.mxu0 0
        %5650 = vmatmul.mubr.bf16.gmra.mrb[0].mxu0 %v5432
        %v5651 = vpop.f32.mrb[0].mxu0
        %v5652 = vadd.f32 0.0, %v5651
        %v5653 = vpop.f32.mrb[0].mxu0
        %v5654 = vpop.f32.mrb[0].mxu0
        %v5655 = vadd.f32 0.0, %v5654
        %v5656 = vpop.f32.mrb[0].mxu0
        %5657 = vdwg.mxu0
        %v5658 = vld [vmem:[#allocation2] sm:$0xff]
        %v5659 = vld [vmem:[#allocation2 + $0x8] sm:$0xff]
        %v5660 = vld [vmem:[#allocation2 + $0x10] sm:$0xff]
        %v5661 = vld [vmem:[#allocation2 + $0x18] sm:$0xff]
        %v5662 = vld [vmem:[#allocation2 + $0x20] sm:$0xff]
        %v5663 = vld [vmem:[#allocation2 + $0x28] sm:$0xff]
        %v5664 = vld [vmem:[#allocation2 + $0x30] sm:$0xff]
        %v5665 = vld [vmem:[#allocation2 + $0x38] sm:$0xff]
        %v5666 = vld [vmem:[#allocation2 + $0x40] sm:$0xff]
        %v5667 = vld [vmem:[#allocation2 + $0x48] sm:$0xff]
        %v5668 = vld [vmem:[#allocation2 + $0x50] sm:$0xff]
        %v5669 = vld [vmem:[#allocation2 + $0x58] sm:$0xff]
        %v5670 = vld [vmem:[#allocation2 + $0x60] sm:$0xff]
        %v5671 = vld [vmem:[#allocation2 + $0x68] sm:$0xff]
        %v5672 = vld [vmem:[#allocation2 + $0x70] sm:$0xff]
        %v5673 = vld [vmem:[#allocation2 + $0x78] sm:$0xff]
        %v5674 = vld [vmem:[#allocation2 + $0x80] sm:$0xff]
        %v5675 = vld [vmem:[#allocation2 + $0x88] sm:$0xff]
        %v5676 = vld [vmem:[#allocation2 + $0x90] sm:$0xff]
        %v5677 = vld [vmem:[#allocation2 + $0x98] sm:$0xff]
        %v5678 = vld [vmem:[#allocation2 + $0xa0] sm:$0xff]
        %v5679 = vld [vmem:[#allocation2 + $0xa8] sm:$0xff]
        %v5680 = vld [vmem:[#allocation2 + $0xb0] sm:$0xff]
        %v5681 = vld [vmem:[#allocation2 + $0xb8] sm:$0xff]
        %v5682 = vld [vmem:[#allocation2 + $0xc0] sm:$0xff]
        %v5683 = vld [vmem:[#allocation2 + $0xc8] sm:$0xff]
        %v5684 = vld [vmem:[#allocation2 + $0xd0] sm:$0xff]
        %v5685 = vld [vmem:[#allocation2 + $0xd8] sm:$0xff]
        %v5686 = vld [vmem:[#allocation2 + $0xe0] sm:$0xff]
        %v5687 = vld [vmem:[#allocation2 + $0xe8] sm:$0xff]
        %v5688 = vld [vmem:[#allocation2 + $0xf0] sm:$0xff]
        %v5689 = vld [vmem:[#allocation2 + $0xf8] sm:$0xff]
        %v5690 = vadd.f32 %v5658, %v5532
        %v5691 = vadd.f32 %v5659, %v5535
        %v5692 = vadd.f32 %v5660, %v5540
        %v5693 = vadd.f32 %v5661, %v5543
        %v5694 = vadd.f32 %v5662, %v5548
        %v5695 = vadd.f32 %v5663, %v5551
        %v5696 = vadd.f32 %v5664, %v5556
        %v5697 = vadd.f32 %v5665, %v5559
        %v5698 = vadd.f32 %v5666, %v5564
        %v5699 = vadd.f32 %v5667, %v5567
        %v5700 = vadd.f32 %v5668, %v5572
        %v5701 = vadd.f32 %v5669, %v5575
        %v5702 = vadd.f32 %v5670, %v5580
        %v5703 = vadd.f32 %v5671, %v5583
        %v5704 = vadd.f32 %v5672, %v5588
        %v5705 = vadd.f32 %v5673, %v5591
        %v5706 = vadd.f32 %v5674, %v5596
        %v5707 = vadd.f32 %v5675, %v5599
        %v5708 = vadd.f32 %v5676, %v5604
        %v5709 = vadd.f32 %v5677, %v5607
        %v5710 = vadd.f32 %v5678, %v5612
        %v5711 = vadd.f32 %v5679, %v5615
        %v5712 = vadd.f32 %v5680, %v5620
        %v5713 = vadd.f32 %v5681, %v5623
        %v5714 = vadd.f32 %v5682, %v5628
        %v5715 = vadd.f32 %v5683, %v5631
        %v5716 = vadd.f32 %v5684, %v5636
        %v5717 = vadd.f32 %v5685, %v5639
        %v5718 = vadd.f32 %v5686, %v5644
        %v5719 = vadd.f32 %v5687, %v5647
        %v5720 = vadd.f32 %v5688, %v5652
        %v5721 = vadd.f32 %v5689, %v5655
        %5722 = vst [vmem:[#allocation2] sm:$0xff] %v5690
        %5723 = vst [vmem:[#allocation2 + $0x8] sm:$0xff] %v5691
        %5724 = vst [vmem:[#allocation2 + $0x10] sm:$0xff] %v5692
        %5725 = vst [vmem:[#allocation2 + $0x18] sm:$0xff] %v5693
        %5726 = vst [vmem:[#allocation2 + $0x20] sm:$0xff] %v5694
        %5727 = vst [vmem:[#allocation2 + $0x28] sm:$0xff] %v5695
        %5728 = vst [vmem:[#allocation2 + $0x30] sm:$0xff] %v5696
        %5729 = vst [vmem:[#allocation2 + $0x38] sm:$0xff] %v5697
        %5730 = vst [vmem:[#allocation2 + $0x40] sm:$0xff] %v5698
        %5731 = vst [vmem:[#allocation2 + $0x48] sm:$0xff] %v5699
        %5732 = vst [vmem:[#allocation2 + $0x50] sm:$0xff] %v5700
        %5733 = vst [vmem:[#allocation2 + $0x58] sm:$0xff] %v5701
        %5734 = vst [vmem:[#allocation2 + $0x60] sm:$0xff] %v5702
        %5735 = vst [vmem:[#allocation2 + $0x68] sm:$0xff] %v5703
        %5736 = vst [vmem:[#allocation2 + $0x70] sm:$0xff] %v5704
        %5737 = vst [vmem:[#allocation2 + $0x78] sm:$0xff] %v5705
        %5738 = vst [vmem:[#allocation2 + $0x80] sm:$0xff] %v5706
        %5739 = vst [vmem:[#allocation2 + $0x88] sm:$0xff] %v5707
        %5740 = vst [vmem:[#allocation2 + $0x90] sm:$0xff] %v5708
        %5741 = vst [vmem:[#allocation2 + $0x98] sm:$0xff] %v5709
        %5742 = vst [vmem:[#allocation2 + $0xa0] sm:$0xff] %v5710
        %5743 = vst [vmem:[#allocation2 + $0xa8] sm:$0xff] %v5711
        %5744 = vst [vmem:[#allocation2 + $0xb0] sm:$0xff] %v5712
        %5745 = vst [vmem:[#allocation2 + $0xb8] sm:$0xff] %v5713
        %5746 = vst [vmem:[#allocation2 + $0xc0] sm:$0xff] %v5714
        %5747 = vst [vmem:[#allocation2 + $0xc8] sm:$0xff] %v5715
        %5748 = vst [vmem:[#allocation2 + $0xd0] sm:$0xff] %v5716
        %5749 = vst [vmem:[#allocation2 + $0xd8] sm:$0xff] %v5717
        %5750 = vst [vmem:[#allocation2 + $0xe0] sm:$0xff] %v5718
        %5751 = vst [vmem:[#allocation2 + $0xe8] sm:$0xff] %v5719
        %5752 = vst [vmem:[#allocation2 + $0xf0] sm:$0xff] %v5720
        %5753 = vst [vmem:[#allocation2 + $0xf8] sm:$0xff] %v5721
        %v5754 = vld [vmem:[#allocation2] sm:$0xff]
        %v5755 = vld [vmem:[#allocation2 + $0x8] sm:$0xff]
        %v5756 = vld [vmem:[#allocation2 + $0x10] sm:$0xff]
        %v5757 = vld [vmem:[#allocation2 + $0x18] sm:$0xff]
        %v5758 = vld [vmem:[#allocation2 + $0x20] sm:$0xff]
        %v5759 = vld [vmem:[#allocation2 + $0x28] sm:$0xff]
        %v5760 = vld [vmem:[#allocation2 + $0x30] sm:$0xff]
        %v5761 = vld [vmem:[#allocation2 + $0x38] sm:$0xff]
        %v5762 = vld [vmem:[#allocation2 + $0x40] sm:$0xff]
        %v5763 = vld [vmem:[#allocation2 + $0x48] sm:$0xff]
        %v5764 = vld [vmem:[#allocation2 + $0x50] sm:$0xff]
        %v5765 = vld [vmem:[#allocation2 + $0x58] sm:$0xff]
        %v5766 = vld [vmem:[#allocation2 + $0x60] sm:$0xff]
        %v5767 = vld [vmem:[#allocation2 + $0x68] sm:$0xff]
        %v5768 = vld [vmem:[#allocation2 + $0x70] sm:$0xff]
        %v5769 = vld [vmem:[#allocation2 + $0x78] sm:$0xff]
        %v5770 = vld [vmem:[#allocation2 + $0x80] sm:$0xff]
        %v5771 = vld [vmem:[#allocation2 + $0x88] sm:$0xff]
        %v5772 = vld [vmem:[#allocation2 + $0x90] sm:$0xff]
        %v5773 = vld [vmem:[#allocation2 + $0x98] sm:$0xff]
        %v5774 = vld [vmem:[#allocation2 + $0xa0] sm:$0xff]
        %v5775 = vld [vmem:[#allocation2 + $0xa8] sm:$0xff]
        %v5776 = vld [vmem:[#allocation2 + $0xb0] sm:$0xff]
        %v5777 = vld [vmem:[#allocation2 + $0xb8] sm:$0xff]
        %v5778 = vld [vmem:[#allocation2 + $0xc0] sm:$0xff]
        %v5779 = vld [vmem:[#allocation2 + $0xc8] sm:$0xff]
        %v5780 = vld [vmem:[#allocation2 + $0xd0] sm:$0xff]
        %v5781 = vld [vmem:[#allocation2 + $0xd8] sm:$0xff]
        %v5782 = vld [vmem:[#allocation2 + $0xe0] sm:$0xff]
        %v5783 = vld [vmem:[#allocation2 + $0xe8] sm:$0xff]
        %v5784 = vld [vmem:[#allocation2 + $0xf0] sm:$0xff]
        %v5785 = vld [vmem:[#allocation2 + $0xf8] sm:$0xff]
        %v5786 = vld [vmem:[%s2] sm:$0x1]
        %v5788 = vlaneseq
        %v5789 = vshrl.u32 %v5788, 7
        %v5790 = vsub.s32 0, %v5789
        %v5791 = vrot.slane %v5786, %v5790
        %v5793 = vmul.f32 %v5754, %v5791
        %v5794 = vmul.f32 %v5755, %v5791
        %v5795 = vmul.f32 %v5756, %v5791
        %v5796 = vmul.f32 %v5757, %v5791
        %v5797 = vmul.f32 %v5758, %v5791
        %v5798 = vmul.f32 %v5759, %v5791
        %v5799 = vmul.f32 %v5760, %v5791
        %v5800 = vmul.f32 %v5761, %v5791
        %v5801 = vmul.f32 %v5762, %v5791
        %v5802 = vmul.f32 %v5763, %v5791
        %v5803 = vmul.f32 %v5764, %v5791
        %v5804 = vmul.f32 %v5765, %v5791
        %v5805 = vmul.f32 %v5766, %v5791
        %v5806 = vmul.f32 %v5767, %v5791
        %v5807 = vmul.f32 %v5768, %v5791
        %v5808 = vmul.f32 %v5769, %v5791
        %v5809 = vmul.f32 %v5770, %v5791
        %v5810 = vmul.f32 %v5771, %v5791
        %v5811 = vmul.f32 %v5772, %v5791
        %v5812 = vmul.f32 %v5773, %v5791
        %v5813 = vmul.f32 %v5774, %v5791
        %v5814 = vmul.f32 %v5775, %v5791
        %v5815 = vmul.f32 %v5776, %v5791
        %v5816 = vmul.f32 %v5777, %v5791
        %v5817 = vmul.f32 %v5778, %v5791
        %v5818 = vmul.f32 %v5779, %v5791
        %v5819 = vmul.f32 %v5780, %v5791
        %v5820 = vmul.f32 %v5781, %v5791
        %v5821 = vmul.f32 %v5782, %v5791
        %v5822 = vmul.f32 %v5783, %v5791
        %v5823 = vmul.f32 %v5784, %v5791
        %v5824 = vmul.f32 %v5785, %v5791
        %v5825 = vld [vmem:[%s3] sm:$0x1]
        %v5827 = vlaneseq
        %v5828 = vshrl.u32 %v5827, 7
        %v5829 = vsub.s32 0, %v5828
        %v5830 = vrot.slane %v5825, %v5829
        %v5832 = vadd.f32 %v5793, %v5830
        %v5833 = vadd.f32 %v5794, %v5830
        %v5834 = vadd.f32 %v5795, %v5830
        %v5835 = vadd.f32 %v5796, %v5830
        %v5836 = vadd.f32 %v5797, %v5830
        %v5837 = vadd.f32 %v5798, %v5830
        %v5838 = vadd.f32 %v5799, %v5830
        %v5839 = vadd.f32 %v5800, %v5830
        %v5840 = vadd.f32 %v5801, %v5830
        %v5841 = vadd.f32 %v5802, %v5830
        %v5842 = vadd.f32 %v5803, %v5830
        %v5843 = vadd.f32 %v5804, %v5830
        %v5844 = vadd.f32 %v5805, %v5830
        %v5845 = vadd.f32 %v5806, %v5830
        %v5846 = vadd.f32 %v5807, %v5830
        %v5847 = vadd.f32 %v5808, %v5830
        %v5848 = vadd.f32 %v5809, %v5830
        %v5849 = vadd.f32 %v5810, %v5830
        %v5850 = vadd.f32 %v5811, %v5830
        %v5851 = vadd.f32 %v5812, %v5830
        %v5852 = vadd.f32 %v5813, %v5830
        %v5853 = vadd.f32 %v5814, %v5830
        %v5854 = vadd.f32 %v5815, %v5830
        %v5855 = vadd.f32 %v5816, %v5830
        %v5856 = vadd.f32 %v5817, %v5830
        %v5857 = vadd.f32 %v5818, %v5830
        %v5858 = vadd.f32 %v5819, %v5830
        %v5859 = vadd.f32 %v5820, %v5830
        %v5860 = vadd.f32 %v5821, %v5830
        %v5861 = vadd.f32 %v5822, %v5830
        %v5862 = vadd.f32 %v5823, %v5830
        %v5863 = vadd.f32 %v5824, %v5830
        %v5864 = vxor.u32 %v5832, 2147483648
        %v5865 = vxor.u32 %v5833, 2147483648
        %v5866 = vxor.u32 %v5834, 2147483648
        %v5867 = vxor.u32 %v5835, 2147483648
        %v5868 = vxor.u32 %v5836, 2147483648
        %v5869 = vxor.u32 %v5837, 2147483648
        %v5870 = vxor.u32 %v5838, 2147483648
        %v5871 = vxor.u32 %v5839, 2147483648
        %v5872 = vxor.u32 %v5840, 2147483648
        %v5873 = vxor.u32 %v5841, 2147483648
        %v5874 = vxor.u32 %v5842, 2147483648
        %v5875 = vxor.u32 %v5843, 2147483648
        %v5876 = vxor.u32 %v5844, 2147483648
        %v5877 = vxor.u32 %v5845, 2147483648
        %v5878 = vxor.u32 %v5846, 2147483648
        %v5879 = vxor.u32 %v5847, 2147483648
        %v5880 = vxor.u32 %v5848, 2147483648
        %v5881 = vxor.u32 %v5849, 2147483648
        %v5882 = vxor.u32 %v5850, 2147483648
        %v5883 = vxor.u32 %v5851, 2147483648
        %v5884 = vxor.u32 %v5852, 2147483648
        %v5885 = vxor.u32 %v5853, 2147483648
        %v5886 = vxor.u32 %v5854, 2147483648
        %v5887 = vxor.u32 %v5855, 2147483648
        %v5888 = vxor.u32 %v5856, 2147483648
        %v5889 = vxor.u32 %v5857, 2147483648
        %v5890 = vxor.u32 %v5858, 2147483648
        %v5891 = vxor.u32 %v5859, 2147483648
        %v5892 = vxor.u32 %v5860, 2147483648
        %v5893 = vxor.u32 %v5861, 2147483648
        %v5894 = vxor.u32 %v5862, 2147483648
        %v5895 = vxor.u32 %v5863, 2147483648
        %v5896 = vmul.f32 %v5864, 1.442695
        %v5897 = vpow.pop %v5896
        %v5898 = vmul.f32 %v5865, 1.442695
        %v5899 = vpow.pop %v5898
        %v5900 = vmul.f32 %v5866, 1.442695
        %v5901 = vpow.pop %v5900
        %v5902 = vmul.f32 %v5867, 1.442695
        %v5903 = vpow.pop %v5902
        %v5904 = vmul.f32 %v5868, 1.442695
        %v5905 = vpow.pop %v5904
        %v5906 = vmul.f32 %v5869, 1.442695
        %v5907 = vpow.pop %v5906
        %v5908 = vmul.f32 %v5870, 1.442695
        %v5909 = vpow.pop %v5908
        %v5910 = vmul.f32 %v5871, 1.442695
        %v5911 = vpow.pop %v5910
        %v5912 = vmul.f32 %v5872, 1.442695
        %v5913 = vpow.pop %v5912
        %v5914 = vmul.f32 %v5873, 1.442695
        %v5915 = vpow.pop %v5914
        %v5916 = vmul.f32 %v5874, 1.442695
        %v5917 = vpow.pop %v5916
        %v5918 = vmul.f32 %v5875, 1.442695
        %v5919 = vpow.pop %v5918
        %v5920 = vmul.f32 %v5876, 1.442695
        %v5921 = vpow.pop %v5920
        %v5922 = vmul.f32 %v5877, 1.442695
        %v5923 = vpow.pop %v5922
        %v5924 = vmul.f32 %v5878, 1.442695
        %v5925 = vpow.pop %v5924
        %v5926 = vmul.f32 %v5879, 1.442695
        %v5927 = vpow.pop %v5926
        %v5928 = vmul.f32 %v5880, 1.442695
        %v5929 = vpow.pop %v5928
        %v5930 = vmul.f32 %v5881, 1.442695
        %v5931 = vpow.pop %v5930
        %v5932 = vmul.f32 %v5882, 1.442695
        %v5933 = vpow.pop %v5932
        %v5934 = vmul.f32 %v5883, 1.442695
        %v5935 = vpow.pop %v5934
        %v5936 = vmul.f32 %v5884, 1.442695
        %v5937 = vpow.pop %v5936
        %v5938 = vmul.f32 %v5885, 1.442695
        %v5939 = vpow.pop %v5938
        %v5940 = vmul.f32 %v5886, 1.442695
        %v5941 = vpow.pop %v5940
        %v5942 = vmul.f32 %v5887, 1.442695
        %v5943 = vpow.pop %v5942
        %v5944 = vmul.f32 %v5888, 1.442695
        %v5945 = vpow.pop %v5944
        %v5946 = vmul.f32 %v5889, 1.442695
        %v5947 = vpow.pop %v5946
        %v5948 = vmul.f32 %v5890, 1.442695
        %v5949 = vpow.pop %v5948
        %v5950 = vmul.f32 %v5891, 1.442695
        %v5951 = vpow.pop %v5950
        %v5952 = vmul.f32 %v5892, 1.442695
        %v5953 = vpow.pop %v5952
        %v5954 = vmul.f32 %v5893, 1.442695
        %v5955 = vpow.pop %v5954
        %v5956 = vmul.f32 %v5894, 1.442695
        %v5957 = vpow.pop %v5956
        %v5958 = vmul.f32 %v5895, 1.442695
        %v5959 = vpow.pop %v5958
        %v5960 = vadd.f32 %v5897, 1.0
        %v5961 = vadd.f32 %v5899, 1.0
        %v5962 = vadd.f32 %v5901, 1.0
        %v5963 = vadd.f32 %v5903, 1.0
        %v5964 = vadd.f32 %v5905, 1.0
        %v5965 = vadd.f32 %v5907, 1.0
        %v5966 = vadd.f32 %v5909, 1.0
        %v5967 = vadd.f32 %v5911, 1.0
        %v5968 = vadd.f32 %v5913, 1.0
        %v5969 = vadd.f32 %v5915, 1.0
        %v5970 = vadd.f32 %v5917, 1.0
        %v5971 = vadd.f32 %v5919, 1.0
        %v5972 = vadd.f32 %v5921, 1.0
        %v5973 = vadd.f32 %v5923, 1.0
        %v5974 = vadd.f32 %v5925, 1.0
        %v5975 = vadd.f32 %v5927, 1.0
        %v5976 = vadd.f32 %v5929, 1.0
        %v5977 = vadd.f32 %v5931, 1.0
        %v5978 = vadd.f32 %v5933, 1.0
        %v5979 = vadd.f32 %v5935, 1.0
        %v5980 = vadd.f32 %v5937, 1.0
        %v5981 = vadd.f32 %v5939, 1.0
        %v5982 = vadd.f32 %v5941, 1.0
        %v5983 = vadd.f32 %v5943, 1.0
        %v5984 = vadd.f32 %v5945, 1.0
        %v5985 = vadd.f32 %v5947, 1.0
        %v5986 = vadd.f32 %v5949, 1.0
        %v5987 = vadd.f32 %v5951, 1.0
        %v5988 = vadd.f32 %v5953, 1.0
        %v5989 = vadd.f32 %v5955, 1.0
        %v5990 = vadd.f32 %v5957, 1.0
        %v5991 = vadd.f32 %v5959, 1.0
        %v5992 = vrcp.pop %v5960
        %v5993 = vmul.f32 1.0, %v5992
        %v5994 = vrcp.pop %v5961
        %v5995 = vmul.f32 1.0, %v5994
        %v5996 = vrcp.pop %v5962
        %v5997 = vmul.f32 1.0, %v5996
        %v5998 = vrcp.pop %v5963
        %v5999 = vmul.f32 1.0, %v5998
        %v6000 = vrcp.pop %v5964
        %v6001 = vmul.f32 1.0, %v6000
        %v6002 = vrcp.pop %v5965
        %v6003 = vmul.f32 1.0, %v6002
        %v6004 = vrcp.pop %v5966
        %v6005 = vmul.f32 1.0, %v6004
        %v6006 = vrcp.pop %v5967
        %v6007 = vmul.f32 1.0, %v6006
        %v6008 = vrcp.pop %v5968
        %v6009 = vmul.f32 1.0, %v6008
        %v6010 = vrcp.pop %v5969
        %v6011 = vmul.f32 1.0, %v6010
        %v6012 = vrcp.pop %v5970
        %v6013 = vmul.f32 1.0, %v6012
        %v6014 = vrcp.pop %v5971
        %v6015 = vmul.f32 1.0, %v6014
        %v6016 = vrcp.pop %v5972
        %v6017 = vmul.f32 1.0, %v6016
        %v6018 = vrcp.pop %v5973
        %v6019 = vmul.f32 1.0, %v6018
        %v6020 = vrcp.pop %v5974
        %v6021 = vmul.f32 1.0, %v6020
        %v6022 = vrcp.pop %v5975
        %v6023 = vmul.f32 1.0, %v6022
        %v6024 = vrcp.pop %v5976
        %v6025 = vmul.f32 1.0, %v6024
        %v6026 = vrcp.pop %v5977
        %v6027 = vmul.f32 1.0, %v6026
        %v6028 = vrcp.pop %v5978
        %v6029 = vmul.f32 1.0, %v6028
        %v6030 = vrcp.pop %v5979
        %v6031 = vmul.f32 1.0, %v6030
        %v6032 = vrcp.pop %v5980
        %v6033 = vmul.f32 1.0, %v6032
        %v6034 = vrcp.pop %v5981
        %v6035 = vmul.f32 1.0, %v6034
        %v6036 = vrcp.pop %v5982
        %v6037 = vmul.f32 1.0, %v6036
        %v6038 = vrcp.pop %v5983
        %v6039 = vmul.f32 1.0, %v6038
        %v6040 = vrcp.pop %v5984
        %v6041 = vmul.f32 1.0, %v6040
        %v6042 = vrcp.pop %v5985
        %v6043 = vmul.f32 1.0, %v6042
        %v6044 = vrcp.pop %v5986
        %v6045 = vmul.f32 1.0, %v6044
        %v6046 = vrcp.pop %v5987
        %v6047 = vmul.f32 1.0, %v6046
        %v6048 = vrcp.pop %v5988
        %v6049 = vmul.f32 1.0, %v6048
        %v6050 = vrcp.pop %v5989
        %v6051 = vmul.f32 1.0, %v6050
        %v6052 = vrcp.pop %v5990
        %v6053 = vmul.f32 1.0, %v6052
        %v6054 = vrcp.pop %v5991
        %v6055 = vmul.f32 1.0, %v6054
        %v6056 = vmul.f32 %v5832, %v5993
        %v6057 = vmul.f32 %v5833, %v5995
        %v6058 = vmul.f32 %v5834, %v5997
        %v6059 = vmul.f32 %v5835, %v5999
        %v6060 = vmul.f32 %v5836, %v6001
        %v6061 = vmul.f32 %v5837, %v6003
        %v6062 = vmul.f32 %v5838, %v6005
        %v6063 = vmul.f32 %v5839, %v6007
        %v6064 = vmul.f32 %v5840, %v6009
        %v6065 = vmul.f32 %v5841, %v6011
        %v6066 = vmul.f32 %v5842, %v6013
        %v6067 = vmul.f32 %v5843, %v6015
        %v6068 = vmul.f32 %v5844, %v6017
        %v6069 = vmul.f32 %v5845, %v6019
        %v6070 = vmul.f32 %v5846, %v6021
        %v6071 = vmul.f32 %v5847, %v6023
        %v6072 = vmul.f32 %v5848, %v6025
        %v6073 = vmul.f32 %v5849, %v6027
        %v6074 = vmul.f32 %v5850, %v6029
        %v6075 = vmul.f32 %v5851, %v6031
        %v6076 = vmul.f32 %v5852, %v6033
        %v6077 = vmul.f32 %v5853, %v6035
        %v6078 = vmul.f32 %v5854, %v6037
        %v6079 = vmul.f32 %v5855, %v6039
        %v6080 = vmul.f32 %v5856, %v6041
        %v6081 = vmul.f32 %v5857, %v6043
        %v6082 = vmul.f32 %v5858, %v6045
        %v6083 = vmul.f32 %v5859, %v6047
        %v6084 = vmul.f32 %v5860, %v6049
        %v6085 = vmul.f32 %v5861, %v6051
        %v6086 = vmul.f32 %v5862, %v6053
        %v6087 = vmul.f32 %v5863, %v6055
        %6088 = vst [vmem:[%s214] sm:$0xff] %v6056
        %6089 = vst [vmem:[%s214 + $0x8] sm:$0xff] %v6057
        %6090 = vst [vmem:[%s214 + $0x10] sm:$0xff] %v6058
        %6091 = vst [vmem:[%s214 + $0x18] sm:$0xff] %v6059
        %6092 = vst [vmem:[%s214 + $0x20] sm:$0xff] %v6060
        %6093 = vst [vmem:[%s214 + $0x28] sm:$0xff] %v6061
        %6094 = vst [vmem:[%s214 + $0x30] sm:$0xff] %v6062
        %6095 = vst [vmem:[%s214 + $0x38] sm:$0xff] %v6063
        %6096 = vst [vmem:[%s214 + $0x40] sm:$0xff] %v6064
        %6097 = vst [vmem:[%s214 + $0x48] sm:$0xff] %v6065
        %6098 = vst [vmem:[%s214 + $0x50] sm:$0xff] %v6066
        %6099 = vst [vmem:[%s214 + $0x58] sm:$0xff] %v6067
        %6100 = vst [vmem:[%s214 + $0x60] sm:$0xff] %v6068
        %6101 = vst [vmem:[%s214 + $0x68] sm:$0xff] %v6069
        %6102 = vst [vmem:[%s214 + $0x70] sm:$0xff] %v6070
        %6103 = vst [vmem:[%s214 + $0x78] sm:$0xff] %v6071
        %6104 = vst [vmem:[%s214 + $0x80] sm:$0xff] %v6072
        %6105 = vst [vmem:[%s214 + $0x88] sm:$0xff] %v6073
        %6106 = vst [vmem:[%s214 + $0x90] sm:$0xff] %v6074
        %6107 = vst [vmem:[%s214 + $0x98] sm:$0xff] %v6075
        %6108 = vst [vmem:[%s214 + $0xa0] sm:$0xff] %v6076
        %6109 = vst [vmem:[%s214 + $0xa8] sm:$0xff] %v6077
        %6110 = vst [vmem:[%s214 + $0xb0] sm:$0xff] %v6078
        %6111 = vst [vmem:[%s214 + $0xb8] sm:$0xff] %v6079
        %6112 = vst [vmem:[%s214 + $0xc0] sm:$0xff] %v6080
        %6113 = vst [vmem:[%s214 + $0xc8] sm:$0xff] %v6081
        %6114 = vst [vmem:[%s214 + $0xd0] sm:$0xff] %v6082
        %6115 = vst [vmem:[%s214 + $0xd8] sm:$0xff] %v6083
        %6116 = vst [vmem:[%s214 + $0xe0] sm:$0xff] %v6084
        %6117 = vst [vmem:[%s214 + $0xe8] sm:$0xff] %v6085
        %6118 = vst [vmem:[%s214 + $0xf0] sm:$0xff] %v6086
        %6119 = vst [vmem:[%s214 + $0xf8] sm:$0xff] %v6087
        %s6120 = sand.u32 %s131, 1
        %s6121 = scalar_lea.sflag [#allocation4], %s6120
        %s6122 = sand.u32 %s131, 1
        %s6123 = smul.addr %s6122, 256
        %s6124 = scalar_lea.vmem [#allocation3], %s6123
        // Predicated region
        $region37: #{tpu_custom_call.1} parent=35 // pred_check
          %p6125 = pneg %p141
        $region38: #{tpu_custom_call.1} parent=35 // pred_check_branch
          %6127 = sbr.rel (%p6125) target = $region40
        $region39: #{tpu_custom_call.1} parent=35 // pred_region
          %s6129 = ssub.s32 4096, 4096
          %6130 = vsyncadd %s6121, %s6129
          %s6131 = smul.addr %s23, 32
          %s6132 = smul.addr %s22, 32
          %s6133 = sadd.s32 %s6131, %s6132
          %s6134 = smul.addr %s6133, 128
          %s6135 = scalar_lea.hbm %s4, %s6134
          %s6136 = sshll.u32 %s6124, 4
          %s6137 = int_to_ptr.vmem [resolvable:$true] %s6136
          %6142 = dma.vmem_to_hbm [thread:$0]  %s6137, 4096, %s6135, %s6121, 128, 128, 8
        $region40: #{tpu_custom_call.1} parent=35 // pred_fallthru
          _
      $region36: #{tpu_custom_call.1} parent=5 // pred_fallthru
        _
      %p6143 = scmp.le.s32.totalorder 2, %s13
      // Predicated region
      $region41: #{tpu_custom_call.1} parent=5 // pred_check
        %p6144 = pneg %p6143
      $region42: #{tpu_custom_call.1} parent=5 // pred_check_branch
        %6146 = sbr.rel (%p6144) target = $region44
      $region43: #{tpu_custom_call.1} parent=5 // pred_region
        %s6147 = ssub.s32 %s13, 2
        // Predicated region
        $region45: #{tpu_custom_call.1} parent=43 // pred_check
          %p6148 = pneg %p147
        $region46: #{tpu_custom_call.1} parent=43 // pred_check_branch
          %6150 = sbr.rel (%p6148) target = $region48
        $region47: #{tpu_custom_call.1} parent=43 // pred_region
          %s6151 = sand.u32 %s132, 1
          %s6152 = scalar_lea.sflag [#allocation4], %s6151
          %s6153 = sand.u32 %s132, 1
          %s6154 = smul.addr %s6153, 256
          %s6155 = scalar_lea.vmem [#allocation3], %s6154
          %6156 = dma.done %s6152, 4096
        $region48: #{tpu_custom_call.1} parent=43 // pred_fallthru
          _
      $region44: #{tpu_custom_call.1} parent=5 // pred_fallthru
        _
    $region6: #{tpu_custom_call.1} parent=1 // loop_footer
      %s17 = sadd.s32 1, %s13
    $region7: #{tpu_custom_call.1} parent=1 // loop_footer_branch
      %12 = sbr.rel target = $region3
    $region8: #{tpu_custom_call.1} parent=1 // loop_exit
      _
    %6157 = vsyncpa [#allocation4], 1
    %s6158 = scalar_lea.sflag [#allocation4], 1
    %6159 = vsyncpa %s6158, 1

</llo_original>
